<compile_context>
chip_gen: v5e
topology: v5e:2x2
jax: 0.10.0
libtpu: 0.0.40
codegen_flags: <defaults>
</compile_context>

<pallas_src>
import math

import jax
import jax.numpy as jnp
from jax.experimental import pallas as pl
from jax.experimental.pallas import tpu as pltpu

# ---- model hyper-parameters (opt.*) -----------------------------------------
TEXT_DIM = 768       # roberta text / topic feature dim (fixed by the module)
IMG_DIM = 1000       # resnet / densenet feature dim (fixed by the module)
COMMON_DIM = 32      # opt.common_dim (small, divisible by num_heads)
NUM_HEADS = 4
HEAD_DIM = COMMON_DIM // NUM_HEADS
NUM_CLASSES = 3      # opt.num_classes
BATCH = 2

D = COMMON_DIM
OUT_LANES = 128      # lane-dense padded class dim emitted by the kernel
MAX_TILE_B = 128     # batch rows per grid step (one MXU LHS pass on v5e)

# ---- packed-parameter lane offsets (every block is 128-lane-tile local) ------
W_QKVF_OFF = 0            # [32, 128] [Wq|Wk|Wv|Wfc1b]          (tile 0)
W_HEAD_OFF = 128          # [32, 32]  block-diag head reduce/bcast, scale folded (tile 1)
W_GO_OFF = 160            # [32, 32]  folded global out_proj @ global_fc
W_SEM_OFF = 192           # [32, 32]  folded sem v_proj @ out_proj @ semantic_fc
W_ADD_OFF = 224           # [32, 32]  add_fc
W_FC1A_OFF = 256          # [32, 32]  fc1 rows acting on `combined`   (tile 2)
W_FC2_OFF = 384           # [32, 128] fc2 zero-padded to 128 classes  (tile 3)
W_PACK_LANES = 512

B_T_OFF = 0               # text proj bias                      (tile 0)
B_TP_OFF = 32             # topic proj bias
B_R_OFF = 64              # resnet proj bias
B_GO_OFF = 96             # folded global bias
B_QKVF_OFF = 128          # [1, 128] [bq|bk|bv|0]               (tile 1)
B_SEM_OFF = 256           # folded semantic bias                (tile 2)
B_ADD_OFF = 288
B_FC1_OFF = 320
B_FC2_OFF = 384           # [1, 128], padded classes carry -1e30 (tile 3)
B_PACK_LANES = 512


def cmhafusion_kernel(text_ref, topic_ref, resnet_ref,
                      w_t_ref, w_tp_ref, w_r_ref, wp_ref, bp_ref, out_ref):
    f32 = jnp.float32
    bf16 = jnp.bfloat16

    def w(off, width=D):
        return wp_ref[:, off:off + width]

    def b(off, width=D):
        return bp_ref[:, off:off + width]

    def big_dot(x_f32, w_bf16):
        # dominant-K projections: bf16 MXU passes, f32 accumulate
        return jnp.dot(x_f32.astype(bf16), w_bf16, preferred_element_type=f32)

    def small_dot(x, y):
        # tiny [*,32]x[32,<=128] matmuls: exact f32 MXU passes (parity w/ PyTorch)
        return jnp.dot(x, y, preferred_element_type=f32,
                       precision=jax.lax.Precision.HIGHEST)

    def relu(x):
        return jnp.maximum(x, 0.0)

    # ---- modality projections (K = 768 / 768 / 1000) ------------------------
    text_proj = relu(big_dot(text_ref[...], w_t_ref[...]) + b(B_T_OFF))
    topic_proj = relu(big_dot(topic_ref[...], w_tp_ref[...]) + b(B_TP_OFF))
    resnet_proj = relu(big_dot(resnet_ref[...], w_r_ref[...]) + b(B_R_OFF))
    # densenet_proj pruned: semantic attention key length is 1 -> softmax == 1,
    # so the densenet query provably never influences the module output.

    # ---- global self-attention over the 2-token sequence --------------------
    # low_level_fusion = [text_proj, resnet_proj]; the module only consumes the
    # attention output at query position 0 (text).  One lane-dense 128-wide
    # matmul per token against [Wq|Wk|Wv|Wfc1b]; the fc1b lanes of the text
    # rows are the text half of fc1(concat(...)), computed here for free.
    qkvf_t = small_dot(text_proj, w(W_QKVF_OFF, 4 * D)) + b(B_QKVF_OFF, 4 * D)
    qkvf_r = small_dot(resnet_proj, w(W_QKVF_OFF, 4 * D)) + b(B_QKVF_OFF, 4 * D)
    q0 = qkvf_t[:, 0:D]
    k0 = qkvf_t[:, D:2 * D]
    v0 = qkvf_t[:, 2 * D:3 * D]
    fc1_text = qkvf_t[:, 3 * D:4 * D]          # text_proj @ fc1[D:2D,:] (bias later)
    k1 = qkvf_r[:, D:2 * D]
    v1 = qkvf_r[:, 2 * D:3 * D]

    # softmax over the 2 keys == sigmoid of the scaled per-head score diff; the
    # packed block-diagonal matrix (scale folded in) does the per-head reduce
    # AND the broadcast back to 32 lanes in a single MXU pass.
    diff = small_dot(q0 * (k0 - k1), w(W_HEAD_OFF))            # [tb, 32]
    a0 = pl.reciprocal(1.0 + jnp.exp(-diff), approx=False)     # exact sigmoid
    g_attn0 = v1 + a0 * (v0 - v1)

    # folded out_proj @ global_fc  /  folded semantic linear chain
    global_fusion = relu(small_dot(g_attn0, w(W_GO_OFF)) + b(B_GO_OFF))
    semantic_fusion = relu(small_dot(topic_proj, w(W_SEM_OFF)) + b(B_SEM_OFF))
    combined = relu(small_dot(global_fusion + semantic_fusion, w(W_ADD_OFF))
                    + b(B_ADD_OFF))

    # fc1(concat([combined, text_proj], dim=1)) as a split matmul (text half fused above)
    x = relu(small_dot(combined, w(W_FC1A_OFF)) + fc1_text + b(B_FC1_OFF))

    # fc2 zero-padded to 128 lanes; padded classes carry a -1e30 bias so the
    # 128-lane stable softmax equals the 3-class softmax exactly.
    logits = small_dot(x, w(W_FC2_OFF, OUT_LANES)) + b(B_FC2_OFF, OUT_LANES)
    m = jnp.max(logits, axis=-1, keepdims=True)
    e = jnp.exp(logits - m)
    out_ref[...] = e * pl.reciprocal(jnp.sum(e, axis=-1, keepdims=True), approx=False)


# ------------------------------- parameters -----------------------------------
def init_params(key):
    """Synthetic per-layer parameters (PyTorch nn.Linear-style init), stored in
    [in_features, out_features] layout (row-vector convention: y = x @ W + b)."""
    ks = iter(jax.random.split(key, 64))

    def linear(in_dim, out_dim):
        bound = 1.0 / math.sqrt(in_dim)
        wgt = jax.random.uniform(next(ks), (in_dim, out_dim), jnp.float32, -bound, bound)
        bias = jax.random.uniform(next(ks), (1, out_dim), jnp.float32, -bound, bound)
        return wgt, bias

    p = {}
    p["wt"], p["bt"] = linear(TEXT_DIM, D)       # roberta_text_proj
    p["wtp"], p["btp"] = linear(TEXT_DIM, D)     # roberta_topic_proj
    p["wr"], p["br"] = linear(IMG_DIM, D)        # resnet_proj
    # densenet_proj and the semantic q/k in-projections never influence the
    # output (semantic key length 1 -> softmax == 1), so they are omitted.
    p["g_wq"], p["g_bq"] = linear(D, D)
    p["g_wk"], p["g_bk"] = linear(D, D)
    p["g_wv"], p["g_bv"] = linear(D, D)
    p["g_wo"], p["g_bo"] = linear(D, D)
    p["s_wv"], p["s_bv"] = linear(D, D)
    p["s_wo"], p["s_bo"] = linear(D, D)
    p["gfc_w"], p["gfc_b"] = linear(D, D)
    p["sfc_w"], p["sfc_b"] = linear(D, D)
    p["add_w"], p["add_b"] = linear(D, D)
    # fc1: in = 2*D, split into the half acting on `combined` and on `text_proj`
    bound = 1.0 / math.sqrt(2 * D)
    p["fc1a_w"] = jax.random.uniform(next(ks), (D, D), jnp.float32, -bound, bound)
    p["fc1b_w"] = jax.random.uniform(next(ks), (D, D), jnp.float32, -bound, bound)
    p["fc1_b"] = jax.random.uniform(next(ks), (1, D), jnp.float32, -bound, bound)
    p["fc2_w"], p["fc2_b"] = linear(D, NUM_CLASSES)
    return p


def pack_params(p):
    """Offline, one-time folding + packing into 5 lane-dense kernel buffers."""
    f32 = jnp.float32
    bf16 = jnp.bfloat16

    # dominant-K projection weights in bf16 (halves their HBM traffic; MXU is bf16)
    w_text = p["wt"].astype(bf16)                                       # [768, 32]
    w_topic = p["wtp"].astype(bf16)                                     # [768, 32]
    w_resnet = p["wr"].astype(bf16)                                     # [1000, 32]

    # exact folds of purely-linear chains (f32 on host, row-vector x @ W + b)
    w_go = p["g_wo"] @ p["gfc_w"]
    b_go = p["g_bo"] @ p["gfc_w"] + p["gfc_b"]
    w_sem = p["s_wv"] @ p["s_wo"] @ p["sfc_w"]
    b_sem = (p["s_bv"] @ p["s_wo"] + p["s_bo"]) @ p["sfc_w"] + p["sfc_b"]

    # [Wq|Wk|Wv|Wfc1b]: exactly 128 lanes (one MXU pass on v5e, sub-tile on v6e/v7x)
    w_qkvf = jnp.concatenate([p["g_wq"], p["g_wk"], p["g_wv"], p["fc1b_w"]], axis=1)
    b_qkvf = jnp.concatenate(
        [p["g_bq"], p["g_bk"], p["g_bv"], jnp.zeros((1, D), f32)], axis=1)

    # block-diagonal per-head reduce+broadcast matrix, attention scale folded in
    head = jnp.arange(D) // HEAD_DIM
    w_head = (head[:, None] == head[None, :]).astype(f32) / math.sqrt(HEAD_DIM)

    # fc2 zero-padded to a lane-dense 128-wide output; padded classes get -1e30 bias
    pad = OUT_LANES - NUM_CLASSES
    w_fc2 = jnp.pad(p["fc2_w"], ((0, 0), (0, pad)))
    b_fc2 = jnp.pad(p["fc2_b"], ((0, 0), (0, pad)), constant_values=-1e30)

    w_pack = jnp.concatenate(
        [w_qkvf,                                                # lanes   0:128
         w_head, w_go, w_sem, p["add_w"],                       # lanes 128:256
         p["fc1a_w"], jnp.zeros((D, 3 * D), f32),               # lanes 256:384
         w_fc2],                                                # lanes 384:512
        axis=1)
    b_pack = jnp.concatenate(
        [p["bt"], p["btp"], p["br"], b_go,                      # lanes   0:128
         b_qkvf,                                                # lanes 128:256
         b_sem, p["add_b"], p["fc1_b"], jnp.zeros((1, D), f32),  # lanes 256:384
         b_fc2],                                                # lanes 384:512
        axis=1)
    assert w_pack.shape == (D, W_PACK_LANES)
    assert b_pack.shape == (1, B_PACK_LANES)
    return {"w_text": w_text, "w_topic": w_topic, "w_resnet": w_resnet,
            "w_pack": w_pack.astype(f32), "b_pack": b_pack.astype(f32)}


# ------------------------------- wrapper --------------------------------------
def cmhafusion_forward(text, topic, resnet, densenet, packed, max_tile_b=MAX_TILE_B):
    # densenet_features provably do not affect the module output (the semantic
    # attention key length is 1, so its softmax is identically 1 and the query
    # cancels out) -> pruned.
    del densenet
    B = text.shape[0]
    if B <= max_tile_b:
        tile_b, pb = B, B                      # single grid step, no padding
    else:
        tile_b = max_tile_b
        pb = ((B + tile_b - 1) // tile_b) * tile_b
        pad = ((0, pb - B), (0, 0))
        text = jnp.pad(text, pad)
        topic = jnp.pad(topic, pad)
        resnet = jnp.pad(resnet, pad)

    stream = lambda d: pl.BlockSpec((tile_b, d), lambda i: (i, 0))
    resident = lambda shape: pl.BlockSpec(shape, lambda i: (0, 0))  # DMA once, stays in VMEM

    probs = pl.pallas_call(
        cmhafusion_kernel,
        out_shape=jax.ShapeDtypeStruct((pb, OUT_LANES), jnp.float32),
        grid=(pb // tile_b,),
        in_specs=[stream(TEXT_DIM), stream(TEXT_DIM), stream(IMG_DIM),
                  resident((TEXT_DIM, D)), resident((TEXT_DIM, D)),
                  resident((IMG_DIM, D)),
                  resident((D, W_PACK_LANES)), resident((1, B_PACK_LANES))],
        out_specs=stream(OUT_LANES),
        compiler_params=pltpu.CompilerParams(
            dimension_semantics=("parallel",)),    # shard batch tiles across TCs (v7x)
    )(text, topic, resnet,
      packed["w_text"], packed["w_topic"], packed["w_resnet"],
      packed["w_pack"], packed["b_pack"])
    return probs[:B, :NUM_CLASSES]


if __name__ == "__main__":
    root = jax.random.PRNGKey(0)
    k_text, k_topic, k_res, k_dense, k_params = jax.random.split(root, 5)

    text = jax.random.normal(k_text, (BATCH, TEXT_DIM), jnp.float32)
    topic = jax.random.normal(k_topic, (BATCH, TEXT_DIM), jnp.float32)
    resnet = jax.random.normal(k_res, (BATCH, IMG_DIM), jnp.float32)
    densenet = jax.random.normal(k_dense, (BATCH, IMG_DIM), jnp.float32)
    params = init_params(k_params)
    packed = pack_params(params)   # offline: fold linear chains + coalesce/align DMAs

    out = cmhafusion_forward(text, topic, resnet, densenet, packed)
    out = jax.block_until_ready(out)

    assert out.shape == (BATCH, NUM_CLASSES)
    # softmax rows must sum to 1 (padded classes contribute exactly 0)
    assert bool(jnp.allclose(jnp.sum(out, axis=-1), 1.0, atol=1e-5))
    print("KERNEL_OK")
</pallas_src>

<mosaic_0001>
module attributes {stable_mosaic.version = 11 : i64} {
  func.func @cmhafusion_kernel(%arg0: i32, %arg1: memref<2x768xf32, #tpu.memory_space<vmem>>, %arg2: memref<2x768xf32, #tpu.memory_space<vmem>>, %arg3: memref<2x1000xf32, #tpu.memory_space<vmem>>, %arg4: memref<768x32xbf16, #tpu.memory_space<vmem>>, %arg5: memref<768x32xbf16, #tpu.memory_space<vmem>>, %arg6: memref<1000x32xbf16, #tpu.memory_space<vmem>>, %arg7: memref<32x512xf32, #tpu.memory_space<vmem>>, %arg8: memref<1x512xf32, #tpu.memory_space<vmem>>, %arg9: memref<2x128xf32, #tpu.memory_space<vmem>>) attributes {dimension_semantics = [#tpu.dimension_semantics<parallel>], iteration_bounds = array<i64: 1>, scalar_prefetch = 0 : i64, scratch_operands = 0 : i64, tpu.core_type = #tpu.core_type<tc>, window_params = [{transform_indices = @transform_0, window_bounds = array<i64: 2, 768>}, {transform_indices = @transform_1, window_bounds = array<i64: 2, 768>}, {transform_indices = @transform_2, window_bounds = array<i64: 2, 1000>}, {pipeline_mode = #tpu.pipeline_mode<synchronous>, transform_indices = @transform_3, window_bounds = array<i64: 768, 32>}, {pipeline_mode = #tpu.pipeline_mode<synchronous>, transform_indices = @transform_4, window_bounds = array<i64: 768, 32>}, {pipeline_mode = #tpu.pipeline_mode<synchronous>, transform_indices = @transform_5, window_bounds = array<i64: 1000, 32>}, {pipeline_mode = #tpu.pipeline_mode<synchronous>, transform_indices = @transform_6, window_bounds = array<i64: 32, 512>}, {pipeline_mode = #tpu.pipeline_mode<synchronous>, transform_indices = @transform_7, window_bounds = array<i64: 1, 512>}, {transform_indices = @transform_8, window_bounds = array<i64: 2, 128>}]} {
    %c0 = arith.constant 0 : index
    %c0_0 = arith.constant 0 : index
    %0 = vector.load %arg1[%c0, %c0_0] : memref<2x768xf32, #tpu.memory_space<vmem>>, vector<2x768xf32>
    %c0_1 = arith.constant 0 : index
    %c0_2 = arith.constant 0 : index
    %1 = vector.load %arg4[%c0_1, %c0_2] : memref<768x32xbf16, #tpu.memory_space<vmem>>, vector<768x32xbf16>
    %2 = arith.truncf %0 : vector<2x768xf32> to vector<2x768xbf16>
    %cst = arith.constant dense<0.000000e+00> : vector<2x32xf32>
    %3 = tpu.matmul %2, %1, %cst {dimension_numbers = #tpu.dot_dimension_numbers<[1], [0], [0], [1], [0, 0, 1, 1], [], []>} : vector<2x768xbf16>, vector<768x32xbf16>, vector<2x32xf32> -> vector<2x32xf32>
    %c0_3 = arith.constant 0 : index
    %c0_4 = arith.constant 0 : index
    %4 = vector.load %arg8[%c0_3, %c0_4] : memref<1x512xf32, #tpu.memory_space<vmem>>, vector<1x32xf32>
    %5 = vector.broadcast %4 : vector<1x32xf32> to vector<2x32xf32>
    %6 = arith.addf %3, %5 : vector<2x32xf32>
    %cst_5 = arith.constant 0.000000e+00 : f32
    %7 = vector.broadcast %cst_5 : f32 to vector<2x32xf32>
    %8 = arith.maximumf %6, %7 : vector<2x32xf32>
    %c0_6 = arith.constant 0 : index
    %c0_7 = arith.constant 0 : index
    %9 = vector.load %arg2[%c0_6, %c0_7] : memref<2x768xf32, #tpu.memory_space<vmem>>, vector<2x768xf32>
    %c0_8 = arith.constant 0 : index
    %c0_9 = arith.constant 0 : index
    %10 = vector.load %arg5[%c0_8, %c0_9] : memref<768x32xbf16, #tpu.memory_space<vmem>>, vector<768x32xbf16>
    %11 = arith.truncf %9 : vector<2x768xf32> to vector<2x768xbf16>
    %cst_10 = arith.constant dense<0.000000e+00> : vector<2x32xf32>
    %12 = tpu.matmul %11, %10, %cst_10 {dimension_numbers = #tpu.dot_dimension_numbers<[1], [0], [0], [1], [0, 0, 1, 1], [], []>} : vector<2x768xbf16>, vector<768x32xbf16>, vector<2x32xf32> -> vector<2x32xf32>
    %c0_11 = arith.constant 0 : index
    %c32 = arith.constant 32 : index
    %13 = vector.load %arg8[%c0_11, %c32] : memref<1x512xf32, #tpu.memory_space<vmem>>, vector<1x32xf32>
    %14 = vector.broadcast %13 : vector<1x32xf32> to vector<2x32xf32>
    %15 = arith.addf %12, %14 : vector<2x32xf32>
    %cst_12 = arith.constant 0.000000e+00 : f32
    %16 = vector.broadcast %cst_12 : f32 to vector<2x32xf32>
    %17 = arith.maximumf %15, %16 : vector<2x32xf32>
    %c0_13 = arith.constant 0 : index
    %c0_14 = arith.constant 0 : index
    %18 = vector.load %arg3[%c0_13, %c0_14] : memref<2x1000xf32, #tpu.memory_space<vmem>>, vector<2x1000xf32>
    %c0_15 = arith.constant 0 : index
    %c0_16 = arith.constant 0 : index
    %19 = vector.load %arg6[%c0_15, %c0_16] : memref<1000x32xbf16, #tpu.memory_space<vmem>>, vector<1000x32xbf16>
    %20 = arith.truncf %18 : vector<2x1000xf32> to vector<2x1000xbf16>
    %cst_17 = arith.constant dense<0.000000e+00> : vector<2x32xf32>
    %21 = tpu.matmul %20, %19, %cst_17 {dimension_numbers = #tpu.dot_dimension_numbers<[1], [0], [0], [1], [0, 0, 1, 1], [], []>} : vector<2x1000xbf16>, vector<1000x32xbf16>, vector<2x32xf32> -> vector<2x32xf32>
    %c0_18 = arith.constant 0 : index
    %c64 = arith.constant 64 : index
    %22 = vector.load %arg8[%c0_18, %c64] : memref<1x512xf32, #tpu.memory_space<vmem>>, vector<1x32xf32>
    %23 = vector.broadcast %22 : vector<1x32xf32> to vector<2x32xf32>
    %24 = arith.addf %21, %23 : vector<2x32xf32>
    %cst_19 = arith.constant 0.000000e+00 : f32
    %25 = vector.broadcast %cst_19 : f32 to vector<2x32xf32>
    %26 = arith.maximumf %24, %25 : vector<2x32xf32>
    %c0_20 = arith.constant 0 : index
    %c0_21 = arith.constant 0 : index
    %27 = vector.load %arg7[%c0_20, %c0_21] : memref<32x512xf32, #tpu.memory_space<vmem>>, vector<32x128xf32>
    %cst_22 = arith.constant dense<0.000000e+00> : vector<2x128xf32>
    %28 = tpu.matmul %8, %27, %cst_22 {dimension_numbers = #tpu.dot_dimension_numbers<[1], [0], [0], [1], [0, 0, 1, 1], [], []>, precision = #tpu.contract_precision<fp32>} : vector<2x32xf32>, vector<32x128xf32>, vector<2x128xf32> -> vector<2x128xf32>
    %c0_23 = arith.constant 0 : index
    %c128 = arith.constant 128 : index
    %29 = vector.load %arg8[%c0_23, %c128] : memref<1x512xf32, #tpu.memory_space<vmem>>, vector<1x128xf32>
    %30 = vector.broadcast %29 : vector<1x128xf32> to vector<2x128xf32>
    %31 = arith.addf %28, %30 : vector<2x128xf32>
    %c0_24 = arith.constant 0 : index
    %c0_25 = arith.constant 0 : index
    %32 = vector.load %arg7[%c0_24, %c0_25] : memref<32x512xf32, #tpu.memory_space<vmem>>, vector<32x128xf32>
    %cst_26 = arith.constant dense<0.000000e+00> : vector<2x128xf32>
    %33 = tpu.matmul %26, %32, %cst_26 {dimension_numbers = #tpu.dot_dimension_numbers<[1], [0], [0], [1], [0, 0, 1, 1], [], []>, precision = #tpu.contract_precision<fp32>} : vector<2x32xf32>, vector<32x128xf32>, vector<2x128xf32> -> vector<2x128xf32>
    %c0_27 = arith.constant 0 : index
    %c128_28 = arith.constant 128 : index
    %34 = vector.load %arg8[%c0_27, %c128_28] : memref<1x512xf32, #tpu.memory_space<vmem>>, vector<1x128xf32>
    %35 = vector.broadcast %34 : vector<1x128xf32> to vector<2x128xf32>
    %36 = arith.addf %33, %35 : vector<2x128xf32>
    %37 = vector.extract_strided_slice %31 {offsets = [0, 0], sizes = [2, 32], strides = [1, 1]} : vector<2x128xf32> to vector<2x32xf32>
    %38 = vector.extract_strided_slice %31 {offsets = [0, 32], sizes = [2, 32], strides = [1, 1]} : vector<2x128xf32> to vector<2x32xf32>
    %39 = vector.extract_strided_slice %31 {offsets = [0, 64], sizes = [2, 32], strides = [1, 1]} : vector<2x128xf32> to vector<2x32xf32>
    %40 = vector.extract_strided_slice %31 {offsets = [0, 96], sizes = [2, 32], strides = [1, 1]} : vector<2x128xf32> to vector<2x32xf32>
    %41 = vector.extract_strided_slice %36 {offsets = [0, 32], sizes = [2, 32], strides = [1, 1]} : vector<2x128xf32> to vector<2x32xf32>
    %42 = vector.extract_strided_slice %36 {offsets = [0, 64], sizes = [2, 32], strides = [1, 1]} : vector<2x128xf32> to vector<2x32xf32>
    %43 = arith.subf %38, %41 : vector<2x32xf32>
    %44 = arith.mulf %37, %43 : vector<2x32xf32>
    %c0_29 = arith.constant 0 : index
    %c128_30 = arith.constant 128 : index
    %45 = vector.load %arg7[%c0_29, %c128_30] : memref<32x512xf32, #tpu.memory_space<vmem>>, vector<32x32xf32>
    %cst_31 = arith.constant dense<0.000000e+00> : vector<2x32xf32>
    %46 = tpu.matmul %44, %45, %cst_31 {dimension_numbers = #tpu.dot_dimension_numbers<[1], [0], [0], [1], [0, 0, 1, 1], [], []>, precision = #tpu.contract_precision<fp32>} : vector<2x32xf32>, vector<32x32xf32>, vector<2x32xf32> -> vector<2x32xf32>
    %cst_32 = arith.constant 0.000000e+00 : f32
    %47 = vector.broadcast %cst_32 : f32 to vector<2x32xf32>
    %48 = arith.subf %47, %46 : vector<2x32xf32>
    %49 = math.exp %48 : vector<2x32xf32>
    %cst_33 = arith.constant 1.000000e+00 : f32
    %50 = vector.broadcast %cst_33 : f32 to vector<2x32xf32>
    %51 = arith.addf %50, %49 : vector<2x32xf32>
    %52 = tpu.reciprocal %51 : vector<2x32xf32> -> vector<2x32xf32>
    %53 = arith.subf %39, %42 : vector<2x32xf32>
    %54 = arith.mulf %52, %53 : vector<2x32xf32>
    %55 = arith.addf %42, %54 : vector<2x32xf32>
    %c0_34 = arith.constant 0 : index
    %c160 = arith.constant 160 : index
    %56 = vector.load %arg7[%c0_34, %c160] : memref<32x512xf32, #tpu.memory_space<vmem>>, vector<32x32xf32>
    %cst_35 = arith.constant dense<0.000000e+00> : vector<2x32xf32>
    %57 = tpu.matmul %55, %56, %cst_35 {dimension_numbers = #tpu.dot_dimension_numbers<[1], [0], [0], [1], [0, 0, 1, 1], [], []>, precision = #tpu.contract_precision<fp32>} : vector<2x32xf32>, vector<32x32xf32>, vector<2x32xf32> -> vector<2x32xf32>
    %c0_36 = arith.constant 0 : index
    %c96 = arith.constant 96 : index
    %58 = vector.load %arg8[%c0_36, %c96] : memref<1x512xf32, #tpu.memory_space<vmem>>, vector<1x32xf32>
    %59 = vector.broadcast %58 : vector<1x32xf32> to vector<2x32xf32>
    %60 = arith.addf %57, %59 : vector<2x32xf32>
    %cst_37 = arith.constant 0.000000e+00 : f32
    %61 = vector.broadcast %cst_37 : f32 to vector<2x32xf32>
    %62 = arith.maximumf %60, %61 : vector<2x32xf32>
    %c0_38 = arith.constant 0 : index
    %c192 = arith.constant 192 : index
    %63 = vector.load %arg7[%c0_38, %c192] : memref<32x512xf32, #tpu.memory_space<vmem>>, vector<32x32xf32>
    %cst_39 = arith.constant dense<0.000000e+00> : vector<2x32xf32>
    %64 = tpu.matmul %17, %63, %cst_39 {dimension_numbers = #tpu.dot_dimension_numbers<[1], [0], [0], [1], [0, 0, 1, 1], [], []>, precision = #tpu.contract_precision<fp32>} : vector<2x32xf32>, vector<32x32xf32>, vector<2x32xf32> -> vector<2x32xf32>
    %c0_40 = arith.constant 0 : index
    %c256 = arith.constant 256 : index
    %65 = vector.load %arg8[%c0_40, %c256] : memref<1x512xf32, #tpu.memory_space<vmem>>, vector<1x32xf32>
    %66 = vector.broadcast %65 : vector<1x32xf32> to vector<2x32xf32>
    %67 = arith.addf %64, %66 : vector<2x32xf32>
    %cst_41 = arith.constant 0.000000e+00 : f32
    %68 = vector.broadcast %cst_41 : f32 to vector<2x32xf32>
    %69 = arith.maximumf %67, %68 : vector<2x32xf32>
    %70 = arith.addf %62, %69 : vector<2x32xf32>
    %c0_42 = arith.constant 0 : index
    %c224 = arith.constant 224 : index
    %71 = vector.load %arg7[%c0_42, %c224] : memref<32x512xf32, #tpu.memory_space<vmem>>, vector<32x32xf32>
    %cst_43 = arith.constant dense<0.000000e+00> : vector<2x32xf32>
    %72 = tpu.matmul %70, %71, %cst_43 {dimension_numbers = #tpu.dot_dimension_numbers<[1], [0], [0], [1], [0, 0, 1, 1], [], []>, precision = #tpu.contract_precision<fp32>} : vector<2x32xf32>, vector<32x32xf32>, vector<2x32xf32> -> vector<2x32xf32>
    %c0_44 = arith.constant 0 : index
    %c288 = arith.constant 288 : index
    %73 = vector.load %arg8[%c0_44, %c288] : memref<1x512xf32, #tpu.memory_space<vmem>>, vector<1x32xf32>
    %74 = vector.broadcast %73 : vector<1x32xf32> to vector<2x32xf32>
    %75 = arith.addf %72, %74 : vector<2x32xf32>
    %cst_45 = arith.constant 0.000000e+00 : f32
    %76 = vector.broadcast %cst_45 : f32 to vector<2x32xf32>
    %77 = arith.maximumf %75, %76 : vector<2x32xf32>
    %c0_46 = arith.constant 0 : index
    %c256_47 = arith.constant 256 : index
    %78 = vector.load %arg7[%c0_46, %c256_47] : memref<32x512xf32, #tpu.memory_space<vmem>>, vector<32x32xf32>
    %cst_48 = arith.constant dense<0.000000e+00> : vector<2x32xf32>
    %79 = tpu.matmul %77, %78, %cst_48 {dimension_numbers = #tpu.dot_dimension_numbers<[1], [0], [0], [1], [0, 0, 1, 1], [], []>, precision = #tpu.contract_precision<fp32>} : vector<2x32xf32>, vector<32x32xf32>, vector<2x32xf32> -> vector<2x32xf32>
    %80 = arith.addf %79, %40 : vector<2x32xf32>
    %c0_49 = arith.constant 0 : index
    %c320 = arith.constant 320 : index
    %81 = vector.load %arg8[%c0_49, %c320] : memref<1x512xf32, #tpu.memory_space<vmem>>, vector<1x32xf32>
    %82 = vector.broadcast %81 : vector<1x32xf32> to vector<2x32xf32>
    %83 = arith.addf %80, %82 : vector<2x32xf32>
    %cst_50 = arith.constant 0.000000e+00 : f32
    %84 = vector.broadcast %cst_50 : f32 to vector<2x32xf32>
    %85 = arith.maximumf %83, %84 : vector<2x32xf32>
    %c0_51 = arith.constant 0 : index
    %c384 = arith.constant 384 : index
    %86 = vector.load %arg7[%c0_51, %c384] : memref<32x512xf32, #tpu.memory_space<vmem>>, vector<32x128xf32>
    %cst_52 = arith.constant dense<0.000000e+00> : vector<2x128xf32>
    %87 = tpu.matmul %85, %86, %cst_52 {dimension_numbers = #tpu.dot_dimension_numbers<[1], [0], [0], [1], [0, 0, 1, 1], [], []>, precision = #tpu.contract_precision<fp32>} : vector<2x32xf32>, vector<32x128xf32>, vector<2x128xf32> -> vector<2x128xf32>
    %c0_53 = arith.constant 0 : index
    %c384_54 = arith.constant 384 : index
    %88 = vector.load %arg8[%c0_53, %c384_54] : memref<1x512xf32, #tpu.memory_space<vmem>>, vector<1x128xf32>
    %89 = vector.broadcast %88 : vector<1x128xf32> to vector<2x128xf32>
    %90 = arith.addf %87, %89 : vector<2x128xf32>
    %cst_55 = arith.constant dense<0xFF800000> : vector<2xf32>
    %91 = vector.multi_reduction <maximumf>, %90, %cst_55 [1] : vector<2x128xf32> to vector<2xf32>
    %92 = vector.shape_cast %91 : vector<2xf32> to vector<2x1xf32>
    %93 = vector.broadcast %92 : vector<2x1xf32> to vector<2x128xf32>
    %94 = arith.subf %90, %93 : vector<2x128xf32>
    %95 = math.exp %94 : vector<2x128xf32>
    %cst_56 = arith.constant dense<0.000000e+00> : vector<2xf32>
    %96 = vector.multi_reduction <add>, %95, %cst_56 [1] : vector<2x128xf32> to vector<2xf32>
    %97 = vector.shape_cast %96 : vector<2xf32> to vector<2x1xf32>
    %98 = tpu.reciprocal %97 : vector<2x1xf32> -> vector<2x1xf32>
    %99 = vector.broadcast %98 : vector<2x1xf32> to vector<2x128xf32>
    %100 = arith.mulf %95, %99 : vector<2x128xf32>
    %c0_57 = arith.constant 0 : index
    %c0_58 = arith.constant 0 : index
    %101 = vector.load %arg9[%c0_57, %c0_58] : memref<2x128xf32, #tpu.memory_space<vmem>>, vector<2x128xf32>
    tpu.vector_store %arg9[%c0_57, %c0_58], %100 {strides = array<i32>} : memref<2x128xf32, #tpu.memory_space<vmem>>, vector<2x128xf32>,
    return
  }
  func.func @transform_0(%arg0: i32) -> (i32, i32) {
    %c0_i32 = arith.constant 0 : i32
    %c0_i32_0 = arith.constant 0 : i32
    return %arg0, %c0_i32 : i32, i32
  }
  func.func @transform_1(%arg0: i32) -> (i32, i32) {
    %c0_i32 = arith.constant 0 : i32
    %c0_i32_0 = arith.constant 0 : i32
    return %arg0, %c0_i32 : i32, i32
  }
  func.func @transform_2(%arg0: i32) -> (i32, i32) {
    %c0_i32 = arith.constant 0 : i32
    %c0_i32_0 = arith.constant 0 : i32
    return %arg0, %c0_i32 : i32, i32
  }
  func.func @transform_3(%arg0: i32) -> (i32, i32) {
    %c0_i32 = arith.constant 0 : i32
    %c0_i32_0 = arith.constant 0 : i32
    %c0_i32_1 = arith.constant 0 : i32
    return %c0_i32, %c0_i32_0 : i32, i32
  }
  func.func @transform_4(%arg0: i32) -> (i32, i32) {
    %c0_i32 = arith.constant 0 : i32
    %c0_i32_0 = arith.constant 0 : i32
    %c0_i32_1 = arith.constant 0 : i32
    return %c0_i32, %c0_i32_0 : i32, i32
  }
  func.func @transform_5(%arg0: i32) -> (i32, i32) {
    %c0_i32 = arith.constant 0 : i32
    %c0_i32_0 = arith.constant 0 : i32
    %c0_i32_1 = arith.constant 0 : i32
    return %c0_i32, %c0_i32_0 : i32, i32
  }
  func.func @transform_6(%arg0: i32) -> (i32, i32) {
    %c0_i32 = arith.constant 0 : i32
    %c0_i32_0 = arith.constant 0 : i32
    %c0_i32_1 = arith.constant 0 : i32
    return %c0_i32, %c0_i32_0 : i32, i32
  }
  func.func @transform_7(%arg0: i32) -> (i32, i32) {
    %c0_i32 = arith.constant 0 : i32
    %c0_i32_0 = arith.constant 0 : i32
    %c0_i32_1 = arith.constant 0 : i32
    return %c0_i32, %c0_i32_0 : i32, i32
  }
  func.func @transform_8(%arg0: i32) -> (i32, i32) {
    %c0_i32 = arith.constant 0 : i32
    %c0_i32_0 = arith.constant 0 : i32
    return %arg0, %c0_i32 : i32, i32
  }
}

</mosaic_0001>

<llo_original>
// kernel: tpu_custom_call.1
$region0: #{tpu_custom_call.1}
  #allocation0 [shape = 'u32[]', space=smem, size = 0x4, offset = 0x4, fixed_abs, tag = 'smem constant byte address 0x4 - core index']
  #allocation1 [shape = 'u32[72,128]{1,0:T(1,128)}', space=vmem, size = 0x9000, scoped, tag = 'internal scratch']
  %s0 = inlined_call_operand.vmem [shape: f32[2,768], index: 0, kind: input, shape index: {}]
  %s1 = inlined_call_operand.vmem [shape: f32[2,768], index: 1, kind: input, shape index: {}]
  %s2 = inlined_call_operand.vmem [shape: f32[2,1000], index: 2, kind: input, shape index: {}]
  %s3 = inlined_call_operand.vmem [shape: bf16[768,32], index: 3, kind: input, shape index: {}]
  %s4 = inlined_call_operand.vmem [shape: bf16[768,32], index: 4, kind: input, shape index: {}]
  %s5 = inlined_call_operand.vmem [shape: bf16[1000,32], index: 5, kind: input, shape index: {}]
  %s6 = inlined_call_operand.vmem [shape: f32[32,512], index: 6, kind: input, shape index: {}]
  %s7 = inlined_call_operand.vmem [shape: f32[1,512], index: 7, kind: input, shape index: {}]
  %s8 = inlined_call_operand.hbm [shape: f32[2,128], index: 8, kind: output, shape index: {}]
  %s9 = sld [smem:[#allocation0]]
  $region42: #{tpu_custom_call.1} parent=0
    _
  %s11 = ssub.s32 1, %s9
  %s12 = scalar_select 0, %s11, %s9
  $region1: #{tpu_custom_call.1} parent=0
    #allocation2 [shape = 'u8[1024]{0}', space=vmem, size = 0x400, scoped, tag = 'output window, operand 0, single buffered']
    #allocation3 [shape = 's32[1]{0}', space=sflag, size = 0x4, scoped, tag = 'scoped memory for tpu_custom_call.1']
    %13 = vsyncpa [#allocation3], 0
    // Predicated region
    $region2: #{tpu_custom_call.1} parent=1 // pred_check
      _
    $region3: #{tpu_custom_call.1} parent=1 // pred_check_branch
      %15 = sbr.rel (0) target = $region5
    $region4: #{tpu_custom_call.1} parent=1 // pred_region
      _
    $region5: #{tpu_custom_call.1} parent=1 // pred_fallthru
      _
    // Predicated region
    $region6: #{tpu_custom_call.1} parent=1 // pred_check
      _
    $region7: #{tpu_custom_call.1} parent=1 // pred_check_branch
      %17 = sbr.rel (0) target = $region9
    $region8: #{tpu_custom_call.1} parent=1 // pred_region
      _
    $region9: #{tpu_custom_call.1} parent=1 // pred_fallthru
      _
    // Predicated region
    $region10: #{tpu_custom_call.1} parent=1 // pred_check
      _
    $region11: #{tpu_custom_call.1} parent=1 // pred_check_branch
      %19 = sbr.rel (0) target = $region13
    $region12: #{tpu_custom_call.1} parent=1 // pred_region
      _
    $region13: #{tpu_custom_call.1} parent=1 // pred_fallthru
      _
    // Predicated region
    $region14: #{tpu_custom_call.1} parent=1 // pred_check
      _
    $region15: #{tpu_custom_call.1} parent=1 // pred_check_branch
      %21 = sbr.rel (0) target = $region17
    $region16: #{tpu_custom_call.1} parent=1 // pred_region
      _
    $region17: #{tpu_custom_call.1} parent=1 // pred_fallthru
      _
    // Predicated region
    $region18: #{tpu_custom_call.1} parent=1 // pred_check
      _
    $region19: #{tpu_custom_call.1} parent=1 // pred_check_branch
      %23 = sbr.rel (0) target = $region21
    $region20: #{tpu_custom_call.1} parent=1 // pred_region
      _
    $region21: #{tpu_custom_call.1} parent=1 // pred_fallthru
      _
    // Predicated region
    $region22: #{tpu_custom_call.1} parent=1 // pred_check
      _
    $region23: #{tpu_custom_call.1} parent=1 // pred_check_branch
      %25 = sbr.rel (0) target = $region25
    $region24: #{tpu_custom_call.1} parent=1 // pred_region
      _
    $region25: #{tpu_custom_call.1} parent=1 // pred_fallthru
      _
    // Predicated region
    $region26: #{tpu_custom_call.1} parent=1 // pred_check
      _
    $region27: #{tpu_custom_call.1} parent=1 // pred_check_branch
      %27 = sbr.rel (0) target = $region29
    $region28: #{tpu_custom_call.1} parent=1 // pred_region
      _
    $region29: #{tpu_custom_call.1} parent=1 // pred_fallthru
      _
    // Predicated region
    $region30: #{tpu_custom_call.1} parent=1 // pred_check
      _
    $region31: #{tpu_custom_call.1} parent=1 // pred_check_branch
      %29 = sbr.rel (0) target = $region33
    $region32: #{tpu_custom_call.1} parent=1 // pred_region
      _
    $region33: #{tpu_custom_call.1} parent=1 // pred_fallthru
      _
    %v31 = vld [vmem:[%s0] sm:$0xff]
    %v32 = vld [vmem:[%s0 + $0x8] sm:$0xf]
    %v33 = vld [vmem:[%s3] sm:$0xf]
    %v34 = vld [vmem:[%s3 + $0x4] sm:$0xf]
    %v35 = vld [vmem:[%s3 + $0x8] sm:$0xf]
    %v36 = vld [vmem:[%s3 + $0xc] sm:$0xf]
    %v37 = vld [vmem:[%s3 + $0x10] sm:$0xf]
    %v38 = vld [vmem:[%s3 + $0x14] sm:$0xf]
    %v39 = vld [vmem:[%s3 + $0x18] sm:$0xf]
    %v40 = vld [vmem:[%s3 + $0x1c] sm:$0xf]
    %v41 = vld [vmem:[%s3 + $0x20] sm:$0xf]
    %v42 = vld [vmem:[%s3 + $0x24] sm:$0xf]
    %v43 = vld [vmem:[%s3 + $0x28] sm:$0xf]
    %v44 = vld [vmem:[%s3 + $0x2c] sm:$0xf]
    %v45 = vld [vmem:[%s3 + $0x30] sm:$0xf]
    %v46 = vld [vmem:[%s3 + $0x34] sm:$0xf]
    %v47 = vld [vmem:[%s3 + $0x38] sm:$0xf]
    %v48 = vld [vmem:[%s3 + $0x3c] sm:$0xf]
    %v49 = vld [vmem:[%s3 + $0x40] sm:$0xf]
    %v50 = vld [vmem:[%s3 + $0x44] sm:$0xf]
    %v51 = vld [vmem:[%s3 + $0x48] sm:$0xf]
    %v52 = vld [vmem:[%s3 + $0x4c] sm:$0xf]
    %v53 = vld [vmem:[%s3 + $0x50] sm:$0xf]
    %v54 = vld [vmem:[%s3 + $0x54] sm:$0xf]
    %v55 = vld [vmem:[%s3 + $0x58] sm:$0xf]
    %v56 = vld [vmem:[%s3 + $0x5c] sm:$0xf]
    %v57 = vld [vmem:[%s3 + $0x60] sm:$0xf]
    %v58 = vld [vmem:[%s3 + $0x64] sm:$0xf]
    %v59 = vld [vmem:[%s3 + $0x68] sm:$0xf]
    %v60 = vld [vmem:[%s3 + $0x6c] sm:$0xf]
    %v61 = vld [vmem:[%s3 + $0x70] sm:$0xf]
    %v62 = vld [vmem:[%s3 + $0x74] sm:$0xf]
    %v63 = vld [vmem:[%s3 + $0x78] sm:$0xf]
    %v64 = vld [vmem:[%s3 + $0x7c] sm:$0xf]
    %v65 = vld [vmem:[%s3 + $0x80] sm:$0xf]
    %v66 = vld [vmem:[%s3 + $0x84] sm:$0xf]
    %v67 = vld [vmem:[%s3 + $0x88] sm:$0xf]
    %v68 = vld [vmem:[%s3 + $0x8c] sm:$0xf]
    %v69 = vld [vmem:[%s3 + $0x90] sm:$0xf]
    %v70 = vld [vmem:[%s3 + $0x94] sm:$0xf]
    %v71 = vld [vmem:[%s3 + $0x98] sm:$0xf]
    %v72 = vld [vmem:[%s3 + $0x9c] sm:$0xf]
    %v73 = vld [vmem:[%s3 + $0xa0] sm:$0xf]
    %v74 = vld [vmem:[%s3 + $0xa4] sm:$0xf]
    %v75 = vld [vmem:[%s3 + $0xa8] sm:$0xf]
    %v76 = vld [vmem:[%s3 + $0xac] sm:$0xf]
    %v77 = vld [vmem:[%s3 + $0xb0] sm:$0xf]
    %v78 = vld [vmem:[%s3 + $0xb4] sm:$0xf]
    %v79 = vld [vmem:[%s3 + $0xb8] sm:$0xf]
    %v80 = vld [vmem:[%s3 + $0xbc] sm:$0xf]
    %v81 = vld [vmem:[%s3 + $0xc0] sm:$0xf]
    %v82 = vld [vmem:[%s3 + $0xc4] sm:$0xf]
    %v83 = vld [vmem:[%s3 + $0xc8] sm:$0xf]
    %v84 = vld [vmem:[%s3 + $0xcc] sm:$0xf]
    %v85 = vld [vmem:[%s3 + $0xd0] sm:$0xf]
    %v86 = vld [vmem:[%s3 + $0xd4] sm:$0xf]
    %v87 = vld [vmem:[%s3 + $0xd8] sm:$0xf]
    %v88 = vld [vmem:[%s3 + $0xdc] sm:$0xf]
    %v89 = vld [vmem:[%s3 + $0xe0] sm:$0xf]
    %v90 = vld [vmem:[%s3 + $0xe4] sm:$0xf]
    %v91 = vld [vmem:[%s3 + $0xe8] sm:$0xf]
    %v92 = vld [vmem:[%s3 + $0xec] sm:$0xf]
    %v93 = vld [vmem:[%s3 + $0xf0] sm:$0xf]
    %v94 = vld [vmem:[%s3 + $0xf4] sm:$0xf]
    %v95 = vld [vmem:[%s3 + $0xf8] sm:$0xf]
    %v96 = vld [vmem:[%s3 + $0xfc] sm:$0xf]
    %v97 = vld [vmem:[%s3 + $0x100] sm:$0xf]
    %v98 = vld [vmem:[%s3 + $0x104] sm:$0xf]
    %v99 = vld [vmem:[%s3 + $0x108] sm:$0xf]
    %v100 = vld [vmem:[%s3 + $0x10c] sm:$0xf]
    %v101 = vld [vmem:[%s3 + $0x110] sm:$0xf]
    %v102 = vld [vmem:[%s3 + $0x114] sm:$0xf]
    %v103 = vld [vmem:[%s3 + $0x118] sm:$0xf]
    %v104 = vld [vmem:[%s3 + $0x11c] sm:$0xf]
    %v105 = vld [vmem:[%s3 + $0x120] sm:$0xf]
    %v106 = vld [vmem:[%s3 + $0x124] sm:$0xf]
    %v107 = vld [vmem:[%s3 + $0x128] sm:$0xf]
    %v108 = vld [vmem:[%s3 + $0x12c] sm:$0xf]
    %v109 = vld [vmem:[%s3 + $0x130] sm:$0xf]
    %v110 = vld [vmem:[%s3 + $0x134] sm:$0xf]
    %v111 = vld [vmem:[%s3 + $0x138] sm:$0xf]
    %v112 = vld [vmem:[%s3 + $0x13c] sm:$0xf]
    %v113 = vld [vmem:[%s3 + $0x140] sm:$0xf]
    %v114 = vld [vmem:[%s3 + $0x144] sm:$0xf]
    %v115 = vld [vmem:[%s3 + $0x148] sm:$0xf]
    %v116 = vld [vmem:[%s3 + $0x14c] sm:$0xf]
    %v117 = vld [vmem:[%s3 + $0x150] sm:$0xf]
    %v118 = vld [vmem:[%s3 + $0x154] sm:$0xf]
    %v119 = vld [vmem:[%s3 + $0x158] sm:$0xf]
    %v120 = vld [vmem:[%s3 + $0x15c] sm:$0xf]
    %v121 = vld [vmem:[%s3 + $0x160] sm:$0xf]
    %v122 = vld [vmem:[%s3 + $0x164] sm:$0xf]
    %v123 = vld [vmem:[%s3 + $0x168] sm:$0xf]
    %v124 = vld [vmem:[%s3 + $0x16c] sm:$0xf]
    %v125 = vld [vmem:[%s3 + $0x170] sm:$0xf]
    %v126 = vld [vmem:[%s3 + $0x174] sm:$0xf]
    %v127 = vld [vmem:[%s3 + $0x178] sm:$0xf]
    %v128 = vld [vmem:[%s3 + $0x17c] sm:$0xf]
    %131 = vst [vmem:[#allocation1] ss:$4 sm:$0xff] %v31
    %s132 = scalar_lea.vmem [#allocation1], 32
    %133 = vst [vmem:[%s132] ss:$4 sm:$0xff] %v32
    %v134 = vld.sshfl [vmem:[#allocation1] sm:$0xff pattern:$0x73625140]
    %v135 = vld.sshfl [vmem:[#allocation1 + $0x8] sm:$0xff pattern:$0x73625140]
    %v136 = vld.sshfl [vmem:[#allocation1 + $0x10] sm:$0xff pattern:$0x73625140]
    %v137 = vld.sshfl [vmem:[#allocation1 + $0x18] sm:$0xff pattern:$0x73625140]
    %v138 = vld.sshfl [vmem:[#allocation1 + $0x20] sm:$0xff pattern:$0x73625140]
    %v139 = vld.sshfl [vmem:[#allocation1 + $0x28] sm:$0xff pattern:$0x73625140]
    %v146 = vpack.c.bf16 %v134, %v134
    %v147 = vpack.c.bf16 %v135, %v135
    %v148 = vpack.c.bf16 %v136, %v136
    %v149 = vpack.c.bf16 %v137, %v137
    %v150 = vpack.c.bf16 %v138, %v138
    %v151 = vpack.c.bf16 %v139, %v139
    %v152 = vld [vmem:[%s7] sm:$0x1]
    %v154 = vperm.slane %v152, 0
    %v252 = vunpack.c.l.b16 %v33
    %v253 = vunpack.c.l.b16 %v34
    %v254 = vunpack.c.l.b16 %v35
    %v255 = vunpack.c.l.b16 %v36
    %v256 = vunpack.c.l.b16 %v37
    %v257 = vunpack.c.l.b16 %v38
    %v258 = vunpack.c.l.b16 %v39
    %v259 = vunpack.c.l.b16 %v40
    %v260 = vunpack.c.l.b16 %v41
    %v261 = vunpack.c.l.b16 %v42
    %v262 = vunpack.c.l.b16 %v43
    %v263 = vunpack.c.l.b16 %v44
    %v264 = vunpack.c.l.b16 %v45
    %v265 = vunpack.c.l.b16 %v46
    %v266 = vunpack.c.l.b16 %v47
    %v267 = vunpack.c.l.b16 %v48
    %v268 = vunpack.c.l.b16 %v49
    %v269 = vunpack.c.l.b16 %v50
    %v270 = vunpack.c.l.b16 %v51
    %v271 = vunpack.c.l.b16 %v52
    %v272 = vunpack.c.l.b16 %v53
    %v273 = vunpack.c.l.b16 %v54
    %v274 = vunpack.c.l.b16 %v55
    %v275 = vunpack.c.l.b16 %v56
    %v276 = vunpack.c.l.b16 %v57
    %v277 = vunpack.c.l.b16 %v58
    %v278 = vunpack.c.l.b16 %v59
    %v279 = vunpack.c.l.b16 %v60
    %v280 = vunpack.c.l.b16 %v61
    %v281 = vunpack.c.l.b16 %v62
    %v282 = vunpack.c.l.b16 %v63
    %v283 = vunpack.c.l.b16 %v64
    %v284 = vunpack.c.l.b16 %v65
    %v285 = vunpack.c.l.b16 %v66
    %v286 = vunpack.c.l.b16 %v67
    %v287 = vunpack.c.l.b16 %v68
    %v288 = vunpack.c.l.b16 %v69
    %v289 = vunpack.c.l.b16 %v70
    %v290 = vunpack.c.l.b16 %v71
    %v291 = vunpack.c.l.b16 %v72
    %v292 = vunpack.c.l.b16 %v73
    %v293 = vunpack.c.l.b16 %v74
    %v294 = vunpack.c.l.b16 %v75
    %v295 = vunpack.c.l.b16 %v76
    %v296 = vunpack.c.l.b16 %v77
    %v297 = vunpack.c.l.b16 %v78
    %v298 = vunpack.c.l.b16 %v79
    %v299 = vunpack.c.l.b16 %v80
    %v300 = vunpack.c.l.b16 %v81
    %v301 = vunpack.c.l.b16 %v82
    %v302 = vunpack.c.l.b16 %v83
    %v303 = vunpack.c.l.b16 %v84
    %v304 = vunpack.c.l.b16 %v85
    %v305 = vunpack.c.l.b16 %v86
    %v306 = vunpack.c.l.b16 %v87
    %v307 = vunpack.c.l.b16 %v88
    %v308 = vunpack.c.l.b16 %v89
    %v309 = vunpack.c.l.b16 %v90
    %v310 = vunpack.c.l.b16 %v91
    %v311 = vunpack.c.l.b16 %v92
    %v312 = vunpack.c.l.b16 %v93
    %v313 = vunpack.c.l.b16 %v94
    %v314 = vunpack.c.l.b16 %v95
    %v315 = vunpack.c.l.b16 %v96
    %v316 = vunpack.c.l.b16 %v97
    %v317 = vunpack.c.l.b16 %v98
    %v318 = vunpack.c.l.b16 %v99
    %v319 = vunpack.c.l.b16 %v100
    %v320 = vunpack.c.l.b16 %v101
    %v321 = vunpack.c.l.b16 %v102
    %v322 = vunpack.c.l.b16 %v103
    %v323 = vunpack.c.l.b16 %v104
    %v324 = vunpack.c.l.b16 %v105
    %v325 = vunpack.c.l.b16 %v106
    %v326 = vunpack.c.l.b16 %v107
    %v327 = vunpack.c.l.b16 %v108
    %v328 = vunpack.c.l.b16 %v109
    %v329 = vunpack.c.l.b16 %v110
    %v330 = vunpack.c.l.b16 %v111
    %v331 = vunpack.c.l.b16 %v112
    %v332 = vunpack.c.l.b16 %v113
    %v333 = vunpack.c.l.b16 %v114
    %v334 = vunpack.c.l.b16 %v115
    %v335 = vunpack.c.l.b16 %v116
    %v336 = vunpack.c.l.b16 %v117
    %v337 = vunpack.c.l.b16 %v118
    %v338 = vunpack.c.l.b16 %v119
    %v339 = vunpack.c.l.b16 %v120
    %v340 = vunpack.c.l.b16 %v121
    %v341 = vunpack.c.l.b16 %v122
    %v342 = vunpack.c.l.b16 %v123
    %v343 = vunpack.c.l.b16 %v124
    %v344 = vunpack.c.l.b16 %v125
    %v345 = vunpack.c.l.b16 %v126
    %v346 = vunpack.c.l.b16 %v127
    %v347 = vunpack.c.l.b16 %v128
    %v348 = vpack.c.b16 %v253, %v252
    %v349 = vpack.c.b16 %v255, %v254
    %v350 = vpack.c.b16 %v257, %v256
    %v351 = vpack.c.b16 %v259, %v258
    %v352 = vpack.c.b16 %v261, %v260
    %v353 = vpack.c.b16 %v263, %v262
    %v354 = vpack.c.b16 %v265, %v264
    %v355 = vpack.c.b16 %v267, %v266
    %v356 = vpack.c.b16 %v269, %v268
    %v357 = vpack.c.b16 %v271, %v270
    %v358 = vpack.c.b16 %v273, %v272
    %v359 = vpack.c.b16 %v275, %v274
    %v360 = vpack.c.b16 %v277, %v276
    %v361 = vpack.c.b16 %v279, %v278
    %v362 = vpack.c.b16 %v281, %v280
    %v363 = vpack.c.b16 %v283, %v282
    %v364 = vpack.c.b16 %v285, %v284
    %v365 = vpack.c.b16 %v287, %v286
    %v366 = vpack.c.b16 %v289, %v288
    %v367 = vpack.c.b16 %v291, %v290
    %v368 = vpack.c.b16 %v293, %v292
    %v369 = vpack.c.b16 %v295, %v294
    %v370 = vpack.c.b16 %v297, %v296
    %v371 = vpack.c.b16 %v299, %v298
    %v372 = vpack.c.b16 %v301, %v300
    %v373 = vpack.c.b16 %v303, %v302
    %v374 = vpack.c.b16 %v305, %v304
    %v375 = vpack.c.b16 %v307, %v306
    %v376 = vpack.c.b16 %v309, %v308
    %v377 = vpack.c.b16 %v311, %v310
    %v378 = vpack.c.b16 %v313, %v312
    %v379 = vpack.c.b16 %v315, %v314
    %v380 = vpack.c.b16 %v317, %v316
    %v381 = vpack.c.b16 %v319, %v318
    %v382 = vpack.c.b16 %v321, %v320
    %v383 = vpack.c.b16 %v323, %v322
    %v384 = vpack.c.b16 %v325, %v324
    %v385 = vpack.c.b16 %v327, %v326
    %v386 = vpack.c.b16 %v329, %v328
    %v387 = vpack.c.b16 %v331, %v330
    %v388 = vpack.c.b16 %v333, %v332
    %v389 = vpack.c.b16 %v335, %v334
    %v390 = vpack.c.b16 %v337, %v336
    %v391 = vpack.c.b16 %v339, %v338
    %v392 = vpack.c.b16 %v341, %v340
    %v393 = vpack.c.b16 %v343, %v342
    %v394 = vpack.c.b16 %v345, %v344
    %v395 = vpack.c.b16 %v347, %v346
    %444 = vmatpush.bf16.msra.mxu0 %v355
    %445 = vmatpush.bf16.msra.mxu0 %v354
    %446 = vmatpush.bf16.msra.mxu0 %v353
    %447 = vmatpush.bf16.msra.mxu0 %v352
    %448 = vmatpush.bf16.msra.mxu0 %v351
    %449 = vmatpush.bf16.msra.mxu0 %v350
    %450 = vmatpush.bf16.msra.mxu0 %v349
    %451 = vmatpush.bf16.msra.mxu0 %v348
    %452 = vmatmul.bf16.gmra.mxu0 %v146
    %v453 = vpop.f32.mrf.mxu0
    %v454 = vadd.f32 %v154, %v453
    %v455 = vpop.f32.mrf.mxu0
    %456 = vdwg.mxu0
    %457 = vmatpush.bf16.msra.mxu0 %v363
    %458 = vmatpush.bf16.msra.mxu0 %v362
    %459 = vmatpush.bf16.msra.mxu0 %v361
    %460 = vmatpush.bf16.msra.mxu0 %v360
    %461 = vmatpush.bf16.msra.mxu0 %v359
    %462 = vmatpush.bf16.msra.mxu0 %v358
    %463 = vmatpush.bf16.msra.mxu0 %v357
    %464 = vmatpush.bf16.msra.mxu0 %v356
    %465 = vmatmul.bf16.gmra.mxu0 %v147
    %v466 = vpop.f32.mrf.mxu0
    %v467 = vadd.f32 %v454, %v466
    %v468 = vpop.f32.mrf.mxu0
    %469 = vdwg.mxu0
    %470 = vmatpush.bf16.msra.mxu0 %v371
    %471 = vmatpush.bf16.msra.mxu0 %v370
    %472 = vmatpush.bf16.msra.mxu0 %v369
    %473 = vmatpush.bf16.msra.mxu0 %v368
    %474 = vmatpush.bf16.msra.mxu0 %v367
    %475 = vmatpush.bf16.msra.mxu0 %v366
    %476 = vmatpush.bf16.msra.mxu0 %v365
    %477 = vmatpush.bf16.msra.mxu0 %v364
    %478 = vmatmul.bf16.gmra.mxu0 %v148
    %v479 = vpop.f32.mrf.mxu0
    %v480 = vadd.f32 %v467, %v479
    %v481 = vpop.f32.mrf.mxu0
    %482 = vdwg.mxu0
    %483 = vmatpush.bf16.msra.mxu0 %v379
    %484 = vmatpush.bf16.msra.mxu0 %v378
    %485 = vmatpush.bf16.msra.mxu0 %v377
    %486 = vmatpush.bf16.msra.mxu0 %v376
    %487 = vmatpush.bf16.msra.mxu0 %v375
    %488 = vmatpush.bf16.msra.mxu0 %v374
    %489 = vmatpush.bf16.msra.mxu0 %v373
    %490 = vmatpush.bf16.msra.mxu0 %v372
    %491 = vmatmul.bf16.gmra.mxu0 %v149
    %v492 = vpop.f32.mrf.mxu0
    %v493 = vadd.f32 %v480, %v492
    %v494 = vpop.f32.mrf.mxu0
    %495 = vdwg.mxu0
    %496 = vmatpush.bf16.msra.mxu0 %v387
    %497 = vmatpush.bf16.msra.mxu0 %v386
    %498 = vmatpush.bf16.msra.mxu0 %v385
    %499 = vmatpush.bf16.msra.mxu0 %v384
    %500 = vmatpush.bf16.msra.mxu0 %v383
    %501 = vmatpush.bf16.msra.mxu0 %v382
    %502 = vmatpush.bf16.msra.mxu0 %v381
    %503 = vmatpush.bf16.msra.mxu0 %v380
    %504 = vmatmul.bf16.gmra.mxu0 %v150
    %v505 = vpop.f32.mrf.mxu0
    %v506 = vadd.f32 %v493, %v505
    %v507 = vpop.f32.mrf.mxu0
    %508 = vdwg.mxu0
    %509 = vmatpush.bf16.msra.mxu0 %v395
    %510 = vmatpush.bf16.msra.mxu0 %v394
    %511 = vmatpush.bf16.msra.mxu0 %v393
    %512 = vmatpush.bf16.msra.mxu0 %v392
    %513 = vmatpush.bf16.msra.mxu0 %v391
    %514 = vmatpush.bf16.msra.mxu0 %v390
    %515 = vmatpush.bf16.msra.mxu0 %v389
    %516 = vmatpush.bf16.msra.mxu0 %v388
    %517 = vmatmul.bf16.gmra.mxu0 %v151
    %v518 = vpop.f32.mrf.mxu0
    %v519 = vadd.f32 %v506, %v518
    %v520 = vpop.f32.mrf.mxu0
    %521 = vdwg.mxu0
    %v522 = vmax.f32 %v519, 0.0
    %v523 = vld [vmem:[%s1] sm:$0xff]
    %v524 = vld [vmem:[%s1 + $0x8] sm:$0xf]
    %v525 = vld [vmem:[%s4] sm:$0xf]
    %v526 = vld [vmem:[%s4 + $0x4] sm:$0xf]
    %v527 = vld [vmem:[%s4 + $0x8] sm:$0xf]
    %v528 = vld [vmem:[%s4 + $0xc] sm:$0xf]
    %v529 = vld [vmem:[%s4 + $0x10] sm:$0xf]
    %v530 = vld [vmem:[%s4 + $0x14] sm:$0xf]
    %v531 = vld [vmem:[%s4 + $0x18] sm:$0xf]
    %v532 = vld [vmem:[%s4 + $0x1c] sm:$0xf]
    %v533 = vld [vmem:[%s4 + $0x20] sm:$0xf]
    %v534 = vld [vmem:[%s4 + $0x24] sm:$0xf]
    %v535 = vld [vmem:[%s4 + $0x28] sm:$0xf]
    %v536 = vld [vmem:[%s4 + $0x2c] sm:$0xf]
    %v537 = vld [vmem:[%s4 + $0x30] sm:$0xf]
    %v538 = vld [vmem:[%s4 + $0x34] sm:$0xf]
    %v539 = vld [vmem:[%s4 + $0x38] sm:$0xf]
    %v540 = vld [vmem:[%s4 + $0x3c] sm:$0xf]
    %v541 = vld [vmem:[%s4 + $0x40] sm:$0xf]
    %v542 = vld [vmem:[%s4 + $0x44] sm:$0xf]
    %v543 = vld [vmem:[%s4 + $0x48] sm:$0xf]
    %v544 = vld [vmem:[%s4 + $0x4c] sm:$0xf]
    %v545 = vld [vmem:[%s4 + $0x50] sm:$0xf]
    %v546 = vld [vmem:[%s4 + $0x54] sm:$0xf]
    %v547 = vld [vmem:[%s4 + $0x58] sm:$0xf]
    %v548 = vld [vmem:[%s4 + $0x5c] sm:$0xf]
    %v549 = vld [vmem:[%s4 + $0x60] sm:$0xf]
    %v550 = vld [vmem:[%s4 + $0x64] sm:$0xf]
    %v551 = vld [vmem:[%s4 + $0x68] sm:$0xf]
    %v552 = vld [vmem:[%s4 + $0x6c] sm:$0xf]
    %v553 = vld [vmem:[%s4 + $0x70] sm:$0xf]
    %v554 = vld [vmem:[%s4 + $0x74] sm:$0xf]
    %v555 = vld [vmem:[%s4 + $0x78] sm:$0xf]
    %v556 = vld [vmem:[%s4 + $0x7c] sm:$0xf]
    %v557 = vld [vmem:[%s4 + $0x80] sm:$0xf]
    %v558 = vld [vmem:[%s4 + $0x84] sm:$0xf]
    %v559 = vld [vmem:[%s4 + $0x88] sm:$0xf]
    %v560 = vld [vmem:[%s4 + $0x8c] sm:$0xf]
    %v561 = vld [vmem:[%s4 + $0x90] sm:$0xf]
    %v562 = vld [vmem:[%s4 + $0x94] sm:$0xf]
    %v563 = vld [vmem:[%s4 + $0x98] sm:$0xf]
    %v564 = vld [vmem:[%s4 + $0x9c] sm:$0xf]
    %v565 = vld [vmem:[%s4 + $0xa0] sm:$0xf]
    %v566 = vld [vmem:[%s4 + $0xa4] sm:$0xf]
    %v567 = vld [vmem:[%s4 + $0xa8] sm:$0xf]
    %v568 = vld [vmem:[%s4 + $0xac] sm:$0xf]
    %v569 = vld [vmem:[%s4 + $0xb0] sm:$0xf]
    %v570 = vld [vmem:[%s4 + $0xb4] sm:$0xf]
    %v571 = vld [vmem:[%s4 + $0xb8] sm:$0xf]
    %v572 = vld [vmem:[%s4 + $0xbc] sm:$0xf]
    %v573 = vld [vmem:[%s4 + $0xc0] sm:$0xf]
    %v574 = vld [vmem:[%s4 + $0xc4] sm:$0xf]
    %v575 = vld [vmem:[%s4 + $0xc8] sm:$0xf]
    %v576 = vld [vmem:[%s4 + $0xcc] sm:$0xf]
    %v577 = vld [vmem:[%s4 + $0xd0] sm:$0xf]
    %v578 = vld [vmem:[%s4 + $0xd4] sm:$0xf]
    %v579 = vld [vmem:[%s4 + $0xd8] sm:$0xf]
    %v580 = vld [vmem:[%s4 + $0xdc] sm:$0xf]
    %v581 = vld [vmem:[%s4 + $0xe0] sm:$0xf]
    %v582 = vld [vmem:[%s4 + $0xe4] sm:$0xf]
    %v583 = vld [vmem:[%s4 + $0xe8] sm:$0xf]
    %v584 = vld [vmem:[%s4 + $0xec] sm:$0xf]
    %v585 = vld [vmem:[%s4 + $0xf0] sm:$0xf]
    %v586 = vld [vmem:[%s4 + $0xf4] sm:$0xf]
    %v587 = vld [vmem:[%s4 + $0xf8] sm:$0xf]
    %v588 = vld [vmem:[%s4 + $0xfc] sm:$0xf]
    %v589 = vld [vmem:[%s4 + $0x100] sm:$0xf]
    %v590 = vld [vmem:[%s4 + $0x104] sm:$0xf]
    %v591 = vld [vmem:[%s4 + $0x108] sm:$0xf]
    %v592 = vld [vmem:[%s4 + $0x10c] sm:$0xf]
    %v593 = vld [vmem:[%s4 + $0x110] sm:$0xf]
    %v594 = vld [vmem:[%s4 + $0x114] sm:$0xf]
    %v595 = vld [vmem:[%s4 + $0x118] sm:$0xf]
    %v596 = vld [vmem:[%s4 + $0x11c] sm:$0xf]
    %v597 = vld [vmem:[%s4 + $0x120] sm:$0xf]
    %v598 = vld [vmem:[%s4 + $0x124] sm:$0xf]
    %v599 = vld [vmem:[%s4 + $0x128] sm:$0xf]
    %v600 = vld [vmem:[%s4 + $0x12c] sm:$0xf]
    %v601 = vld [vmem:[%s4 + $0x130] sm:$0xf]
    %v602 = vld [vmem:[%s4 + $0x134] sm:$0xf]
    %v603 = vld [vmem:[%s4 + $0x138] sm:$0xf]
    %v604 = vld [vmem:[%s4 + $0x13c] sm:$0xf]
    %v605 = vld [vmem:[%s4 + $0x140] sm:$0xf]
    %v606 = vld [vmem:[%s4 + $0x144] sm:$0xf]
    %v607 = vld [vmem:[%s4 + $0x148] sm:$0xf]
    %v608 = vld [vmem:[%s4 + $0x14c] sm:$0xf]
    %v609 = vld [vmem:[%s4 + $0x150] sm:$0xf]
    %v610 = vld [vmem:[%s4 + $0x154] sm:$0xf]
    %v611 = vld [vmem:[%s4 + $0x158] sm:$0xf]
    %v612 = vld [vmem:[%s4 + $0x15c] sm:$0xf]
    %v613 = vld [vmem:[%s4 + $0x160] sm:$0xf]
    %v614 = vld [vmem:[%s4 + $0x164] sm:$0xf]
    %v615 = vld [vmem:[%s4 + $0x168] sm:$0xf]
    %v616 = vld [vmem:[%s4 + $0x16c] sm:$0xf]
    %v617 = vld [vmem:[%s4 + $0x170] sm:$0xf]
    %v618 = vld [vmem:[%s4 + $0x174] sm:$0xf]
    %v619 = vld [vmem:[%s4 + $0x178] sm:$0xf]
    %v620 = vld [vmem:[%s4 + $0x17c] sm:$0xf]
    %623 = vst [vmem:[#allocation1] ss:$4 sm:$0xff] %v523
    %s624 = scalar_lea.vmem [#allocation1], 32
    %625 = vst [vmem:[%s624] ss:$4 sm:$0xff] %v524
    %v626 = vld.sshfl [vmem:[#allocation1] sm:$0xff pattern:$0x73625140]
    %v627 = vld.sshfl [vmem:[#allocation1 + $0x8] sm:$0xff pattern:$0x73625140]
    %v628 = vld.sshfl [vmem:[#allocation1 + $0x10] sm:$0xff pattern:$0x73625140]
    %v629 = vld.sshfl [vmem:[#allocation1 + $0x18] sm:$0xff pattern:$0x73625140]
    %v630 = vld.sshfl [vmem:[#allocation1 + $0x20] sm:$0xff pattern:$0x73625140]
    %v631 = vld.sshfl [vmem:[#allocation1 + $0x28] sm:$0xff pattern:$0x73625140]
    %v638 = vpack.c.bf16 %v626, %v626
    %v639 = vpack.c.bf16 %v627, %v627
    %v640 = vpack.c.bf16 %v628, %v628
    %v641 = vpack.c.bf16 %v629, %v629
    %v642 = vpack.c.bf16 %v630, %v630
    %v643 = vpack.c.bf16 %v631, %v631
    %v644 = vld [vmem:[%s7] sm:$0x1]
    %v646 = vperm.slane %v644, 0
    %v743 = vunpack.c.l.b16 %v525
    %v744 = vunpack.c.l.b16 %v526
    %v745 = vunpack.c.l.b16 %v527
    %v746 = vunpack.c.l.b16 %v528
    %v747 = vunpack.c.l.b16 %v529
    %v748 = vunpack.c.l.b16 %v530
    %v749 = vunpack.c.l.b16 %v531
    %v750 = vunpack.c.l.b16 %v532
    %v751 = vunpack.c.l.b16 %v533
    %v752 = vunpack.c.l.b16 %v534
    %v753 = vunpack.c.l.b16 %v535
    %v754 = vunpack.c.l.b16 %v536
    %v755 = vunpack.c.l.b16 %v537
    %v756 = vunpack.c.l.b16 %v538
    %v757 = vunpack.c.l.b16 %v539
    %v758 = vunpack.c.l.b16 %v540
    %v759 = vunpack.c.l.b16 %v541
    %v760 = vunpack.c.l.b16 %v542
    %v761 = vunpack.c.l.b16 %v543
    %v762 = vunpack.c.l.b16 %v544
    %v763 = vunpack.c.l.b16 %v545
    %v764 = vunpack.c.l.b16 %v546
    %v765 = vunpack.c.l.b16 %v547
    %v766 = vunpack.c.l.b16 %v548
    %v767 = vunpack.c.l.b16 %v549
    %v768 = vunpack.c.l.b16 %v550
    %v769 = vunpack.c.l.b16 %v551
    %v770 = vunpack.c.l.b16 %v552
    %v771 = vunpack.c.l.b16 %v553
    %v772 = vunpack.c.l.b16 %v554
    %v773 = vunpack.c.l.b16 %v555
    %v774 = vunpack.c.l.b16 %v556
    %v775 = vunpack.c.l.b16 %v557
    %v776 = vunpack.c.l.b16 %v558
    %v777 = vunpack.c.l.b16 %v559
    %v778 = vunpack.c.l.b16 %v560
    %v779 = vunpack.c.l.b16 %v561
    %v780 = vunpack.c.l.b16 %v562
    %v781 = vunpack.c.l.b16 %v563
    %v782 = vunpack.c.l.b16 %v564
    %v783 = vunpack.c.l.b16 %v565
    %v784 = vunpack.c.l.b16 %v566
    %v785 = vunpack.c.l.b16 %v567
    %v786 = vunpack.c.l.b16 %v568
    %v787 = vunpack.c.l.b16 %v569
    %v788 = vunpack.c.l.b16 %v570
    %v789 = vunpack.c.l.b16 %v571
    %v790 = vunpack.c.l.b16 %v572
    %v791 = vunpack.c.l.b16 %v573
    %v792 = vunpack.c.l.b16 %v574
    %v793 = vunpack.c.l.b16 %v575
    %v794 = vunpack.c.l.b16 %v576
    %v795 = vunpack.c.l.b16 %v577
    %v796 = vunpack.c.l.b16 %v578
    %v797 = vunpack.c.l.b16 %v579
    %v798 = vunpack.c.l.b16 %v580
    %v799 = vunpack.c.l.b16 %v581
    %v800 = vunpack.c.l.b16 %v582
    %v801 = vunpack.c.l.b16 %v583
    %v802 = vunpack.c.l.b16 %v584
    %v803 = vunpack.c.l.b16 %v585
    %v804 = vunpack.c.l.b16 %v586
    %v805 = vunpack.c.l.b16 %v587
    %v806 = vunpack.c.l.b16 %v588
    %v807 = vunpack.c.l.b16 %v589
    %v808 = vunpack.c.l.b16 %v590
    %v809 = vunpack.c.l.b16 %v591
    %v810 = vunpack.c.l.b16 %v592
    %v811 = vunpack.c.l.b16 %v593
    %v812 = vunpack.c.l.b16 %v594
    %v813 = vunpack.c.l.b16 %v595
    %v814 = vunpack.c.l.b16 %v596
    %v815 = vunpack.c.l.b16 %v597
    %v816 = vunpack.c.l.b16 %v598
    %v817 = vunpack.c.l.b16 %v599
    %v818 = vunpack.c.l.b16 %v600
    %v819 = vunpack.c.l.b16 %v601
    %v820 = vunpack.c.l.b16 %v602
    %v821 = vunpack.c.l.b16 %v603
    %v822 = vunpack.c.l.b16 %v604
    %v823 = vunpack.c.l.b16 %v605
    %v824 = vunpack.c.l.b16 %v606
    %v825 = vunpack.c.l.b16 %v607
    %v826 = vunpack.c.l.b16 %v608
    %v827 = vunpack.c.l.b16 %v609
    %v828 = vunpack.c.l.b16 %v610
    %v829 = vunpack.c.l.b16 %v611
    %v830 = vunpack.c.l.b16 %v612
    %v831 = vunpack.c.l.b16 %v613
    %v832 = vunpack.c.l.b16 %v614
    %v833 = vunpack.c.l.b16 %v615
    %v834 = vunpack.c.l.b16 %v616
    %v835 = vunpack.c.l.b16 %v617
    %v836 = vunpack.c.l.b16 %v618
    %v837 = vunpack.c.l.b16 %v619
    %v838 = vunpack.c.l.b16 %v620
    %v839 = vpack.c.b16 %v744, %v743
    %v840 = vpack.c.b16 %v746, %v745
    %v841 = vpack.c.b16 %v748, %v747
    %v842 = vpack.c.b16 %v750, %v749
    %v843 = vpack.c.b16 %v752, %v751
    %v844 = vpack.c.b16 %v754, %v753
    %v845 = vpack.c.b16 %v756, %v755
    %v846 = vpack.c.b16 %v758, %v757
    %v847 = vpack.c.b16 %v760, %v759
    %v848 = vpack.c.b16 %v762, %v761
    %v849 = vpack.c.b16 %v764, %v763
    %v850 = vpack.c.b16 %v766, %v765
    %v851 = vpack.c.b16 %v768, %v767
    %v852 = vpack.c.b16 %v770, %v769
    %v853 = vpack.c.b16 %v772, %v771
    %v854 = vpack.c.b16 %v774, %v773
    %v855 = vpack.c.b16 %v776, %v775
    %v856 = vpack.c.b16 %v778, %v777
    %v857 = vpack.c.b16 %v780, %v779
    %v858 = vpack.c.b16 %v782, %v781
    %v859 = vpack.c.b16 %v784, %v783
    %v860 = vpack.c.b16 %v786, %v785
    %v861 = vpack.c.b16 %v788, %v787
    %v862 = vpack.c.b16 %v790, %v789
    %v863 = vpack.c.b16 %v792, %v791
    %v864 = vpack.c.b16 %v794, %v793
    %v865 = vpack.c.b16 %v796, %v795
    %v866 = vpack.c.b16 %v798, %v797
    %v867 = vpack.c.b16 %v800, %v799
    %v868 = vpack.c.b16 %v802, %v801
    %v869 = vpack.c.b16 %v804, %v803
    %v870 = vpack.c.b16 %v806, %v805
    %v871 = vpack.c.b16 %v808, %v807
    %v872 = vpack.c.b16 %v810, %v809
    %v873 = vpack.c.b16 %v812, %v811
    %v874 = vpack.c.b16 %v814, %v813
    %v875 = vpack.c.b16 %v816, %v815
    %v876 = vpack.c.b16 %v818, %v817
    %v877 = vpack.c.b16 %v820, %v819
    %v878 = vpack.c.b16 %v822, %v821
    %v879 = vpack.c.b16 %v824, %v823
    %v880 = vpack.c.b16 %v826, %v825
    %v881 = vpack.c.b16 %v828, %v827
    %v882 = vpack.c.b16 %v830, %v829
    %v883 = vpack.c.b16 %v832, %v831
    %v884 = vpack.c.b16 %v834, %v833
    %v885 = vpack.c.b16 %v836, %v835
    %v886 = vpack.c.b16 %v838, %v837
    %935 = vrot.lane.b32.xlu0 %v646, 96
    %v936 = vpop.permute.xlu0 %935
    %938 = vmatpush.bf16.msra.mxu0 %v846
    %939 = vmatpush.bf16.msra.mxu0 %v845
    %940 = vmatpush.bf16.msra.mxu0 %v844
    %941 = vmatpush.bf16.msra.mxu0 %v843
    %942 = vmatpush.bf16.msra.mxu0 %v842
    %943 = vmatpush.bf16.msra.mxu0 %v841
    %944 = vmatpush.bf16.msra.mxu0 %v840
    %945 = vmatpush.bf16.msra.mxu0 %v839
    %946 = vmatmul.bf16.gmra.mxu0 %v638
    %v947 = vpop.f32.mrf.mxu0
    %v948 = vadd.f32 %v936, %v947
    %v949 = vpop.f32.mrf.mxu0
    %950 = vdwg.mxu0
    %951 = vmatpush.bf16.msra.mxu0 %v854
    %952 = vmatpush.bf16.msra.mxu0 %v853
    %953 = vmatpush.bf16.msra.mxu0 %v852
    %954 = vmatpush.bf16.msra.mxu0 %v851
    %955 = vmatpush.bf16.msra.mxu0 %v850
    %956 = vmatpush.bf16.msra.mxu0 %v849
    %957 = vmatpush.bf16.msra.mxu0 %v848
    %958 = vmatpush.bf16.msra.mxu0 %v847
    %959 = vmatmul.bf16.gmra.mxu0 %v639
    %v960 = vpop.f32.mrf.mxu0
    %v961 = vadd.f32 %v948, %v960
    %v962 = vpop.f32.mrf.mxu0
    %963 = vdwg.mxu0
    %964 = vmatpush.bf16.msra.mxu0 %v862
    %965 = vmatpush.bf16.msra.mxu0 %v861
    %966 = vmatpush.bf16.msra.mxu0 %v860
    %967 = vmatpush.bf16.msra.mxu0 %v859
    %968 = vmatpush.bf16.msra.mxu0 %v858
    %969 = vmatpush.bf16.msra.mxu0 %v857
    %970 = vmatpush.bf16.msra.mxu0 %v856
    %971 = vmatpush.bf16.msra.mxu0 %v855
    %972 = vmatmul.bf16.gmra.mxu0 %v640
    %v973 = vpop.f32.mrf.mxu0
    %v974 = vadd.f32 %v961, %v973
    %v975 = vpop.f32.mrf.mxu0
    %976 = vdwg.mxu0
    %977 = vmatpush.bf16.msra.mxu0 %v870
    %978 = vmatpush.bf16.msra.mxu0 %v869
    %979 = vmatpush.bf16.msra.mxu0 %v868
    %980 = vmatpush.bf16.msra.mxu0 %v867
    %981 = vmatpush.bf16.msra.mxu0 %v866
    %982 = vmatpush.bf16.msra.mxu0 %v865
    %983 = vmatpush.bf16.msra.mxu0 %v864
    %984 = vmatpush.bf16.msra.mxu0 %v863
    %985 = vmatmul.bf16.gmra.mxu0 %v641
    %v986 = vpop.f32.mrf.mxu0
    %v987 = vadd.f32 %v974, %v986
    %v988 = vpop.f32.mrf.mxu0
    %989 = vdwg.mxu0
    %990 = vmatpush.bf16.msra.mxu0 %v878
    %991 = vmatpush.bf16.msra.mxu0 %v877
    %992 = vmatpush.bf16.msra.mxu0 %v876
    %993 = vmatpush.bf16.msra.mxu0 %v875
    %994 = vmatpush.bf16.msra.mxu0 %v874
    %995 = vmatpush.bf16.msra.mxu0 %v873
    %996 = vmatpush.bf16.msra.mxu0 %v872
    %997 = vmatpush.bf16.msra.mxu0 %v871
    %998 = vmatmul.bf16.gmra.mxu0 %v642
    %v999 = vpop.f32.mrf.mxu0
    %v1000 = vadd.f32 %v987, %v999
    %v1001 = vpop.f32.mrf.mxu0
    %1002 = vdwg.mxu0
    %1003 = vmatpush.bf16.msra.mxu0 %v886
    %1004 = vmatpush.bf16.msra.mxu0 %v885
    %1005 = vmatpush.bf16.msra.mxu0 %v884
    %1006 = vmatpush.bf16.msra.mxu0 %v883
    %1007 = vmatpush.bf16.msra.mxu0 %v882
    %1008 = vmatpush.bf16.msra.mxu0 %v881
    %1009 = vmatpush.bf16.msra.mxu0 %v880
    %1010 = vmatpush.bf16.msra.mxu0 %v879
    %1011 = vmatmul.bf16.gmra.mxu0 %v643
    %v1012 = vpop.f32.mrf.mxu0
    %v1013 = vadd.f32 %v1000, %v1012
    %v1014 = vpop.f32.mrf.mxu0
    %1015 = vdwg.mxu0
    %v1016 = vmax.f32 %v1013, 0.0
    %v1017 = vld [vmem:[%s2] sm:$0xff]
    %v1018 = vld [vmem:[%s2 + $0x8] sm:$0xff]
    %v1019 = vld [vmem:[%s5] sm:$0xf]
    %v1020 = vld [vmem:[%s5 + $0x4] sm:$0xf]
    %v1021 = vld [vmem:[%s5 + $0x8] sm:$0xf]
    %v1022 = vld [vmem:[%s5 + $0xc] sm:$0xf]
    %v1023 = vld [vmem:[%s5 + $0x10] sm:$0xf]
    %v1024 = vld [vmem:[%s5 + $0x14] sm:$0xf]
    %v1025 = vld [vmem:[%s5 + $0x18] sm:$0xf]
    %v1026 = vld [vmem:[%s5 + $0x1c] sm:$0xf]
    %v1027 = vld [vmem:[%s5 + $0x20] sm:$0xf]
    %v1028 = vld [vmem:[%s5 + $0x24] sm:$0xf]
    %v1029 = vld [vmem:[%s5 + $0x28] sm:$0xf]
    %v1030 = vld [vmem:[%s5 + $0x2c] sm:$0xf]
    %v1031 = vld [vmem:[%s5 + $0x30] sm:$0xf]
    %v1032 = vld [vmem:[%s5 + $0x34] sm:$0xf]
    %v1033 = vld [vmem:[%s5 + $0x38] sm:$0xf]
    %v1034 = vld [vmem:[%s5 + $0x3c] sm:$0xf]
    %v1035 = vld [vmem:[%s5 + $0x40] sm:$0xf]
    %v1036 = vld [vmem:[%s5 + $0x44] sm:$0xf]
    %v1037 = vld [vmem:[%s5 + $0x48] sm:$0xf]
    %v1038 = vld [vmem:[%s5 + $0x4c] sm:$0xf]
    %v1039 = vld [vmem:[%s5 + $0x50] sm:$0xf]
    %v1040 = vld [vmem:[%s5 + $0x54] sm:$0xf]
    %v1041 = vld [vmem:[%s5 + $0x58] sm:$0xf]
    %v1042 = vld [vmem:[%s5 + $0x5c] sm:$0xf]
    %v1043 = vld [vmem:[%s5 + $0x60] sm:$0xf]
    %v1044 = vld [vmem:[%s5 + $0x64] sm:$0xf]
    %v1045 = vld [vmem:[%s5 + $0x68] sm:$0xf]
    %v1046 = vld [vmem:[%s5 + $0x6c] sm:$0xf]
    %v1047 = vld [vmem:[%s5 + $0x70] sm:$0xf]
    %v1048 = vld [vmem:[%s5 + $0x74] sm:$0xf]
    %v1049 = vld [vmem:[%s5 + $0x78] sm:$0xf]
    %v1050 = vld [vmem:[%s5 + $0x7c] sm:$0xf]
    %v1051 = vld [vmem:[%s5 + $0x80] sm:$0xf]
    %v1052 = vld [vmem:[%s5 + $0x84] sm:$0xf]
    %v1053 = vld [vmem:[%s5 + $0x88] sm:$0xf]
    %v1054 = vld [vmem:[%s5 + $0x8c] sm:$0xf]
    %v1055 = vld [vmem:[%s5 + $0x90] sm:$0xf]
    %v1056 = vld [vmem:[%s5 + $0x94] sm:$0xf]
    %v1057 = vld [vmem:[%s5 + $0x98] sm:$0xf]
    %v1058 = vld [vmem:[%s5 + $0x9c] sm:$0xf]
    %v1059 = vld [vmem:[%s5 + $0xa0] sm:$0xf]
    %v1060 = vld [vmem:[%s5 + $0xa4] sm:$0xf]
    %v1061 = vld [vmem:[%s5 + $0xa8] sm:$0xf]
    %v1062 = vld [vmem:[%s5 + $0xac] sm:$0xf]
    %v1063 = vld [vmem:[%s5 + $0xb0] sm:$0xf]
    %v1064 = vld [vmem:[%s5 + $0xb4] sm:$0xf]
    %v1065 = vld [vmem:[%s5 + $0xb8] sm:$0xf]
    %v1066 = vld [vmem:[%s5 + $0xbc] sm:$0xf]
    %v1067 = vld [vmem:[%s5 + $0xc0] sm:$0xf]
    %v1068 = vld [vmem:[%s5 + $0xc4] sm:$0xf]
    %v1069 = vld [vmem:[%s5 + $0xc8] sm:$0xf]
    %v1070 = vld [vmem:[%s5 + $0xcc] sm:$0xf]
    %v1071 = vld [vmem:[%s5 + $0xd0] sm:$0xf]
    %v1072 = vld [vmem:[%s5 + $0xd4] sm:$0xf]
    %v1073 = vld [vmem:[%s5 + $0xd8] sm:$0xf]
    %v1074 = vld [vmem:[%s5 + $0xdc] sm:$0xf]
    %v1075 = vld [vmem:[%s5 + $0xe0] sm:$0xf]
    %v1076 = vld [vmem:[%s5 + $0xe4] sm:$0xf]
    %v1077 = vld [vmem:[%s5 + $0xe8] sm:$0xf]
    %v1078 = vld [vmem:[%s5 + $0xec] sm:$0xf]
    %v1079 = vld [vmem:[%s5 + $0xf0] sm:$0xf]
    %v1080 = vld [vmem:[%s5 + $0xf4] sm:$0xf]
    %v1081 = vld [vmem:[%s5 + $0xf8] sm:$0xf]
    %v1082 = vld [vmem:[%s5 + $0xfc] sm:$0xf]
    %v1083 = vld [vmem:[%s5 + $0x100] sm:$0xf]
    %v1084 = vld [vmem:[%s5 + $0x104] sm:$0xf]
    %v1085 = vld [vmem:[%s5 + $0x108] sm:$0xf]
    %v1086 = vld [vmem:[%s5 + $0x10c] sm:$0xf]
    %v1087 = vld [vmem:[%s5 + $0x110] sm:$0xf]
    %v1088 = vld [vmem:[%s5 + $0x114] sm:$0xf]
    %v1089 = vld [vmem:[%s5 + $0x118] sm:$0xf]
    %v1090 = vld [vmem:[%s5 + $0x11c] sm:$0xf]
    %v1091 = vld [vmem:[%s5 + $0x120] sm:$0xf]
    %v1092 = vld [vmem:[%s5 + $0x124] sm:$0xf]
    %v1093 = vld [vmem:[%s5 + $0x128] sm:$0xf]
    %v1094 = vld [vmem:[%s5 + $0x12c] sm:$0xf]
    %v1095 = vld [vmem:[%s5 + $0x130] sm:$0xf]
    %v1096 = vld [vmem:[%s5 + $0x134] sm:$0xf]
    %v1097 = vld [vmem:[%s5 + $0x138] sm:$0xf]
    %v1098 = vld [vmem:[%s5 + $0x13c] sm:$0xf]
    %v1099 = vld [vmem:[%s5 + $0x140] sm:$0xf]
    %v1100 = vld [vmem:[%s5 + $0x144] sm:$0xf]
    %v1101 = vld [vmem:[%s5 + $0x148] sm:$0xf]
    %v1102 = vld [vmem:[%s5 + $0x14c] sm:$0xf]
    %v1103 = vld [vmem:[%s5 + $0x150] sm:$0xf]
    %v1104 = vld [vmem:[%s5 + $0x154] sm:$0xf]
    %v1105 = vld [vmem:[%s5 + $0x158] sm:$0xf]
    %v1106 = vld [vmem:[%s5 + $0x15c] sm:$0xf]
    %v1107 = vld [vmem:[%s5 + $0x160] sm:$0xf]
    %v1108 = vld [vmem:[%s5 + $0x164] sm:$0xf]
    %v1109 = vld [vmem:[%s5 + $0x168] sm:$0xf]
    %v1110 = vld [vmem:[%s5 + $0x16c] sm:$0xf]
    %v1111 = vld [vmem:[%s5 + $0x170] sm:$0xf]
    %v1112 = vld [vmem:[%s5 + $0x174] sm:$0xf]
    %v1113 = vld [vmem:[%s5 + $0x178] sm:$0xf]
    %v1114 = vld [vmem:[%s5 + $0x17c] sm:$0xf]
    %v1115 = vld [vmem:[%s5 + $0x180] sm:$0xf]
    %v1116 = vld [vmem:[%s5 + $0x184] sm:$0xf]
    %v1117 = vld [vmem:[%s5 + $0x188] sm:$0xf]
    %v1118 = vld [vmem:[%s5 + $0x18c] sm:$0xf]
    %v1119 = vld [vmem:[%s5 + $0x190] sm:$0xf]
    %v1120 = vld [vmem:[%s5 + $0x194] sm:$0xf]
    %v1121 = vld [vmem:[%s5 + $0x198] sm:$0xf]
    %v1122 = vld [vmem:[%s5 + $0x19c] sm:$0xf]
    %v1123 = vld [vmem:[%s5 + $0x1a0] sm:$0xf]
    %v1124 = vld [vmem:[%s5 + $0x1a4] sm:$0xf]
    %v1125 = vld [vmem:[%s5 + $0x1a8] sm:$0xf]
    %v1126 = vld [vmem:[%s5 + $0x1ac] sm:$0xf]
    %v1127 = vld [vmem:[%s5 + $0x1b0] sm:$0xf]
    %v1128 = vld [vmem:[%s5 + $0x1b4] sm:$0xf]
    %v1129 = vld [vmem:[%s5 + $0x1b8] sm:$0xf]
    %v1130 = vld [vmem:[%s5 + $0x1bc] sm:$0xf]
    %v1131 = vld [vmem:[%s5 + $0x1c0] sm:$0xf]
    %v1132 = vld [vmem:[%s5 + $0x1c4] sm:$0xf]
    %v1133 = vld [vmem:[%s5 + $0x1c8] sm:$0xf]
    %v1134 = vld [vmem:[%s5 + $0x1cc] sm:$0xf]
    %v1135 = vld [vmem:[%s5 + $0x1d0] sm:$0xf]
    %v1136 = vld [vmem:[%s5 + $0x1d4] sm:$0xf]
    %v1137 = vld [vmem:[%s5 + $0x1d8] sm:$0xf]
    %v1138 = vld [vmem:[%s5 + $0x1dc] sm:$0xf]
    %v1139 = vld [vmem:[%s5 + $0x1e0] sm:$0xf]
    %v1140 = vld [vmem:[%s5 + $0x1e4] sm:$0xf]
    %v1141 = vld [vmem:[%s5 + $0x1e8] sm:$0xf]
    %v1142 = vld [vmem:[%s5 + $0x1ec] sm:$0xf]
    %v1143 = vld [vmem:[%s5 + $0x1f0] sm:$0xf]
    %1146 = vst [vmem:[#allocation1] ss:$4 sm:$0xff] %v1017
    %s1147 = scalar_lea.vmem [#allocation1], 32
    %1148 = vst [vmem:[%s1147] ss:$4 sm:$0xff] %v1018
    %v1149 = vld.sshfl [vmem:[#allocation1] sm:$0xff pattern:$0x73625140]
    %v1150 = vld.sshfl [vmem:[#allocation1 + $0x8] sm:$0xff pattern:$0x73625140]
    %v1151 = vld.sshfl [vmem:[#allocation1 + $0x10] sm:$0xff pattern:$0x73625140]
    %v1152 = vld.sshfl [vmem:[#allocation1 + $0x18] sm:$0xff pattern:$0x73625140]
    %v1153 = vld.sshfl [vmem:[#allocation1 + $0x20] sm:$0xff pattern:$0x73625140]
    %v1154 = vld.sshfl [vmem:[#allocation1 + $0x28] sm:$0xff pattern:$0x73625140]
    %v1155 = vld.sshfl [vmem:[#allocation1 + $0x30] sm:$0xff pattern:$0x73625140]
    %v1156 = vld.sshfl [vmem:[#allocation1 + $0x38] sm:$0xff pattern:$0x73625140]
    %v1165 = vpack.c.bf16 %v1149, %v1149
    %v1166 = vpack.c.bf16 %v1150, %v1150
    %v1167 = vpack.c.bf16 %v1151, %v1151
    %v1168 = vpack.c.bf16 %v1152, %v1152
    %v1169 = vpack.c.bf16 %v1153, %v1153
    %v1170 = vpack.c.bf16 %v1154, %v1154
    %v1171 = vpack.c.bf16 %v1155, %v1155
    %v1172 = vpack.c.bf16 %v1156, %v1156
    %v1173 = vld [vmem:[%s7] sm:$0x1]
    %v1175 = vperm.slane %v1173, 0
    %v1301 = vunpack.c.l.b16 %v1019
    %v1302 = vunpack.c.l.b16 %v1020
    %v1303 = vunpack.c.l.b16 %v1021
    %v1304 = vunpack.c.l.b16 %v1022
    %v1305 = vunpack.c.l.b16 %v1023
    %v1306 = vunpack.c.l.b16 %v1024
    %v1307 = vunpack.c.l.b16 %v1025
    %v1308 = vunpack.c.l.b16 %v1026
    %v1309 = vunpack.c.l.b16 %v1027
    %v1310 = vunpack.c.l.b16 %v1028
    %v1311 = vunpack.c.l.b16 %v1029
    %v1312 = vunpack.c.l.b16 %v1030
    %v1313 = vunpack.c.l.b16 %v1031
    %v1314 = vunpack.c.l.b16 %v1032
    %v1315 = vunpack.c.l.b16 %v1033
    %v1316 = vunpack.c.l.b16 %v1034
    %v1317 = vunpack.c.l.b16 %v1035
    %v1318 = vunpack.c.l.b16 %v1036
    %v1319 = vunpack.c.l.b16 %v1037
    %v1320 = vunpack.c.l.b16 %v1038
    %v1321 = vunpack.c.l.b16 %v1039
    %v1322 = vunpack.c.l.b16 %v1040
    %v1323 = vunpack.c.l.b16 %v1041
    %v1324 = vunpack.c.l.b16 %v1042
    %v1325 = vunpack.c.l.b16 %v1043
    %v1326 = vunpack.c.l.b16 %v1044
    %v1327 = vunpack.c.l.b16 %v1045
    %v1328 = vunpack.c.l.b16 %v1046
    %v1329 = vunpack.c.l.b16 %v1047
    %v1330 = vunpack.c.l.b16 %v1048
    %v1331 = vunpack.c.l.b16 %v1049
    %v1332 = vunpack.c.l.b16 %v1050
    %v1333 = vunpack.c.l.b16 %v1051
    %v1334 = vunpack.c.l.b16 %v1052
    %v1335 = vunpack.c.l.b16 %v1053
    %v1336 = vunpack.c.l.b16 %v1054
    %v1337 = vunpack.c.l.b16 %v1055
    %v1338 = vunpack.c.l.b16 %v1056
    %v1339 = vunpack.c.l.b16 %v1057
    %v1340 = vunpack.c.l.b16 %v1058
    %v1341 = vunpack.c.l.b16 %v1059
    %v1342 = vunpack.c.l.b16 %v1060
    %v1343 = vunpack.c.l.b16 %v1061
    %v1344 = vunpack.c.l.b16 %v1062
    %v1345 = vunpack.c.l.b16 %v1063
    %v1346 = vunpack.c.l.b16 %v1064
    %v1347 = vunpack.c.l.b16 %v1065
    %v1348 = vunpack.c.l.b16 %v1066
    %v1349 = vunpack.c.l.b16 %v1067
    %v1350 = vunpack.c.l.b16 %v1068
    %v1351 = vunpack.c.l.b16 %v1069
    %v1352 = vunpack.c.l.b16 %v1070
    %v1353 = vunpack.c.l.b16 %v1071
    %v1354 = vunpack.c.l.b16 %v1072
    %v1355 = vunpack.c.l.b16 %v1073
    %v1356 = vunpack.c.l.b16 %v1074
    %v1357 = vunpack.c.l.b16 %v1075
    %v1358 = vunpack.c.l.b16 %v1076
    %v1359 = vunpack.c.l.b16 %v1077
    %v1360 = vunpack.c.l.b16 %v1078
    %v1361 = vunpack.c.l.b16 %v1079
    %v1362 = vunpack.c.l.b16 %v1080
    %v1363 = vunpack.c.l.b16 %v1081
    %v1364 = vunpack.c.l.b16 %v1082
    %v1365 = vunpack.c.l.b16 %v1083
    %v1366 = vunpack.c.l.b16 %v1084
    %v1367 = vunpack.c.l.b16 %v1085
    %v1368 = vunpack.c.l.b16 %v1086
    %v1369 = vunpack.c.l.b16 %v1087
    %v1370 = vunpack.c.l.b16 %v1088
    %v1371 = vunpack.c.l.b16 %v1089
    %v1372 = vunpack.c.l.b16 %v1090
    %v1373 = vunpack.c.l.b16 %v1091
    %v1374 = vunpack.c.l.b16 %v1092
    %v1375 = vunpack.c.l.b16 %v1093
    %v1376 = vunpack.c.l.b16 %v1094
    %v1377 = vunpack.c.l.b16 %v1095
    %v1378 = vunpack.c.l.b16 %v1096
    %v1379 = vunpack.c.l.b16 %v1097
    %v1380 = vunpack.c.l.b16 %v1098
    %v1381 = vunpack.c.l.b16 %v1099
    %v1382 = vunpack.c.l.b16 %v1100
    %v1383 = vunpack.c.l.b16 %v1101
    %v1384 = vunpack.c.l.b16 %v1102
    %v1385 = vunpack.c.l.b16 %v1103
    %v1386 = vunpack.c.l.b16 %v1104
    %v1387 = vunpack.c.l.b16 %v1105
    %v1388 = vunpack.c.l.b16 %v1106
    %v1389 = vunpack.c.l.b16 %v1107
    %v1390 = vunpack.c.l.b16 %v1108
    %v1391 = vunpack.c.l.b16 %v1109
    %v1392 = vunpack.c.l.b16 %v1110
    %v1393 = vunpack.c.l.b16 %v1111
    %v1394 = vunpack.c.l.b16 %v1112
    %v1395 = vunpack.c.l.b16 %v1113
    %v1396 = vunpack.c.l.b16 %v1114
    %v1397 = vunpack.c.l.b16 %v1115
    %v1398 = vunpack.c.l.b16 %v1116
    %v1399 = vunpack.c.l.b16 %v1117
    %v1400 = vunpack.c.l.b16 %v1118
    %v1401 = vunpack.c.l.b16 %v1119
    %v1402 = vunpack.c.l.b16 %v1120
    %v1403 = vunpack.c.l.b16 %v1121
    %v1404 = vunpack.c.l.b16 %v1122
    %v1405 = vunpack.c.l.b16 %v1123
    %v1406 = vunpack.c.l.b16 %v1124
    %v1407 = vunpack.c.l.b16 %v1125
    %v1408 = vunpack.c.l.b16 %v1126
    %v1409 = vunpack.c.l.b16 %v1127
    %v1410 = vunpack.c.l.b16 %v1128
    %v1411 = vunpack.c.l.b16 %v1129
    %v1412 = vunpack.c.l.b16 %v1130
    %v1413 = vunpack.c.l.b16 %v1131
    %v1414 = vunpack.c.l.b16 %v1132
    %v1415 = vunpack.c.l.b16 %v1133
    %v1416 = vunpack.c.l.b16 %v1134
    %v1417 = vunpack.c.l.b16 %v1135
    %v1418 = vunpack.c.l.b16 %v1136
    %v1419 = vunpack.c.l.b16 %v1137
    %v1420 = vunpack.c.l.b16 %v1138
    %v1421 = vunpack.c.l.b16 %v1139
    %v1422 = vunpack.c.l.b16 %v1140
    %v1423 = vunpack.c.l.b16 %v1141
    %v1424 = vunpack.c.l.b16 %v1142
    %v1425 = vunpack.c.l.b16 %v1143
    %v1426 = vpack.c.b16 %v1302, %v1301
    %v1427 = vpack.c.b16 %v1304, %v1303
    %v1428 = vpack.c.b16 %v1306, %v1305
    %v1429 = vpack.c.b16 %v1308, %v1307
    %v1430 = vpack.c.b16 %v1310, %v1309
    %v1431 = vpack.c.b16 %v1312, %v1311
    %v1432 = vpack.c.b16 %v1314, %v1313
    %v1433 = vpack.c.b16 %v1316, %v1315
    %v1434 = vpack.c.b16 %v1318, %v1317
    %v1435 = vpack.c.b16 %v1320, %v1319
    %v1436 = vpack.c.b16 %v1322, %v1321
    %v1437 = vpack.c.b16 %v1324, %v1323
    %v1438 = vpack.c.b16 %v1326, %v1325
    %v1439 = vpack.c.b16 %v1328, %v1327
    %v1440 = vpack.c.b16 %v1330, %v1329
    %v1441 = vpack.c.b16 %v1332, %v1331
    %v1442 = vpack.c.b16 %v1334, %v1333
    %v1443 = vpack.c.b16 %v1336, %v1335
    %v1444 = vpack.c.b16 %v1338, %v1337
    %v1445 = vpack.c.b16 %v1340, %v1339
    %v1446 = vpack.c.b16 %v1342, %v1341
    %v1447 = vpack.c.b16 %v1344, %v1343
    %v1448 = vpack.c.b16 %v1346, %v1345
    %v1449 = vpack.c.b16 %v1348, %v1347
    %v1450 = vpack.c.b16 %v1350, %v1349
    %v1451 = vpack.c.b16 %v1352, %v1351
    %v1452 = vpack.c.b16 %v1354, %v1353
    %v1453 = vpack.c.b16 %v1356, %v1355
    %v1454 = vpack.c.b16 %v1358, %v1357
    %v1455 = vpack.c.b16 %v1360, %v1359
    %v1456 = vpack.c.b16 %v1362, %v1361
    %v1457 = vpack.c.b16 %v1364, %v1363
    %v1458 = vpack.c.b16 %v1366, %v1365
    %v1459 = vpack.c.b16 %v1368, %v1367
    %v1460 = vpack.c.b16 %v1370, %v1369
    %v1461 = vpack.c.b16 %v1372, %v1371
    %v1462 = vpack.c.b16 %v1374, %v1373
    %v1463 = vpack.c.b16 %v1376, %v1375
    %v1464 = vpack.c.b16 %v1378, %v1377
    %v1465 = vpack.c.b16 %v1380, %v1379
    %v1466 = vpack.c.b16 %v1382, %v1381
    %v1467 = vpack.c.b16 %v1384, %v1383
    %v1468 = vpack.c.b16 %v1386, %v1385
    %v1469 = vpack.c.b16 %v1388, %v1387
    %v1470 = vpack.c.b16 %v1390, %v1389
    %v1471 = vpack.c.b16 %v1392, %v1391
    %v1472 = vpack.c.b16 %v1394, %v1393
    %v1473 = vpack.c.b16 %v1396, %v1395
    %v1474 = vpack.c.b16 %v1398, %v1397
    %v1475 = vpack.c.b16 %v1400, %v1399
    %v1476 = vpack.c.b16 %v1402, %v1401
    %v1477 = vpack.c.b16 %v1404, %v1403
    %v1478 = vpack.c.b16 %v1406, %v1405
    %v1479 = vpack.c.b16 %v1408, %v1407
    %v1480 = vpack.c.b16 %v1410, %v1409
    %v1481 = vpack.c.b16 %v1412, %v1411
    %v1482 = vpack.c.b16 %v1414, %v1413
    %v1483 = vpack.c.b16 %v1416, %v1415
    %v1484 = vpack.c.b16 %v1418, %v1417
    %v1485 = vpack.c.b16 %v1420, %v1419
    %v1486 = vpack.c.b16 %v1422, %v1421
    %v1487 = vpack.c.b16 %v1424, %v1423
    %v1488 = vpack.c.b16 %v1425, %v1425
    %1551 = vrot.lane.b32.xlu0 %v1175, 64
    %v1552 = vpop.permute.xlu0 %1551
    %vm1554 = vcmask 850944
    %v1556 = vsel %vm1554, %v1172, 0
    %vm1558 = vcmask 1043456
    %v1560 = vsel %vm1558, %v1488, 0
    %1562 = vmatpush.bf16.msra.mxu0 %v1433
    %1563 = vmatpush.bf16.msra.mxu0 %v1432
    %1564 = vmatpush.bf16.msra.mxu0 %v1431
    %1565 = vmatpush.bf16.msra.mxu0 %v1430
    %1566 = vmatpush.bf16.msra.mxu0 %v1429
    %1567 = vmatpush.bf16.msra.mxu0 %v1428
    %1568 = vmatpush.bf16.msra.mxu0 %v1427
    %1569 = vmatpush.bf16.msra.mxu0 %v1426
    %1570 = vmatmul.bf16.gmra.mxu0 %v1165
    %v1571 = vpop.f32.mrf.mxu0
    %v1572 = vadd.f32 %v1552, %v1571
    %v1573 = vpop.f32.mrf.mxu0
    %1574 = vdwg.mxu0
    %1575 = vmatpush.bf16.msra.mxu0 %v1441
    %1576 = vmatpush.bf16.msra.mxu0 %v1440
    %1577 = vmatpush.bf16.msra.mxu0 %v1439
    %1578 = vmatpush.bf16.msra.mxu0 %v1438
    %1579 = vmatpush.bf16.msra.mxu0 %v1437
    %1580 = vmatpush.bf16.msra.mxu0 %v1436
    %1581 = vmatpush.bf16.msra.mxu0 %v1435
    %1582 = vmatpush.bf16.msra.mxu0 %v1434
    %1583 = vmatmul.bf16.gmra.mxu0 %v1166
    %v1584 = vpop.f32.mrf.mxu0
    %v1585 = vadd.f32 %v1572, %v1584
    %v1586 = vpop.f32.mrf.mxu0
    %1587 = vdwg.mxu0
    %1588 = vmatpush.bf16.msra.mxu0 %v1449
    %1589 = vmatpush.bf16.msra.mxu0 %v1448
    %1590 = vmatpush.bf16.msra.mxu0 %v1447
    %1591 = vmatpush.bf16.msra.mxu0 %v1446
    %1592 = vmatpush.bf16.msra.mxu0 %v1445
    %1593 = vmatpush.bf16.msra.mxu0 %v1444
    %1594 = vmatpush.bf16.msra.mxu0 %v1443
    %1595 = vmatpush.bf16.msra.mxu0 %v1442
    %1596 = vmatmul.bf16.gmra.mxu0 %v1167
    %v1597 = vpop.f32.mrf.mxu0
    %v1598 = vadd.f32 %v1585, %v1597
    %v1599 = vpop.f32.mrf.mxu0
    %1600 = vdwg.mxu0
    %1601 = vmatpush.bf16.msra.mxu0 %v1457
    %1602 = vmatpush.bf16.msra.mxu0 %v1456
    %1603 = vmatpush.bf16.msra.mxu0 %v1455
    %1604 = vmatpush.bf16.msra.mxu0 %v1454
    %1605 = vmatpush.bf16.msra.mxu0 %v1453
    %1606 = vmatpush.bf16.msra.mxu0 %v1452
    %1607 = vmatpush.bf16.msra.mxu0 %v1451
    %1608 = vmatpush.bf16.msra.mxu0 %v1450
    %1609 = vmatmul.bf16.gmra.mxu0 %v1168
    %v1610 = vpop.f32.mrf.mxu0
    %v1611 = vadd.f32 %v1598, %v1610
    %v1612 = vpop.f32.mrf.mxu0
    %1613 = vdwg.mxu0
    %1614 = vmatpush.bf16.msra.mxu0 %v1465
    %1615 = vmatpush.bf16.msra.mxu0 %v1464
    %1616 = vmatpush.bf16.msra.mxu0 %v1463
    %1617 = vmatpush.bf16.msra.mxu0 %v1462
    %1618 = vmatpush.bf16.msra.mxu0 %v1461
    %1619 = vmatpush.bf16.msra.mxu0 %v1460
    %1620 = vmatpush.bf16.msra.mxu0 %v1459
    %1621 = vmatpush.bf16.msra.mxu0 %v1458
    %1622 = vmatmul.bf16.gmra.mxu0 %v1169
    %v1623 = vpop.f32.mrf.mxu0
    %v1624 = vadd.f32 %v1611, %v1623
    %v1625 = vpop.f32.mrf.mxu0
    %1626 = vdwg.mxu0
    %1627 = vmatpush.bf16.msra.mxu0 %v1473
    %1628 = vmatpush.bf16.msra.mxu0 %v1472
    %1629 = vmatpush.bf16.msra.mxu0 %v1471
    %1630 = vmatpush.bf16.msra.mxu0 %v1470
    %1631 = vmatpush.bf16.msra.mxu0 %v1469
    %1632 = vmatpush.bf16.msra.mxu0 %v1468
    %1633 = vmatpush.bf16.msra.mxu0 %v1467
    %1634 = vmatpush.bf16.msra.mxu0 %v1466
    %1635 = vmatmul.bf16.gmra.mxu0 %v1170
    %v1636 = vpop.f32.mrf.mxu0
    %v1637 = vadd.f32 %v1624, %v1636
    %v1638 = vpop.f32.mrf.mxu0
    %1639 = vdwg.mxu0
    %1640 = vmatpush.bf16.msra.mxu0 %v1481
    %1641 = vmatpush.bf16.msra.mxu0 %v1480
    %1642 = vmatpush.bf16.msra.mxu0 %v1479
    %1643 = vmatpush.bf16.msra.mxu0 %v1478
    %1644 = vmatpush.bf16.msra.mxu0 %v1477
    %1645 = vmatpush.bf16.msra.mxu0 %v1476
    %1646 = vmatpush.bf16.msra.mxu0 %v1475
    %1647 = vmatpush.bf16.msra.mxu0 %v1474
    %1648 = vmatmul.bf16.gmra.mxu0 %v1171
    %v1649 = vpop.f32.mrf.mxu0
    %v1650 = vadd.f32 %v1637, %v1649
    %v1651 = vpop.f32.mrf.mxu0
    %1652 = vdwg.mxu0
    %1653 = vmatpush.bf16.msra.mxu0 0
    %1654 = vmatpush.bf16.msra.mxu0 %v1560
    %1655 = vmatpush.bf16.msra.mxu0 %v1487
    %1656 = vmatpush.bf16.msra.mxu0 %v1486
    %1657 = vmatpush.bf16.msra.mxu0 %v1485
    %1658 = vmatpush.bf16.msra.mxu0 %v1484
    %1659 = vmatpush.bf16.msra.mxu0 %v1483
    %1660 = vmatpush.bf16.msra.mxu0 %v1482
    %1661 = vmatmul.bf16.gmra.mxu0 %v1556
    %v1662 = vpop.f32.mrf.mxu0
    %v1663 = vadd.f32 %v1650, %v1662
    %v1664 = vpop.f32.mrf.mxu0
    %1665 = vdwg.mxu0
    %v1666 = vmax.f32 %v1663, 0.0
    %v1667 = vld [vmem:[%s6] sm:$0xff]
    %v1668 = vld [vmem:[%s6 + $0x20] sm:$0xff]
    %v1669 = vld [vmem:[%s6 + $0x40] sm:$0xff]
    %v1670 = vld [vmem:[%s6 + $0x60] sm:$0xff]
    %v1671 = vld [vmem:[%s7 + $0x1] sm:$0x1]
    %v1673 = vperm.slane %v1671, 0
    %vm1675 = vcmask 261120
    %v1677 = vsel %vm1675, %v522, 0
    %1679 = vmatpush.msra.mxu0 0.0
    %1680 = vmatpush.msra.mxu0 0.0
    %1681 = vmatpush.msra.mxu0 0.0
    %1682 = vmatpush.msra.mxu0 0.0
    %1683 = vmatpush.msra.mxu0 0.0
    %1684 = vmatpush.msra.mxu0 0.0
    %1685 = vmatpush.msra.mxu0 0.0
    %1686 = vmatpush.msra.mxu0 0.0
    %1687 = vmatpush.msra.mxu0 0.0
    %1688 = vmatpush.msra.mxu0 0.0
    %1689 = vmatpush.msra.mxu0 0.0
    %1690 = vmatpush.msra.mxu0 0.0
    %v1691 = vand.u32 %v1670, 4294901760
    %1692 = vmatpush.msra.mxu0 %v1691
    %v1693 = vand.u32 %v1669, 4294901760
    %1694 = vmatpush.msra.mxu0 %v1693
    %v1695 = vand.u32 %v1668, 4294901760
    %1696 = vmatpush.msra.mxu0 %v1695
    %v1697 = vand.u32 %v1667, 4294901760
    %1698 = vmatpush.msra.mxu0 %v1697
    %v1699 = vand.u32 %v1677, 4294901760
    %v1700 = vsub.f32 %v1677, %v1699
    %v1701 = vand.u32 %v1700, 4294901760
    %v1702 = vsub.f32 %v1700, %v1701
    %v1703 = vand.u32 %v1702, 4294901760
    %1704 = vmatmul.f32.gmra.mxu0 %v1703
    %v1705 = vpop.f32.mrf.mxu0
    %v1706 = vadd.f32 %v1673, %v1705
    %1707 = vdwg.mxu0
    %1708 = vmatpush.msra.mxu0 0.0
    %1709 = vmatpush.msra.mxu0 0.0
    %1710 = vmatpush.msra.mxu0 0.0
    %1711 = vmatpush.msra.mxu0 0.0
    %1712 = vmatpush.msra.mxu0 0.0
    %1713 = vmatpush.msra.mxu0 0.0
    %1714 = vmatpush.msra.mxu0 0.0
    %1715 = vmatpush.msra.mxu0 0.0
    %1716 = vmatpush.msra.mxu0 0.0
    %1717 = vmatpush.msra.mxu0 0.0
    %1718 = vmatpush.msra.mxu0 0.0
    %1719 = vmatpush.msra.mxu0 0.0
    %v1720 = vand.u32 %v1670, 4294901760
    %v1721 = vsub.f32 %v1670, %v1720
    %v1722 = vand.u32 %v1721, 4294901760
    %v1723 = vsub.f32 %v1721, %v1722
    %v1724 = vand.u32 %v1723, 4294901760
    %1725 = vmatpush.msra.mxu0 %v1724
    %v1726 = vand.u32 %v1669, 4294901760
    %v1727 = vsub.f32 %v1669, %v1726
    %v1728 = vand.u32 %v1727, 4294901760
    %v1729 = vsub.f32 %v1727, %v1728
    %v1730 = vand.u32 %v1729, 4294901760
    %1731 = vmatpush.msra.mxu0 %v1730
    %v1732 = vand.u32 %v1668, 4294901760
    %v1733 = vsub.f32 %v1668, %v1732
    %v1734 = vand.u32 %v1733, 4294901760
    %v1735 = vsub.f32 %v1733, %v1734
    %v1736 = vand.u32 %v1735, 4294901760
    %1737 = vmatpush.msra.mxu0 %v1736
    %v1738 = vand.u32 %v1667, 4294901760
    %v1739 = vsub.f32 %v1667, %v1738
    %v1740 = vand.u32 %v1739, 4294901760
    %v1741 = vsub.f32 %v1739, %v1740
    %v1742 = vand.u32 %v1741, 4294901760
    %1743 = vmatpush.msra.mxu0 %v1742
    %v1744 = vand.u32 %v1677, 4294901760
    %1745 = vmatmul.f32.gmra.mxu0 %v1744
    %v1746 = vpop.f32.mrf.mxu0
    %v1747 = vadd.f32 %v1706, %v1746
    %1748 = vdwg.mxu0
    %1749 = vmatpush.msra.mxu0 0.0
    %1750 = vmatpush.msra.mxu0 0.0
    %1751 = vmatpush.msra.mxu0 0.0
    %1752 = vmatpush.msra.mxu0 0.0
    %1753 = vmatpush.msra.mxu0 0.0
    %1754 = vmatpush.msra.mxu0 0.0
    %1755 = vmatpush.msra.mxu0 0.0
    %1756 = vmatpush.msra.mxu0 0.0
    %1757 = vmatpush.msra.mxu0 0.0
    %1758 = vmatpush.msra.mxu0 0.0
    %1759 = vmatpush.msra.mxu0 0.0
    %1760 = vmatpush.msra.mxu0 0.0
    %v1761 = vand.u32 %v1670, 4294901760
    %v1762 = vsub.f32 %v1670, %v1761
    %1763 = vmatpush.msra.mxu0 %v1762
    %v1764 = vand.u32 %v1669, 4294901760
    %v1765 = vsub.f32 %v1669, %v1764
    %1766 = vmatpush.msra.mxu0 %v1765
    %v1767 = vand.u32 %v1668, 4294901760
    %v1768 = vsub.f32 %v1668, %v1767
    %1769 = vmatpush.msra.mxu0 %v1768
    %v1770 = vand.u32 %v1667, 4294901760
    %v1771 = vsub.f32 %v1667, %v1770
    %1772 = vmatpush.msra.mxu0 %v1771
    %v1773 = vand.u32 %v1677, 4294901760
    %v1774 = vsub.f32 %v1677, %v1773
    %1775 = vmatmul.f32.gmra.mxu0 %v1774
    %v1776 = vpop.f32.mrf.mxu0
    %v1777 = vadd.f32 %v1747, %v1776
    %1778 = vdwg.mxu0
    %1779 = vmatpush.msra.mxu0 0.0
    %1780 = vmatpush.msra.mxu0 0.0
    %1781 = vmatpush.msra.mxu0 0.0
    %1782 = vmatpush.msra.mxu0 0.0
    %1783 = vmatpush.msra.mxu0 0.0
    %1784 = vmatpush.msra.mxu0 0.0
    %1785 = vmatpush.msra.mxu0 0.0
    %1786 = vmatpush.msra.mxu0 0.0
    %1787 = vmatpush.msra.mxu0 0.0
    %1788 = vmatpush.msra.mxu0 0.0
    %1789 = vmatpush.msra.mxu0 0.0
    %1790 = vmatpush.msra.mxu0 0.0
    %v1791 = vand.u32 %v1670, 4294901760
    %1792 = vmatpush.msra.mxu0 %v1791
    %v1793 = vand.u32 %v1669, 4294901760
    %1794 = vmatpush.msra.mxu0 %v1793
    %v1795 = vand.u32 %v1668, 4294901760
    %1796 = vmatpush.msra.mxu0 %v1795
    %v1797 = vand.u32 %v1667, 4294901760
    %1798 = vmatpush.msra.mxu0 %v1797
    %v1799 = vand.u32 %v1677, 4294901760
    %v1800 = vsub.f32 %v1677, %v1799
    %v1801 = vand.u32 %v1800, 4294901760
    %1802 = vmatmul.f32.gmra.mxu0 %v1801
    %v1803 = vpop.f32.mrf.mxu0
    %v1804 = vadd.f32 %v1777, %v1803
    %1805 = vdwg.mxu0
    %1806 = vmatpush.msra.mxu0 0.0
    %1807 = vmatpush.msra.mxu0 0.0
    %1808 = vmatpush.msra.mxu0 0.0
    %1809 = vmatpush.msra.mxu0 0.0
    %1810 = vmatpush.msra.mxu0 0.0
    %1811 = vmatpush.msra.mxu0 0.0
    %1812 = vmatpush.msra.mxu0 0.0
    %1813 = vmatpush.msra.mxu0 0.0
    %1814 = vmatpush.msra.mxu0 0.0
    %1815 = vmatpush.msra.mxu0 0.0
    %1816 = vmatpush.msra.mxu0 0.0
    %1817 = vmatpush.msra.mxu0 0.0
    %v1818 = vand.u32 %v1670, 4294901760
    %v1819 = vsub.f32 %v1670, %v1818
    %v1820 = vand.u32 %v1819, 4294901760
    %1821 = vmatpush.msra.mxu0 %v1820
    %v1822 = vand.u32 %v1669, 4294901760
    %v1823 = vsub.f32 %v1669, %v1822
    %v1824 = vand.u32 %v1823, 4294901760
    %1825 = vmatpush.msra.mxu0 %v1824
    %v1826 = vand.u32 %v1668, 4294901760
    %v1827 = vsub.f32 %v1668, %v1826
    %v1828 = vand.u32 %v1827, 4294901760
    %1829 = vmatpush.msra.mxu0 %v1828
    %v1830 = vand.u32 %v1667, 4294901760
    %v1831 = vsub.f32 %v1667, %v1830
    %v1832 = vand.u32 %v1831, 4294901760
    %1833 = vmatpush.msra.mxu0 %v1832
    %v1834 = vand.u32 %v1677, 4294901760
    %1835 = vmatmul.f32.gmra.mxu0 %v1834
    %v1836 = vpop.f32.mrf.mxu0
    %v1837 = vadd.f32 %v1804, %v1836
    %1838 = vdwg.mxu0
    %1839 = vmatpush.msra.mxu0 0.0
    %1840 = vmatpush.msra.mxu0 0.0
    %1841 = vmatpush.msra.mxu0 0.0
    %1842 = vmatpush.msra.mxu0 0.0
    %1843 = vmatpush.msra.mxu0 0.0
    %1844 = vmatpush.msra.mxu0 0.0
    %1845 = vmatpush.msra.mxu0 0.0
    %1846 = vmatpush.msra.mxu0 0.0
    %1847 = vmatpush.msra.mxu0 0.0
    %1848 = vmatpush.msra.mxu0 0.0
    %1849 = vmatpush.msra.mxu0 0.0
    %1850 = vmatpush.msra.mxu0 0.0
    %v1851 = vand.u32 %v1670, 4294901760
    %1852 = vmatpush.msra.mxu0 %v1851
    %v1853 = vand.u32 %v1669, 4294901760
    %1854 = vmatpush.msra.mxu0 %v1853
    %v1855 = vand.u32 %v1668, 4294901760
    %1856 = vmatpush.msra.mxu0 %v1855
    %v1857 = vand.u32 %v1667, 4294901760
    %1858 = vmatpush.msra.mxu0 %v1857
    %v1859 = vand.u32 %v1677, 4294901760
    %1860 = vmatmul.f32.gmra.mxu0 %v1859
    %v1861 = vpop.f32.mrf.mxu0
    %v1862 = vadd.f32 %v1837, %v1861
    %1863 = vdwg.mxu0
    %v1865 = vsel %vm1675, %v1666, 0
    %1867 = vmatpush.msra.mxu0 0.0
    %1868 = vmatpush.msra.mxu0 0.0
    %1869 = vmatpush.msra.mxu0 0.0
    %1870 = vmatpush.msra.mxu0 0.0
    %1871 = vmatpush.msra.mxu0 0.0
    %1872 = vmatpush.msra.mxu0 0.0
    %1873 = vmatpush.msra.mxu0 0.0
    %1874 = vmatpush.msra.mxu0 0.0
    %1875 = vmatpush.msra.mxu0 0.0
    %1876 = vmatpush.msra.mxu0 0.0
    %1877 = vmatpush.msra.mxu0 0.0
    %1878 = vmatpush.msra.mxu0 0.0
    %v1879 = vand.u32 %v1670, 4294901760
    %1880 = vmatpush.msra.mxu0 %v1879
    %v1881 = vand.u32 %v1669, 4294901760
    %1882 = vmatpush.msra.mxu0 %v1881
    %v1883 = vand.u32 %v1668, 4294901760
    %1884 = vmatpush.msra.mxu0 %v1883
    %v1885 = vand.u32 %v1667, 4294901760
    %1886 = vmatpush.msra.mxu0 %v1885
    %v1887 = vand.u32 %v1865, 4294901760
    %v1888 = vsub.f32 %v1865, %v1887
    %v1889 = vand.u32 %v1888, 4294901760
    %v1890 = vsub.f32 %v1888, %v1889
    %v1891 = vand.u32 %v1890, 4294901760
    %1892 = vmatmul.f32.gmra.mxu0 %v1891
    %v1893 = vpop.f32.mrf.mxu0
    %v1894 = vadd.f32 %v1673, %v1893
    %1895 = vdwg.mxu0
    %1896 = vmatpush.msra.mxu0 0.0
    %1897 = vmatpush.msra.mxu0 0.0
    %1898 = vmatpush.msra.mxu0 0.0
    %1899 = vmatpush.msra.mxu0 0.0
    %1900 = vmatpush.msra.mxu0 0.0
    %1901 = vmatpush.msra.mxu0 0.0
    %1902 = vmatpush.msra.mxu0 0.0
    %1903 = vmatpush.msra.mxu0 0.0
    %1904 = vmatpush.msra.mxu0 0.0
    %1905 = vmatpush.msra.mxu0 0.0
    %1906 = vmatpush.msra.mxu0 0.0
    %1907 = vmatpush.msra.mxu0 0.0
    %v1908 = vand.u32 %v1670, 4294901760
    %v1909 = vsub.f32 %v1670, %v1908
    %v1910 = vand.u32 %v1909, 4294901760
    %v1911 = vsub.f32 %v1909, %v1910
    %v1912 = vand.u32 %v1911, 4294901760
    %1913 = vmatpush.msra.mxu0 %v1912
    %v1914 = vand.u32 %v1669, 4294901760
    %v1915 = vsub.f32 %v1669, %v1914
    %v1916 = vand.u32 %v1915, 4294901760
    %v1917 = vsub.f32 %v1915, %v1916
    %v1918 = vand.u32 %v1917, 4294901760
    %1919 = vmatpush.msra.mxu0 %v1918
    %v1920 = vand.u32 %v1668, 4294901760
    %v1921 = vsub.f32 %v1668, %v1920
    %v1922 = vand.u32 %v1921, 4294901760
    %v1923 = vsub.f32 %v1921, %v1922
    %v1924 = vand.u32 %v1923, 4294901760
    %1925 = vmatpush.msra.mxu0 %v1924
    %v1926 = vand.u32 %v1667, 4294901760
    %v1927 = vsub.f32 %v1667, %v1926
    %v1928 = vand.u32 %v1927, 4294901760
    %v1929 = vsub.f32 %v1927, %v1928
    %v1930 = vand.u32 %v1929, 4294901760
    %1931 = vmatpush.msra.mxu0 %v1930
    %v1932 = vand.u32 %v1865, 4294901760
    %1933 = vmatmul.f32.gmra.mxu0 %v1932
    %v1934 = vpop.f32.mrf.mxu0
    %v1935 = vadd.f32 %v1894, %v1934
    %1936 = vdwg.mxu0
    %1937 = vmatpush.msra.mxu0 0.0
    %1938 = vmatpush.msra.mxu0 0.0
    %1939 = vmatpush.msra.mxu0 0.0
    %1940 = vmatpush.msra.mxu0 0.0
    %1941 = vmatpush.msra.mxu0 0.0
    %1942 = vmatpush.msra.mxu0 0.0
    %1943 = vmatpush.msra.mxu0 0.0
    %1944 = vmatpush.msra.mxu0 0.0
    %1945 = vmatpush.msra.mxu0 0.0
    %1946 = vmatpush.msra.mxu0 0.0
    %1947 = vmatpush.msra.mxu0 0.0
    %1948 = vmatpush.msra.mxu0 0.0
    %v1949 = vand.u32 %v1670, 4294901760
    %v1950 = vsub.f32 %v1670, %v1949
    %1951 = vmatpush.msra.mxu0 %v1950
    %v1952 = vand.u32 %v1669, 4294901760
    %v1953 = vsub.f32 %v1669, %v1952
    %1954 = vmatpush.msra.mxu0 %v1953
    %v1955 = vand.u32 %v1668, 4294901760
    %v1956 = vsub.f32 %v1668, %v1955
    %1957 = vmatpush.msra.mxu0 %v1956
    %v1958 = vand.u32 %v1667, 4294901760
    %v1959 = vsub.f32 %v1667, %v1958
    %1960 = vmatpush.msra.mxu0 %v1959
    %v1961 = vand.u32 %v1865, 4294901760
    %v1962 = vsub.f32 %v1865, %v1961
    %1963 = vmatmul.f32.gmra.mxu0 %v1962
    %v1964 = vpop.f32.mrf.mxu0
    %v1965 = vadd.f32 %v1935, %v1964
    %1966 = vdwg.mxu0
    %1967 = vmatpush.msra.mxu0 0.0
    %1968 = vmatpush.msra.mxu0 0.0
    %1969 = vmatpush.msra.mxu0 0.0
    %1970 = vmatpush.msra.mxu0 0.0
    %1971 = vmatpush.msra.mxu0 0.0
    %1972 = vmatpush.msra.mxu0 0.0
    %1973 = vmatpush.msra.mxu0 0.0
    %1974 = vmatpush.msra.mxu0 0.0
    %1975 = vmatpush.msra.mxu0 0.0
    %1976 = vmatpush.msra.mxu0 0.0
    %1977 = vmatpush.msra.mxu0 0.0
    %1978 = vmatpush.msra.mxu0 0.0
    %v1979 = vand.u32 %v1670, 4294901760
    %1980 = vmatpush.msra.mxu0 %v1979
    %v1981 = vand.u32 %v1669, 4294901760
    %1982 = vmatpush.msra.mxu0 %v1981
    %v1983 = vand.u32 %v1668, 4294901760
    %1984 = vmatpush.msra.mxu0 %v1983
    %v1985 = vand.u32 %v1667, 4294901760
    %1986 = vmatpush.msra.mxu0 %v1985
    %v1987 = vand.u32 %v1865, 4294901760
    %v1988 = vsub.f32 %v1865, %v1987
    %v1989 = vand.u32 %v1988, 4294901760
    %1990 = vmatmul.f32.gmra.mxu0 %v1989
    %v1991 = vpop.f32.mrf.mxu0
    %v1992 = vadd.f32 %v1965, %v1991
    %1993 = vdwg.mxu0
    %1994 = vmatpush.msra.mxu0 0.0
    %1995 = vmatpush.msra.mxu0 0.0
    %1996 = vmatpush.msra.mxu0 0.0
    %1997 = vmatpush.msra.mxu0 0.0
    %1998 = vmatpush.msra.mxu0 0.0
    %1999 = vmatpush.msra.mxu0 0.0
    %2000 = vmatpush.msra.mxu0 0.0
    %2001 = vmatpush.msra.mxu0 0.0
    %2002 = vmatpush.msra.mxu0 0.0
    %2003 = vmatpush.msra.mxu0 0.0
    %2004 = vmatpush.msra.mxu0 0.0
    %2005 = vmatpush.msra.mxu0 0.0
    %v2006 = vand.u32 %v1670, 4294901760
    %v2007 = vsub.f32 %v1670, %v2006
    %v2008 = vand.u32 %v2007, 4294901760
    %2009 = vmatpush.msra.mxu0 %v2008
    %v2010 = vand.u32 %v1669, 4294901760
    %v2011 = vsub.f32 %v1669, %v2010
    %v2012 = vand.u32 %v2011, 4294901760
    %2013 = vmatpush.msra.mxu0 %v2012
    %v2014 = vand.u32 %v1668, 4294901760
    %v2015 = vsub.f32 %v1668, %v2014
    %v2016 = vand.u32 %v2015, 4294901760
    %2017 = vmatpush.msra.mxu0 %v2016
    %v2018 = vand.u32 %v1667, 4294901760
    %v2019 = vsub.f32 %v1667, %v2018
    %v2020 = vand.u32 %v2019, 4294901760
    %2021 = vmatpush.msra.mxu0 %v2020
    %v2022 = vand.u32 %v1865, 4294901760
    %2023 = vmatmul.f32.gmra.mxu0 %v2022
    %v2024 = vpop.f32.mrf.mxu0
    %v2025 = vadd.f32 %v1992, %v2024
    %2026 = vdwg.mxu0
    %2027 = vmatpush.msra.mxu0 0.0
    %2028 = vmatpush.msra.mxu0 0.0
    %2029 = vmatpush.msra.mxu0 0.0
    %2030 = vmatpush.msra.mxu0 0.0
    %2031 = vmatpush.msra.mxu0 0.0
    %2032 = vmatpush.msra.mxu0 0.0
    %2033 = vmatpush.msra.mxu0 0.0
    %2034 = vmatpush.msra.mxu0 0.0
    %2035 = vmatpush.msra.mxu0 0.0
    %2036 = vmatpush.msra.mxu0 0.0
    %2037 = vmatpush.msra.mxu0 0.0
    %2038 = vmatpush.msra.mxu0 0.0
    %v2039 = vand.u32 %v1670, 4294901760
    %2040 = vmatpush.msra.mxu0 %v2039
    %v2041 = vand.u32 %v1669, 4294901760
    %2042 = vmatpush.msra.mxu0 %v2041
    %v2043 = vand.u32 %v1668, 4294901760
    %2044 = vmatpush.msra.mxu0 %v2043
    %v2045 = vand.u32 %v1667, 4294901760
    %2046 = vmatpush.msra.mxu0 %v2045
    %v2047 = vand.u32 %v1865, 4294901760
    %2048 = vmatmul.f32.gmra.mxu0 %v2047
    %v2049 = vpop.f32.mrf.mxu0
    %v2050 = vadd.f32 %v2025, %v2049
    %2051 = vdwg.mxu0
    %v2052 = vsub.f32 %v1862, %v2050
    %2054 = vrot.lane.b32.xlu0 %v2052, 96
    %v2055 = vpop.permute.xlu0 %2054
    %v2057 = vmul.f32 %v1862, %v2055
    %v2058 = vld [vmem:[%s6 + $0x8] sm:$0xff]
    %v2059 = vld [vmem:[%s6 + $0x28] sm:$0xff]
    %v2060 = vld [vmem:[%s6 + $0x48] sm:$0xff]
    %v2061 = vld [vmem:[%s6 + $0x68] sm:$0xff]
    %v2063 = vsel %vm1675, %v2057, 0
    %2065 = vmatpush.msra.mxu0 0.0
    %2066 = vmatpush.msra.mxu0 0.0
    %2067 = vmatpush.msra.mxu0 0.0
    %2068 = vmatpush.msra.mxu0 0.0
    %2069 = vmatpush.msra.mxu0 0.0
    %2070 = vmatpush.msra.mxu0 0.0
    %2071 = vmatpush.msra.mxu0 0.0
    %2072 = vmatpush.msra.mxu0 0.0
    %2073 = vmatpush.msra.mxu0 0.0
    %2074 = vmatpush.msra.mxu0 0.0
    %2075 = vmatpush.msra.mxu0 0.0
    %2076 = vmatpush.msra.mxu0 0.0
    %v2077 = vand.u32 %v2061, 4294901760
    %2078 = vmatpush.msra.mxu0 %v2077
    %v2079 = vand.u32 %v2060, 4294901760
    %2080 = vmatpush.msra.mxu0 %v2079
    %v2081 = vand.u32 %v2059, 4294901760
    %2082 = vmatpush.msra.mxu0 %v2081
    %v2083 = vand.u32 %v2058, 4294901760
    %2084 = vmatpush.msra.mxu0 %v2083
    %v2085 = vand.u32 %v2063, 4294901760
    %v2086 = vsub.f32 %v2063, %v2085
    %v2087 = vand.u32 %v2086, 4294901760
    %v2088 = vsub.f32 %v2086, %v2087
    %v2089 = vand.u32 %v2088, 4294901760
    %2090 = vmatmul.f32.gmra.mxu0 %v2089
    %v2091 = vpop.f32.mrf.mxu0
    %v2092 = vadd.f32 0.0, %v2091
    %2093 = vdwg.mxu0
    %2094 = vmatpush.msra.mxu0 0.0
    %2095 = vmatpush.msra.mxu0 0.0
    %2096 = vmatpush.msra.mxu0 0.0
    %2097 = vmatpush.msra.mxu0 0.0
    %2098 = vmatpush.msra.mxu0 0.0
    %2099 = vmatpush.msra.mxu0 0.0
    %2100 = vmatpush.msra.mxu0 0.0
    %2101 = vmatpush.msra.mxu0 0.0
    %2102 = vmatpush.msra.mxu0 0.0
    %2103 = vmatpush.msra.mxu0 0.0
    %2104 = vmatpush.msra.mxu0 0.0
    %2105 = vmatpush.msra.mxu0 0.0
    %v2106 = vand.u32 %v2061, 4294901760
    %v2107 = vsub.f32 %v2061, %v2106
    %v2108 = vand.u32 %v2107, 4294901760
    %v2109 = vsub.f32 %v2107, %v2108
    %v2110 = vand.u32 %v2109, 4294901760
    %2111 = vmatpush.msra.mxu0 %v2110
    %v2112 = vand.u32 %v2060, 4294901760
    %v2113 = vsub.f32 %v2060, %v2112
    %v2114 = vand.u32 %v2113, 4294901760
    %v2115 = vsub.f32 %v2113, %v2114
    %v2116 = vand.u32 %v2115, 4294901760
    %2117 = vmatpush.msra.mxu0 %v2116
    %v2118 = vand.u32 %v2059, 4294901760
    %v2119 = vsub.f32 %v2059, %v2118
    %v2120 = vand.u32 %v2119, 4294901760
    %v2121 = vsub.f32 %v2119, %v2120
    %v2122 = vand.u32 %v2121, 4294901760
    %2123 = vmatpush.msra.mxu0 %v2122
    %v2124 = vand.u32 %v2058, 4294901760
    %v2125 = vsub.f32 %v2058, %v2124
    %v2126 = vand.u32 %v2125, 4294901760
    %v2127 = vsub.f32 %v2125, %v2126
    %v2128 = vand.u32 %v2127, 4294901760
    %2129 = vmatpush.msra.mxu0 %v2128
    %v2130 = vand.u32 %v2063, 4294901760
    %2131 = vmatmul.f32.gmra.mxu0 %v2130
    %v2132 = vpop.f32.mrf.mxu0
    %v2133 = vadd.f32 %v2092, %v2132
    %2134 = vdwg.mxu0
    %2135 = vmatpush.msra.mxu0 0.0
    %2136 = vmatpush.msra.mxu0 0.0
    %2137 = vmatpush.msra.mxu0 0.0
    %2138 = vmatpush.msra.mxu0 0.0
    %2139 = vmatpush.msra.mxu0 0.0
    %2140 = vmatpush.msra.mxu0 0.0
    %2141 = vmatpush.msra.mxu0 0.0
    %2142 = vmatpush.msra.mxu0 0.0
    %2143 = vmatpush.msra.mxu0 0.0
    %2144 = vmatpush.msra.mxu0 0.0
    %2145 = vmatpush.msra.mxu0 0.0
    %2146 = vmatpush.msra.mxu0 0.0
    %v2147 = vand.u32 %v2061, 4294901760
    %v2148 = vsub.f32 %v2061, %v2147
    %2149 = vmatpush.msra.mxu0 %v2148
    %v2150 = vand.u32 %v2060, 4294901760
    %v2151 = vsub.f32 %v2060, %v2150
    %2152 = vmatpush.msra.mxu0 %v2151
    %v2153 = vand.u32 %v2059, 4294901760
    %v2154 = vsub.f32 %v2059, %v2153
    %2155 = vmatpush.msra.mxu0 %v2154
    %v2156 = vand.u32 %v2058, 4294901760
    %v2157 = vsub.f32 %v2058, %v2156
    %2158 = vmatpush.msra.mxu0 %v2157
    %v2159 = vand.u32 %v2063, 4294901760
    %v2160 = vsub.f32 %v2063, %v2159
    %2161 = vmatmul.f32.gmra.mxu0 %v2160
    %v2162 = vpop.f32.mrf.mxu0
    %v2163 = vadd.f32 %v2133, %v2162
    %2164 = vdwg.mxu0
    %2165 = vmatpush.msra.mxu0 0.0
    %2166 = vmatpush.msra.mxu0 0.0
    %2167 = vmatpush.msra.mxu0 0.0
    %2168 = vmatpush.msra.mxu0 0.0
    %2169 = vmatpush.msra.mxu0 0.0
    %2170 = vmatpush.msra.mxu0 0.0
    %2171 = vmatpush.msra.mxu0 0.0
    %2172 = vmatpush.msra.mxu0 0.0
    %2173 = vmatpush.msra.mxu0 0.0
    %2174 = vmatpush.msra.mxu0 0.0
    %2175 = vmatpush.msra.mxu0 0.0
    %2176 = vmatpush.msra.mxu0 0.0
    %v2177 = vand.u32 %v2061, 4294901760
    %2178 = vmatpush.msra.mxu0 %v2177
    %v2179 = vand.u32 %v2060, 4294901760
    %2180 = vmatpush.msra.mxu0 %v2179
    %v2181 = vand.u32 %v2059, 4294901760
    %2182 = vmatpush.msra.mxu0 %v2181
    %v2183 = vand.u32 %v2058, 4294901760
    %2184 = vmatpush.msra.mxu0 %v2183
    %v2185 = vand.u32 %v2063, 4294901760
    %v2186 = vsub.f32 %v2063, %v2185
    %v2187 = vand.u32 %v2186, 4294901760
    %2188 = vmatmul.f32.gmra.mxu0 %v2187
    %v2189 = vpop.f32.mrf.mxu0
    %v2190 = vadd.f32 %v2163, %v2189
    %2191 = vdwg.mxu0
    %2192 = vmatpush.msra.mxu0 0.0
    %2193 = vmatpush.msra.mxu0 0.0
    %2194 = vmatpush.msra.mxu0 0.0
    %2195 = vmatpush.msra.mxu0 0.0
    %2196 = vmatpush.msra.mxu0 0.0
    %2197 = vmatpush.msra.mxu0 0.0
    %2198 = vmatpush.msra.mxu0 0.0
    %2199 = vmatpush.msra.mxu0 0.0
    %2200 = vmatpush.msra.mxu0 0.0
    %2201 = vmatpush.msra.mxu0 0.0
    %2202 = vmatpush.msra.mxu0 0.0
    %2203 = vmatpush.msra.mxu0 0.0
    %v2204 = vand.u32 %v2061, 4294901760
    %v2205 = vsub.f32 %v2061, %v2204
    %v2206 = vand.u32 %v2205, 4294901760
    %2207 = vmatpush.msra.mxu0 %v2206
    %v2208 = vand.u32 %v2060, 4294901760
    %v2209 = vsub.f32 %v2060, %v2208
    %v2210 = vand.u32 %v2209, 4294901760
    %2211 = vmatpush.msra.mxu0 %v2210
    %v2212 = vand.u32 %v2059, 4294901760
    %v2213 = vsub.f32 %v2059, %v2212
    %v2214 = vand.u32 %v2213, 4294901760
    %2215 = vmatpush.msra.mxu0 %v2214
    %v2216 = vand.u32 %v2058, 4294901760
    %v2217 = vsub.f32 %v2058, %v2216
    %v2218 = vand.u32 %v2217, 4294901760
    %2219 = vmatpush.msra.mxu0 %v2218
    %v2220 = vand.u32 %v2063, 4294901760
    %2221 = vmatmul.f32.gmra.mxu0 %v2220
    %v2222 = vpop.f32.mrf.mxu0
    %v2223 = vadd.f32 %v2190, %v2222
    %2224 = vdwg.mxu0
    %2225 = vmatpush.msra.mxu0 0.0
    %2226 = vmatpush.msra.mxu0 0.0
    %2227 = vmatpush.msra.mxu0 0.0
    %2228 = vmatpush.msra.mxu0 0.0
    %2229 = vmatpush.msra.mxu0 0.0
    %2230 = vmatpush.msra.mxu0 0.0
    %2231 = vmatpush.msra.mxu0 0.0
    %2232 = vmatpush.msra.mxu0 0.0
    %2233 = vmatpush.msra.mxu0 0.0
    %2234 = vmatpush.msra.mxu0 0.0
    %2235 = vmatpush.msra.mxu0 0.0
    %2236 = vmatpush.msra.mxu0 0.0
    %v2237 = vand.u32 %v2061, 4294901760
    %2238 = vmatpush.msra.mxu0 %v2237
    %v2239 = vand.u32 %v2060, 4294901760
    %2240 = vmatpush.msra.mxu0 %v2239
    %v2241 = vand.u32 %v2059, 4294901760
    %2242 = vmatpush.msra.mxu0 %v2241
    %v2243 = vand.u32 %v2058, 4294901760
    %2244 = vmatpush.msra.mxu0 %v2243
    %v2245 = vand.u32 %v2063, 4294901760
    %2246 = vmatmul.f32.gmra.mxu0 %v2245
    %v2247 = vpop.f32.mrf.mxu0
    %v2248 = vadd.f32 %v2223, %v2247
    %2249 = vdwg.mxu0
    %v2250 = vsub.f32 0.0, %v2248
    %v2251 = vmul.f32 %v2250, 1.442695
    %v2252 = vpow.pop %v2251
    %v2253 = vadd.f32 %v2252, 1.0
    %v2254 = vrcp.pop %v2253
    %v2255 = vmul.f32 %v2253, %v2254
    %v2256 = vsub.f32 1.0, %v2255
    %v2257 = vmul.f32 %v2254, %v2256
    %v2258 = vadd.f32 %v2254, %v2257
    %vm2259 = vweird.f32 %v2253
    %vm2260 = vweird.f32 %v2254
    %vm2261 = vmor %vm2259, %vm2260
    %v2262 = vsel %vm2261, %v2254, %v2258
    %v2263 = vand.u32 2147483647, %v2253
    %vm2264 = vcmp.eq.f32.partialorder %v2263, 8.507059e+37
    %v2265 = vand.u32 %v2253, 2147483648
    %v2266 = vor.u32 1.1754944e-38, %v2265
    %v2267 = vsel %vm2264, %v2266, %v2262
    %2268 = vrot.lane.b32.xlu0 %v2052, 64
    %v2269 = vpop.permute.xlu0 %2268
    %v2271 = vmul.f32 %v2267, %v2269
    %2273 = vrot.lane.b32.xlu0 %v2271, 64
    %v2274 = vpop.permute.xlu0 %2273
    %v2276 = vadd.f32 %v2050, %v2274
    %2278 = vrot.lane.b32.xlu0 %v2276, 64
    %v2279 = vpop.permute.xlu0 %2278
    %2284 = vrot.lane.b32.xlu0 %v2058, 96
    %v2285 = vpop.permute.xlu0 %2284
    %2286 = vrot.lane.b32.xlu0 %v2059, 96
    %v2287 = vpop.permute.xlu0 %2286
    %2288 = vrot.lane.b32.xlu0 %v2060, 96
    %v2289 = vpop.permute.xlu0 %2288
    %2290 = vrot.lane.b32.xlu0 %v2061, 96
    %v2291 = vpop.permute.xlu0 %2290
    %2296 = vrot.lane.b32.xlu0 %v1175, 32
    %v2297 = vpop.permute.xlu0 %2296
    %v2299 = vsel %vm1675, %v2279, 0
    %2301 = vmatpush.msra.mxu0 0.0
    %2302 = vmatpush.msra.mxu0 0.0
    %2303 = vmatpush.msra.mxu0 0.0
    %2304 = vmatpush.msra.mxu0 0.0
    %2305 = vmatpush.msra.mxu0 0.0
    %2306 = vmatpush.msra.mxu0 0.0
    %2307 = vmatpush.msra.mxu0 0.0
    %2308 = vmatpush.msra.mxu0 0.0
    %2309 = vmatpush.msra.mxu0 0.0
    %2310 = vmatpush.msra.mxu0 0.0
    %2311 = vmatpush.msra.mxu0 0.0
    %2312 = vmatpush.msra.mxu0 0.0
    %v2313 = vand.u32 %v2291, 4294901760
    %2314 = vmatpush.msra.mxu0 %v2313
    %v2315 = vand.u32 %v2289, 4294901760
    %2316 = vmatpush.msra.mxu0 %v2315
    %v2317 = vand.u32 %v2287, 4294901760
    %2318 = vmatpush.msra.mxu0 %v2317
    %v2319 = vand.u32 %v2285, 4294901760
    %2320 = vmatpush.msra.mxu0 %v2319
    %v2321 = vand.u32 %v2299, 4294901760
    %v2322 = vsub.f32 %v2299, %v2321
    %v2323 = vand.u32 %v2322, 4294901760
    %v2324 = vsub.f32 %v2322, %v2323
    %v2325 = vand.u32 %v2324, 4294901760
    %2326 = vmatmul.f32.gmra.mxu0 %v2325
    %v2327 = vpop.f32.mrf.mxu0
    %v2328 = vadd.f32 %v2297, %v2327
    %2329 = vdwg.mxu0
    %2330 = vmatpush.msra.mxu0 0.0
    %2331 = vmatpush.msra.mxu0 0.0
    %2332 = vmatpush.msra.mxu0 0.0
    %2333 = vmatpush.msra.mxu0 0.0
    %2334 = vmatpush.msra.mxu0 0.0
    %2335 = vmatpush.msra.mxu0 0.0
    %2336 = vmatpush.msra.mxu0 0.0
    %2337 = vmatpush.msra.mxu0 0.0
    %2338 = vmatpush.msra.mxu0 0.0
    %2339 = vmatpush.msra.mxu0 0.0
    %2340 = vmatpush.msra.mxu0 0.0
    %2341 = vmatpush.msra.mxu0 0.0
    %v2342 = vand.u32 %v2291, 4294901760
    %v2343 = vsub.f32 %v2291, %v2342
    %v2344 = vand.u32 %v2343, 4294901760
    %v2345 = vsub.f32 %v2343, %v2344
    %v2346 = vand.u32 %v2345, 4294901760
    %2347 = vmatpush.msra.mxu0 %v2346
    %v2348 = vand.u32 %v2289, 4294901760
    %v2349 = vsub.f32 %v2289, %v2348
    %v2350 = vand.u32 %v2349, 4294901760
    %v2351 = vsub.f32 %v2349, %v2350
    %v2352 = vand.u32 %v2351, 4294901760
    %2353 = vmatpush.msra.mxu0 %v2352
    %v2354 = vand.u32 %v2287, 4294901760
    %v2355 = vsub.f32 %v2287, %v2354
    %v2356 = vand.u32 %v2355, 4294901760
    %v2357 = vsub.f32 %v2355, %v2356
    %v2358 = vand.u32 %v2357, 4294901760
    %2359 = vmatpush.msra.mxu0 %v2358
    %v2360 = vand.u32 %v2285, 4294901760
    %v2361 = vsub.f32 %v2285, %v2360
    %v2362 = vand.u32 %v2361, 4294901760
    %v2363 = vsub.f32 %v2361, %v2362
    %v2364 = vand.u32 %v2363, 4294901760
    %2365 = vmatpush.msra.mxu0 %v2364
    %v2366 = vand.u32 %v2299, 4294901760
    %2367 = vmatmul.f32.gmra.mxu0 %v2366
    %v2368 = vpop.f32.mrf.mxu0
    %v2369 = vadd.f32 %v2328, %v2368
    %2370 = vdwg.mxu0
    %2371 = vmatpush.msra.mxu0 0.0
    %2372 = vmatpush.msra.mxu0 0.0
    %2373 = vmatpush.msra.mxu0 0.0
    %2374 = vmatpush.msra.mxu0 0.0
    %2375 = vmatpush.msra.mxu0 0.0
    %2376 = vmatpush.msra.mxu0 0.0
    %2377 = vmatpush.msra.mxu0 0.0
    %2378 = vmatpush.msra.mxu0 0.0
    %2379 = vmatpush.msra.mxu0 0.0
    %2380 = vmatpush.msra.mxu0 0.0
    %2381 = vmatpush.msra.mxu0 0.0
    %2382 = vmatpush.msra.mxu0 0.0
    %v2383 = vand.u32 %v2291, 4294901760
    %v2384 = vsub.f32 %v2291, %v2383
    %2385 = vmatpush.msra.mxu0 %v2384
    %v2386 = vand.u32 %v2289, 4294901760
    %v2387 = vsub.f32 %v2289, %v2386
    %2388 = vmatpush.msra.mxu0 %v2387
    %v2389 = vand.u32 %v2287, 4294901760
    %v2390 = vsub.f32 %v2287, %v2389
    %2391 = vmatpush.msra.mxu0 %v2390
    %v2392 = vand.u32 %v2285, 4294901760
    %v2393 = vsub.f32 %v2285, %v2392
    %2394 = vmatpush.msra.mxu0 %v2393
    %v2395 = vand.u32 %v2299, 4294901760
    %v2396 = vsub.f32 %v2299, %v2395
    %2397 = vmatmul.f32.gmra.mxu0 %v2396
    %v2398 = vpop.f32.mrf.mxu0
    %v2399 = vadd.f32 %v2369, %v2398
    %2400 = vdwg.mxu0
    %2401 = vmatpush.msra.mxu0 0.0
    %2402 = vmatpush.msra.mxu0 0.0
    %2403 = vmatpush.msra.mxu0 0.0
    %2404 = vmatpush.msra.mxu0 0.0
    %2405 = vmatpush.msra.mxu0 0.0
    %2406 = vmatpush.msra.mxu0 0.0
    %2407 = vmatpush.msra.mxu0 0.0
    %2408 = vmatpush.msra.mxu0 0.0
    %2409 = vmatpush.msra.mxu0 0.0
    %2410 = vmatpush.msra.mxu0 0.0
    %2411 = vmatpush.msra.mxu0 0.0
    %2412 = vmatpush.msra.mxu0 0.0
    %v2413 = vand.u32 %v2291, 4294901760
    %2414 = vmatpush.msra.mxu0 %v2413
    %v2415 = vand.u32 %v2289, 4294901760
    %2416 = vmatpush.msra.mxu0 %v2415
    %v2417 = vand.u32 %v2287, 4294901760
    %2418 = vmatpush.msra.mxu0 %v2417
    %v2419 = vand.u32 %v2285, 4294901760
    %2420 = vmatpush.msra.mxu0 %v2419
    %v2421 = vand.u32 %v2299, 4294901760
    %v2422 = vsub.f32 %v2299, %v2421
    %v2423 = vand.u32 %v2422, 4294901760
    %2424 = vmatmul.f32.gmra.mxu0 %v2423
    %v2425 = vpop.f32.mrf.mxu0
    %v2426 = vadd.f32 %v2399, %v2425
    %2427 = vdwg.mxu0
    %2428 = vmatpush.msra.mxu0 0.0
    %2429 = vmatpush.msra.mxu0 0.0
    %2430 = vmatpush.msra.mxu0 0.0
    %2431 = vmatpush.msra.mxu0 0.0
    %2432 = vmatpush.msra.mxu0 0.0
    %2433 = vmatpush.msra.mxu0 0.0
    %2434 = vmatpush.msra.mxu0 0.0
    %2435 = vmatpush.msra.mxu0 0.0
    %2436 = vmatpush.msra.mxu0 0.0
    %2437 = vmatpush.msra.mxu0 0.0
    %2438 = vmatpush.msra.mxu0 0.0
    %2439 = vmatpush.msra.mxu0 0.0
    %v2440 = vand.u32 %v2291, 4294901760
    %v2441 = vsub.f32 %v2291, %v2440
    %v2442 = vand.u32 %v2441, 4294901760
    %2443 = vmatpush.msra.mxu0 %v2442
    %v2444 = vand.u32 %v2289, 4294901760
    %v2445 = vsub.f32 %v2289, %v2444
    %v2446 = vand.u32 %v2445, 4294901760
    %2447 = vmatpush.msra.mxu0 %v2446
    %v2448 = vand.u32 %v2287, 4294901760
    %v2449 = vsub.f32 %v2287, %v2448
    %v2450 = vand.u32 %v2449, 4294901760
    %2451 = vmatpush.msra.mxu0 %v2450
    %v2452 = vand.u32 %v2285, 4294901760
    %v2453 = vsub.f32 %v2285, %v2452
    %v2454 = vand.u32 %v2453, 4294901760
    %2455 = vmatpush.msra.mxu0 %v2454
    %v2456 = vand.u32 %v2299, 4294901760
    %2457 = vmatmul.f32.gmra.mxu0 %v2456
    %v2458 = vpop.f32.mrf.mxu0
    %v2459 = vadd.f32 %v2426, %v2458
    %2460 = vdwg.mxu0
    %2461 = vmatpush.msra.mxu0 0.0
    %2462 = vmatpush.msra.mxu0 0.0
    %2463 = vmatpush.msra.mxu0 0.0
    %2464 = vmatpush.msra.mxu0 0.0
    %2465 = vmatpush.msra.mxu0 0.0
    %2466 = vmatpush.msra.mxu0 0.0
    %2467 = vmatpush.msra.mxu0 0.0
    %2468 = vmatpush.msra.mxu0 0.0
    %2469 = vmatpush.msra.mxu0 0.0
    %2470 = vmatpush.msra.mxu0 0.0
    %2471 = vmatpush.msra.mxu0 0.0
    %2472 = vmatpush.msra.mxu0 0.0
    %v2473 = vand.u32 %v2291, 4294901760
    %2474 = vmatpush.msra.mxu0 %v2473
    %v2475 = vand.u32 %v2289, 4294901760
    %2476 = vmatpush.msra.mxu0 %v2475
    %v2477 = vand.u32 %v2287, 4294901760
    %2478 = vmatpush.msra.mxu0 %v2477
    %v2479 = vand.u32 %v2285, 4294901760
    %2480 = vmatpush.msra.mxu0 %v2479
    %v2481 = vand.u32 %v2299, 4294901760
    %2482 = vmatmul.f32.gmra.mxu0 %v2481
    %v2483 = vpop.f32.mrf.mxu0
    %v2484 = vadd.f32 %v2459, %v2483
    %2485 = vdwg.mxu0
    %v2486 = vmax.f32 %v2484, 0.0
    %v2487 = vld [vmem:[%s7 + $0x2] sm:$0x1]
    %v2489 = vperm.slane %v2487, 0
    %2491 = vrot.lane.b32.xlu0 %v2058, 64
    %v2492 = vpop.permute.xlu0 %2491
    %2493 = vrot.lane.b32.xlu0 %v2059, 64
    %v2494 = vpop.permute.xlu0 %2493
    %2495 = vrot.lane.b32.xlu0 %v2060, 64
    %v2496 = vpop.permute.xlu0 %2495
    %2497 = vrot.lane.b32.xlu0 %v2061, 64
    %v2498 = vpop.permute.xlu0 %2497
    %v2504 = vsel %vm1675, %v1016, 0
    %2506 = vmatpush.msra.mxu0 0.0
    %2507 = vmatpush.msra.mxu0 0.0
    %2508 = vmatpush.msra.mxu0 0.0
    %2509 = vmatpush.msra.mxu0 0.0
    %2510 = vmatpush.msra.mxu0 0.0
    %2511 = vmatpush.msra.mxu0 0.0
    %2512 = vmatpush.msra.mxu0 0.0
    %2513 = vmatpush.msra.mxu0 0.0
    %2514 = vmatpush.msra.mxu0 0.0
    %2515 = vmatpush.msra.mxu0 0.0
    %2516 = vmatpush.msra.mxu0 0.0
    %2517 = vmatpush.msra.mxu0 0.0
    %v2518 = vand.u32 %v2498, 4294901760
    %2519 = vmatpush.msra.mxu0 %v2518
    %v2520 = vand.u32 %v2496, 4294901760
    %2521 = vmatpush.msra.mxu0 %v2520
    %v2522 = vand.u32 %v2494, 4294901760
    %2523 = vmatpush.msra.mxu0 %v2522
    %v2524 = vand.u32 %v2492, 4294901760
    %2525 = vmatpush.msra.mxu0 %v2524
    %v2526 = vand.u32 %v2504, 4294901760
    %v2527 = vsub.f32 %v2504, %v2526
    %v2528 = vand.u32 %v2527, 4294901760
    %v2529 = vsub.f32 %v2527, %v2528
    %v2530 = vand.u32 %v2529, 4294901760
    %2531 = vmatmul.f32.gmra.mxu0 %v2530
    %v2532 = vpop.f32.mrf.mxu0
    %v2533 = vadd.f32 %v2489, %v2532
    %2534 = vdwg.mxu0
    %2535 = vmatpush.msra.mxu0 0.0
    %2536 = vmatpush.msra.mxu0 0.0
    %2537 = vmatpush.msra.mxu0 0.0
    %2538 = vmatpush.msra.mxu0 0.0
    %2539 = vmatpush.msra.mxu0 0.0
    %2540 = vmatpush.msra.mxu0 0.0
    %2541 = vmatpush.msra.mxu0 0.0
    %2542 = vmatpush.msra.mxu0 0.0
    %2543 = vmatpush.msra.mxu0 0.0
    %2544 = vmatpush.msra.mxu0 0.0
    %2545 = vmatpush.msra.mxu0 0.0
    %2546 = vmatpush.msra.mxu0 0.0
    %v2547 = vand.u32 %v2498, 4294901760
    %v2548 = vsub.f32 %v2498, %v2547
    %v2549 = vand.u32 %v2548, 4294901760
    %v2550 = vsub.f32 %v2548, %v2549
    %v2551 = vand.u32 %v2550, 4294901760
    %2552 = vmatpush.msra.mxu0 %v2551
    %v2553 = vand.u32 %v2496, 4294901760
    %v2554 = vsub.f32 %v2496, %v2553
    %v2555 = vand.u32 %v2554, 4294901760
    %v2556 = vsub.f32 %v2554, %v2555
    %v2557 = vand.u32 %v2556, 4294901760
    %2558 = vmatpush.msra.mxu0 %v2557
    %v2559 = vand.u32 %v2494, 4294901760
    %v2560 = vsub.f32 %v2494, %v2559
    %v2561 = vand.u32 %v2560, 4294901760
    %v2562 = vsub.f32 %v2560, %v2561
    %v2563 = vand.u32 %v2562, 4294901760
    %2564 = vmatpush.msra.mxu0 %v2563
    %v2565 = vand.u32 %v2492, 4294901760
    %v2566 = vsub.f32 %v2492, %v2565
    %v2567 = vand.u32 %v2566, 4294901760
    %v2568 = vsub.f32 %v2566, %v2567
    %v2569 = vand.u32 %v2568, 4294901760
    %2570 = vmatpush.msra.mxu0 %v2569
    %v2571 = vand.u32 %v2504, 4294901760
    %2572 = vmatmul.f32.gmra.mxu0 %v2571
    %v2573 = vpop.f32.mrf.mxu0
    %v2574 = vadd.f32 %v2533, %v2573
    %2575 = vdwg.mxu0
    %2576 = vmatpush.msra.mxu0 0.0
    %2577 = vmatpush.msra.mxu0 0.0
    %2578 = vmatpush.msra.mxu0 0.0
    %2579 = vmatpush.msra.mxu0 0.0
    %2580 = vmatpush.msra.mxu0 0.0
    %2581 = vmatpush.msra.mxu0 0.0
    %2582 = vmatpush.msra.mxu0 0.0
    %2583 = vmatpush.msra.mxu0 0.0
    %2584 = vmatpush.msra.mxu0 0.0
    %2585 = vmatpush.msra.mxu0 0.0
    %2586 = vmatpush.msra.mxu0 0.0
    %2587 = vmatpush.msra.mxu0 0.0
    %v2588 = vand.u32 %v2498, 4294901760
    %v2589 = vsub.f32 %v2498, %v2588
    %2590 = vmatpush.msra.mxu0 %v2589
    %v2591 = vand.u32 %v2496, 4294901760
    %v2592 = vsub.f32 %v2496, %v2591
    %2593 = vmatpush.msra.mxu0 %v2592
    %v2594 = vand.u32 %v2494, 4294901760
    %v2595 = vsub.f32 %v2494, %v2594
    %2596 = vmatpush.msra.mxu0 %v2595
    %v2597 = vand.u32 %v2492, 4294901760
    %v2598 = vsub.f32 %v2492, %v2597
    %2599 = vmatpush.msra.mxu0 %v2598
    %v2600 = vand.u32 %v2504, 4294901760
    %v2601 = vsub.f32 %v2504, %v2600
    %2602 = vmatmul.f32.gmra.mxu0 %v2601
    %v2603 = vpop.f32.mrf.mxu0
    %v2604 = vadd.f32 %v2574, %v2603
    %2605 = vdwg.mxu0
    %2606 = vmatpush.msra.mxu0 0.0
    %2607 = vmatpush.msra.mxu0 0.0
    %2608 = vmatpush.msra.mxu0 0.0
    %2609 = vmatpush.msra.mxu0 0.0
    %2610 = vmatpush.msra.mxu0 0.0
    %2611 = vmatpush.msra.mxu0 0.0
    %2612 = vmatpush.msra.mxu0 0.0
    %2613 = vmatpush.msra.mxu0 0.0
    %2614 = vmatpush.msra.mxu0 0.0
    %2615 = vmatpush.msra.mxu0 0.0
    %2616 = vmatpush.msra.mxu0 0.0
    %2617 = vmatpush.msra.mxu0 0.0
    %v2618 = vand.u32 %v2498, 4294901760
    %2619 = vmatpush.msra.mxu0 %v2618
    %v2620 = vand.u32 %v2496, 4294901760
    %2621 = vmatpush.msra.mxu0 %v2620
    %v2622 = vand.u32 %v2494, 4294901760
    %2623 = vmatpush.msra.mxu0 %v2622
    %v2624 = vand.u32 %v2492, 4294901760
    %2625 = vmatpush.msra.mxu0 %v2624
    %v2626 = vand.u32 %v2504, 4294901760
    %v2627 = vsub.f32 %v2504, %v2626
    %v2628 = vand.u32 %v2627, 4294901760
    %2629 = vmatmul.f32.gmra.mxu0 %v2628
    %v2630 = vpop.f32.mrf.mxu0
    %v2631 = vadd.f32 %v2604, %v2630
    %2632 = vdwg.mxu0
    %2633 = vmatpush.msra.mxu0 0.0
    %2634 = vmatpush.msra.mxu0 0.0
    %2635 = vmatpush.msra.mxu0 0.0
    %2636 = vmatpush.msra.mxu0 0.0
    %2637 = vmatpush.msra.mxu0 0.0
    %2638 = vmatpush.msra.mxu0 0.0
    %2639 = vmatpush.msra.mxu0 0.0
    %2640 = vmatpush.msra.mxu0 0.0
    %2641 = vmatpush.msra.mxu0 0.0
    %2642 = vmatpush.msra.mxu0 0.0
    %2643 = vmatpush.msra.mxu0 0.0
    %2644 = vmatpush.msra.mxu0 0.0
    %v2645 = vand.u32 %v2498, 4294901760
    %v2646 = vsub.f32 %v2498, %v2645
    %v2647 = vand.u32 %v2646, 4294901760
    %2648 = vmatpush.msra.mxu0 %v2647
    %v2649 = vand.u32 %v2496, 4294901760
    %v2650 = vsub.f32 %v2496, %v2649
    %v2651 = vand.u32 %v2650, 4294901760
    %2652 = vmatpush.msra.mxu0 %v2651
    %v2653 = vand.u32 %v2494, 4294901760
    %v2654 = vsub.f32 %v2494, %v2653
    %v2655 = vand.u32 %v2654, 4294901760
    %2656 = vmatpush.msra.mxu0 %v2655
    %v2657 = vand.u32 %v2492, 4294901760
    %v2658 = vsub.f32 %v2492, %v2657
    %v2659 = vand.u32 %v2658, 4294901760
    %2660 = vmatpush.msra.mxu0 %v2659
    %v2661 = vand.u32 %v2504, 4294901760
    %2662 = vmatmul.f32.gmra.mxu0 %v2661
    %v2663 = vpop.f32.mrf.mxu0
    %v2664 = vadd.f32 %v2631, %v2663
    %2665 = vdwg.mxu0
    %2666 = vmatpush.msra.mxu0 0.0
    %2667 = vmatpush.msra.mxu0 0.0
    %2668 = vmatpush.msra.mxu0 0.0
    %2669 = vmatpush.msra.mxu0 0.0
    %2670 = vmatpush.msra.mxu0 0.0
    %2671 = vmatpush.msra.mxu0 0.0
    %2672 = vmatpush.msra.mxu0 0.0
    %2673 = vmatpush.msra.mxu0 0.0
    %2674 = vmatpush.msra.mxu0 0.0
    %2675 = vmatpush.msra.mxu0 0.0
    %2676 = vmatpush.msra.mxu0 0.0
    %2677 = vmatpush.msra.mxu0 0.0
    %v2678 = vand.u32 %v2498, 4294901760
    %2679 = vmatpush.msra.mxu0 %v2678
    %v2680 = vand.u32 %v2496, 4294901760
    %2681 = vmatpush.msra.mxu0 %v2680
    %v2682 = vand.u32 %v2494, 4294901760
    %2683 = vmatpush.msra.mxu0 %v2682
    %v2684 = vand.u32 %v2492, 4294901760
    %2685 = vmatpush.msra.mxu0 %v2684
    %v2686 = vand.u32 %v2504, 4294901760
    %2687 = vmatmul.f32.gmra.mxu0 %v2686
    %v2688 = vpop.f32.mrf.mxu0
    %v2689 = vadd.f32 %v2664, %v2688
    %2690 = vdwg.mxu0
    %v2691 = vmax.f32 %v2689, 0.0
    %v2692 = vadd.f32 %v2486, %v2691
    %2693 = vrot.lane.b32.xlu0 %v2058, 32
    %v2694 = vpop.permute.xlu0 %2693
    %2695 = vrot.lane.b32.xlu0 %v2059, 32
    %v2696 = vpop.permute.xlu0 %2695
    %2697 = vrot.lane.b32.xlu0 %v2060, 32
    %v2698 = vpop.permute.xlu0 %2697
    %2699 = vrot.lane.b32.xlu0 %v2061, 32
    %v2700 = vpop.permute.xlu0 %2699
    %2705 = vrot.lane.b32.xlu0 %v2489, 96
    %v2706 = vpop.permute.xlu0 %2705
    %v2709 = vsel %vm1675, %v2692, 0
    %2711 = vmatpush.msra.mxu0 0.0
    %2712 = vmatpush.msra.mxu0 0.0
    %2713 = vmatpush.msra.mxu0 0.0
    %2714 = vmatpush.msra.mxu0 0.0
    %2715 = vmatpush.msra.mxu0 0.0
    %2716 = vmatpush.msra.mxu0 0.0
    %2717 = vmatpush.msra.mxu0 0.0
    %2718 = vmatpush.msra.mxu0 0.0
    %2719 = vmatpush.msra.mxu0 0.0
    %2720 = vmatpush.msra.mxu0 0.0
    %2721 = vmatpush.msra.mxu0 0.0
    %2722 = vmatpush.msra.mxu0 0.0
    %v2723 = vand.u32 %v2700, 4294901760
    %2724 = vmatpush.msra.mxu0 %v2723
    %v2725 = vand.u32 %v2698, 4294901760
    %2726 = vmatpush.msra.mxu0 %v2725
    %v2727 = vand.u32 %v2696, 4294901760
    %2728 = vmatpush.msra.mxu0 %v2727
    %v2729 = vand.u32 %v2694, 4294901760
    %2730 = vmatpush.msra.mxu0 %v2729
    %v2731 = vand.u32 %v2709, 4294901760
    %v2732 = vsub.f32 %v2709, %v2731
    %v2733 = vand.u32 %v2732, 4294901760
    %v2734 = vsub.f32 %v2732, %v2733
    %v2735 = vand.u32 %v2734, 4294901760
    %2736 = vmatmul.f32.gmra.mxu0 %v2735
    %v2737 = vpop.f32.mrf.mxu0
    %v2738 = vadd.f32 %v2706, %v2737
    %2739 = vdwg.mxu0
    %2740 = vmatpush.msra.mxu0 0.0
    %2741 = vmatpush.msra.mxu0 0.0
    %2742 = vmatpush.msra.mxu0 0.0
    %2743 = vmatpush.msra.mxu0 0.0
    %2744 = vmatpush.msra.mxu0 0.0
    %2745 = vmatpush.msra.mxu0 0.0
    %2746 = vmatpush.msra.mxu0 0.0
    %2747 = vmatpush.msra.mxu0 0.0
    %2748 = vmatpush.msra.mxu0 0.0
    %2749 = vmatpush.msra.mxu0 0.0
    %2750 = vmatpush.msra.mxu0 0.0
    %2751 = vmatpush.msra.mxu0 0.0
    %v2752 = vand.u32 %v2700, 4294901760
    %v2753 = vsub.f32 %v2700, %v2752
    %v2754 = vand.u32 %v2753, 4294901760
    %v2755 = vsub.f32 %v2753, %v2754
    %v2756 = vand.u32 %v2755, 4294901760
    %2757 = vmatpush.msra.mxu0 %v2756
    %v2758 = vand.u32 %v2698, 4294901760
    %v2759 = vsub.f32 %v2698, %v2758
    %v2760 = vand.u32 %v2759, 4294901760
    %v2761 = vsub.f32 %v2759, %v2760
    %v2762 = vand.u32 %v2761, 4294901760
    %2763 = vmatpush.msra.mxu0 %v2762
    %v2764 = vand.u32 %v2696, 4294901760
    %v2765 = vsub.f32 %v2696, %v2764
    %v2766 = vand.u32 %v2765, 4294901760
    %v2767 = vsub.f32 %v2765, %v2766
    %v2768 = vand.u32 %v2767, 4294901760
    %2769 = vmatpush.msra.mxu0 %v2768
    %v2770 = vand.u32 %v2694, 4294901760
    %v2771 = vsub.f32 %v2694, %v2770
    %v2772 = vand.u32 %v2771, 4294901760
    %v2773 = vsub.f32 %v2771, %v2772
    %v2774 = vand.u32 %v2773, 4294901760
    %2775 = vmatpush.msra.mxu0 %v2774
    %v2776 = vand.u32 %v2709, 4294901760
    %2777 = vmatmul.f32.gmra.mxu0 %v2776
    %v2778 = vpop.f32.mrf.mxu0
    %v2779 = vadd.f32 %v2738, %v2778
    %2780 = vdwg.mxu0
    %2781 = vmatpush.msra.mxu0 0.0
    %2782 = vmatpush.msra.mxu0 0.0
    %2783 = vmatpush.msra.mxu0 0.0
    %2784 = vmatpush.msra.mxu0 0.0
    %2785 = vmatpush.msra.mxu0 0.0
    %2786 = vmatpush.msra.mxu0 0.0
    %2787 = vmatpush.msra.mxu0 0.0
    %2788 = vmatpush.msra.mxu0 0.0
    %2789 = vmatpush.msra.mxu0 0.0
    %2790 = vmatpush.msra.mxu0 0.0
    %2791 = vmatpush.msra.mxu0 0.0
    %2792 = vmatpush.msra.mxu0 0.0
    %v2793 = vand.u32 %v2700, 4294901760
    %v2794 = vsub.f32 %v2700, %v2793
    %2795 = vmatpush.msra.mxu0 %v2794
    %v2796 = vand.u32 %v2698, 4294901760
    %v2797 = vsub.f32 %v2698, %v2796
    %2798 = vmatpush.msra.mxu0 %v2797
    %v2799 = vand.u32 %v2696, 4294901760
    %v2800 = vsub.f32 %v2696, %v2799
    %2801 = vmatpush.msra.mxu0 %v2800
    %v2802 = vand.u32 %v2694, 4294901760
    %v2803 = vsub.f32 %v2694, %v2802
    %2804 = vmatpush.msra.mxu0 %v2803
    %v2805 = vand.u32 %v2709, 4294901760
    %v2806 = vsub.f32 %v2709, %v2805
    %2807 = vmatmul.f32.gmra.mxu0 %v2806
    %v2808 = vpop.f32.mrf.mxu0
    %v2809 = vadd.f32 %v2779, %v2808
    %2810 = vdwg.mxu0
    %2811 = vmatpush.msra.mxu0 0.0
    %2812 = vmatpush.msra.mxu0 0.0
    %2813 = vmatpush.msra.mxu0 0.0
    %2814 = vmatpush.msra.mxu0 0.0
    %2815 = vmatpush.msra.mxu0 0.0
    %2816 = vmatpush.msra.mxu0 0.0
    %2817 = vmatpush.msra.mxu0 0.0
    %2818 = vmatpush.msra.mxu0 0.0
    %2819 = vmatpush.msra.mxu0 0.0
    %2820 = vmatpush.msra.mxu0 0.0
    %2821 = vmatpush.msra.mxu0 0.0
    %2822 = vmatpush.msra.mxu0 0.0
    %v2823 = vand.u32 %v2700, 4294901760
    %2824 = vmatpush.msra.mxu0 %v2823
    %v2825 = vand.u32 %v2698, 4294901760
    %2826 = vmatpush.msra.mxu0 %v2825
    %v2827 = vand.u32 %v2696, 4294901760
    %2828 = vmatpush.msra.mxu0 %v2827
    %v2829 = vand.u32 %v2694, 4294901760
    %2830 = vmatpush.msra.mxu0 %v2829
    %v2831 = vand.u32 %v2709, 4294901760
    %v2832 = vsub.f32 %v2709, %v2831
    %v2833 = vand.u32 %v2832, 4294901760
    %2834 = vmatmul.f32.gmra.mxu0 %v2833
    %v2835 = vpop.f32.mrf.mxu0
    %v2836 = vadd.f32 %v2809, %v2835
    %2837 = vdwg.mxu0
    %2838 = vmatpush.msra.mxu0 0.0
    %2839 = vmatpush.msra.mxu0 0.0
    %2840 = vmatpush.msra.mxu0 0.0
    %2841 = vmatpush.msra.mxu0 0.0
    %2842 = vmatpush.msra.mxu0 0.0
    %2843 = vmatpush.msra.mxu0 0.0
    %2844 = vmatpush.msra.mxu0 0.0
    %2845 = vmatpush.msra.mxu0 0.0
    %2846 = vmatpush.msra.mxu0 0.0
    %2847 = vmatpush.msra.mxu0 0.0
    %2848 = vmatpush.msra.mxu0 0.0
    %2849 = vmatpush.msra.mxu0 0.0
    %v2850 = vand.u32 %v2700, 4294901760
    %v2851 = vsub.f32 %v2700, %v2850
    %v2852 = vand.u32 %v2851, 4294901760
    %2853 = vmatpush.msra.mxu0 %v2852
    %v2854 = vand.u32 %v2698, 4294901760
    %v2855 = vsub.f32 %v2698, %v2854
    %v2856 = vand.u32 %v2855, 4294901760
    %2857 = vmatpush.msra.mxu0 %v2856
    %v2858 = vand.u32 %v2696, 4294901760
    %v2859 = vsub.f32 %v2696, %v2858
    %v2860 = vand.u32 %v2859, 4294901760
    %2861 = vmatpush.msra.mxu0 %v2860
    %v2862 = vand.u32 %v2694, 4294901760
    %v2863 = vsub.f32 %v2694, %v2862
    %v2864 = vand.u32 %v2863, 4294901760
    %2865 = vmatpush.msra.mxu0 %v2864
    %v2866 = vand.u32 %v2709, 4294901760
    %2867 = vmatmul.f32.gmra.mxu0 %v2866
    %v2868 = vpop.f32.mrf.mxu0
    %v2869 = vadd.f32 %v2836, %v2868
    %2870 = vdwg.mxu0
    %2871 = vmatpush.msra.mxu0 0.0
    %2872 = vmatpush.msra.mxu0 0.0
    %2873 = vmatpush.msra.mxu0 0.0
    %2874 = vmatpush.msra.mxu0 0.0
    %2875 = vmatpush.msra.mxu0 0.0
    %2876 = vmatpush.msra.mxu0 0.0
    %2877 = vmatpush.msra.mxu0 0.0
    %2878 = vmatpush.msra.mxu0 0.0
    %2879 = vmatpush.msra.mxu0 0.0
    %2880 = vmatpush.msra.mxu0 0.0
    %2881 = vmatpush.msra.mxu0 0.0
    %2882 = vmatpush.msra.mxu0 0.0
    %v2883 = vand.u32 %v2700, 4294901760
    %2884 = vmatpush.msra.mxu0 %v2883
    %v2885 = vand.u32 %v2698, 4294901760
    %2886 = vmatpush.msra.mxu0 %v2885
    %v2887 = vand.u32 %v2696, 4294901760
    %2888 = vmatpush.msra.mxu0 %v2887
    %v2889 = vand.u32 %v2694, 4294901760
    %2890 = vmatpush.msra.mxu0 %v2889
    %v2891 = vand.u32 %v2709, 4294901760
    %2892 = vmatmul.f32.gmra.mxu0 %v2891
    %v2893 = vpop.f32.mrf.mxu0
    %v2894 = vadd.f32 %v2869, %v2893
    %2895 = vdwg.mxu0
    %v2896 = vmax.f32 %v2894, 0.0
    %v2897 = vld [vmem:[%s6 + $0x10] sm:$0xff]
    %v2898 = vld [vmem:[%s6 + $0x30] sm:$0xff]
    %v2899 = vld [vmem:[%s6 + $0x50] sm:$0xff]
    %v2900 = vld [vmem:[%s6 + $0x70] sm:$0xff]
    %2902 = vrot.lane.b32.xlu0 %v1862, 32
    %v2903 = vpop.permute.xlu0 %2902
    %v2906 = vsel %vm1675, %v2896, 0
    %2908 = vmatpush.msra.mxu0 0.0
    %2909 = vmatpush.msra.mxu0 0.0
    %2910 = vmatpush.msra.mxu0 0.0
    %2911 = vmatpush.msra.mxu0 0.0
    %2912 = vmatpush.msra.mxu0 0.0
    %2913 = vmatpush.msra.mxu0 0.0
    %2914 = vmatpush.msra.mxu0 0.0
    %2915 = vmatpush.msra.mxu0 0.0
    %2916 = vmatpush.msra.mxu0 0.0
    %2917 = vmatpush.msra.mxu0 0.0
    %2918 = vmatpush.msra.mxu0 0.0
    %2919 = vmatpush.msra.mxu0 0.0
    %v2920 = vand.u32 %v2900, 4294901760
    %2921 = vmatpush.msra.mxu0 %v2920
    %v2922 = vand.u32 %v2899, 4294901760
    %2923 = vmatpush.msra.mxu0 %v2922
    %v2924 = vand.u32 %v2898, 4294901760
    %2925 = vmatpush.msra.mxu0 %v2924
    %v2926 = vand.u32 %v2897, 4294901760
    %2927 = vmatpush.msra.mxu0 %v2926
    %v2928 = vand.u32 %v2906, 4294901760
    %v2929 = vsub.f32 %v2906, %v2928
    %v2930 = vand.u32 %v2929, 4294901760
    %v2931 = vsub.f32 %v2929, %v2930
    %v2932 = vand.u32 %v2931, 4294901760
    %2933 = vmatmul.f32.gmra.mxu0 %v2932
    %v2934 = vpop.f32.mrf.mxu0
    %v2935 = vadd.f32 %v2903, %v2934
    %2936 = vdwg.mxu0
    %2937 = vmatpush.msra.mxu0 0.0
    %2938 = vmatpush.msra.mxu0 0.0
    %2939 = vmatpush.msra.mxu0 0.0
    %2940 = vmatpush.msra.mxu0 0.0
    %2941 = vmatpush.msra.mxu0 0.0
    %2942 = vmatpush.msra.mxu0 0.0
    %2943 = vmatpush.msra.mxu0 0.0
    %2944 = vmatpush.msra.mxu0 0.0
    %2945 = vmatpush.msra.mxu0 0.0
    %2946 = vmatpush.msra.mxu0 0.0
    %2947 = vmatpush.msra.mxu0 0.0
    %2948 = vmatpush.msra.mxu0 0.0
    %v2949 = vand.u32 %v2900, 4294901760
    %v2950 = vsub.f32 %v2900, %v2949
    %v2951 = vand.u32 %v2950, 4294901760
    %v2952 = vsub.f32 %v2950, %v2951
    %v2953 = vand.u32 %v2952, 4294901760
    %2954 = vmatpush.msra.mxu0 %v2953
    %v2955 = vand.u32 %v2899, 4294901760
    %v2956 = vsub.f32 %v2899, %v2955
    %v2957 = vand.u32 %v2956, 4294901760
    %v2958 = vsub.f32 %v2956, %v2957
    %v2959 = vand.u32 %v2958, 4294901760
    %2960 = vmatpush.msra.mxu0 %v2959
    %v2961 = vand.u32 %v2898, 4294901760
    %v2962 = vsub.f32 %v2898, %v2961
    %v2963 = vand.u32 %v2962, 4294901760
    %v2964 = vsub.f32 %v2962, %v2963
    %v2965 = vand.u32 %v2964, 4294901760
    %2966 = vmatpush.msra.mxu0 %v2965
    %v2967 = vand.u32 %v2897, 4294901760
    %v2968 = vsub.f32 %v2897, %v2967
    %v2969 = vand.u32 %v2968, 4294901760
    %v2970 = vsub.f32 %v2968, %v2969
    %v2971 = vand.u32 %v2970, 4294901760
    %2972 = vmatpush.msra.mxu0 %v2971
    %v2973 = vand.u32 %v2906, 4294901760
    %2974 = vmatmul.f32.gmra.mxu0 %v2973
    %v2975 = vpop.f32.mrf.mxu0
    %v2976 = vadd.f32 %v2935, %v2975
    %2977 = vdwg.mxu0
    %2978 = vmatpush.msra.mxu0 0.0
    %2979 = vmatpush.msra.mxu0 0.0
    %2980 = vmatpush.msra.mxu0 0.0
    %2981 = vmatpush.msra.mxu0 0.0
    %2982 = vmatpush.msra.mxu0 0.0
    %2983 = vmatpush.msra.mxu0 0.0
    %2984 = vmatpush.msra.mxu0 0.0
    %2985 = vmatpush.msra.mxu0 0.0
    %2986 = vmatpush.msra.mxu0 0.0
    %2987 = vmatpush.msra.mxu0 0.0
    %2988 = vmatpush.msra.mxu0 0.0
    %2989 = vmatpush.msra.mxu0 0.0
    %v2990 = vand.u32 %v2900, 4294901760
    %v2991 = vsub.f32 %v2900, %v2990
    %2992 = vmatpush.msra.mxu0 %v2991
    %v2993 = vand.u32 %v2899, 4294901760
    %v2994 = vsub.f32 %v2899, %v2993
    %2995 = vmatpush.msra.mxu0 %v2994
    %v2996 = vand.u32 %v2898, 4294901760
    %v2997 = vsub.f32 %v2898, %v2996
    %2998 = vmatpush.msra.mxu0 %v2997
    %v2999 = vand.u32 %v2897, 4294901760
    %v3000 = vsub.f32 %v2897, %v2999
    %3001 = vmatpush.msra.mxu0 %v3000
    %v3002 = vand.u32 %v2906, 4294901760
    %v3003 = vsub.f32 %v2906, %v3002
    %3004 = vmatmul.f32.gmra.mxu0 %v3003
    %v3005 = vpop.f32.mrf.mxu0
    %v3006 = vadd.f32 %v2976, %v3005
    %3007 = vdwg.mxu0
    %3008 = vmatpush.msra.mxu0 0.0
    %3009 = vmatpush.msra.mxu0 0.0
    %3010 = vmatpush.msra.mxu0 0.0
    %3011 = vmatpush.msra.mxu0 0.0
    %3012 = vmatpush.msra.mxu0 0.0
    %3013 = vmatpush.msra.mxu0 0.0
    %3014 = vmatpush.msra.mxu0 0.0
    %3015 = vmatpush.msra.mxu0 0.0
    %3016 = vmatpush.msra.mxu0 0.0
    %3017 = vmatpush.msra.mxu0 0.0
    %3018 = vmatpush.msra.mxu0 0.0
    %3019 = vmatpush.msra.mxu0 0.0
    %v3020 = vand.u32 %v2900, 4294901760
    %3021 = vmatpush.msra.mxu0 %v3020
    %v3022 = vand.u32 %v2899, 4294901760
    %3023 = vmatpush.msra.mxu0 %v3022
    %v3024 = vand.u32 %v2898, 4294901760
    %3025 = vmatpush.msra.mxu0 %v3024
    %v3026 = vand.u32 %v2897, 4294901760
    %3027 = vmatpush.msra.mxu0 %v3026
    %v3028 = vand.u32 %v2906, 4294901760
    %v3029 = vsub.f32 %v2906, %v3028
    %v3030 = vand.u32 %v3029, 4294901760
    %3031 = vmatmul.f32.gmra.mxu0 %v3030
    %v3032 = vpop.f32.mrf.mxu0
    %v3033 = vadd.f32 %v3006, %v3032
    %3034 = vdwg.mxu0
    %3035 = vmatpush.msra.mxu0 0.0
    %3036 = vmatpush.msra.mxu0 0.0
    %3037 = vmatpush.msra.mxu0 0.0
    %3038 = vmatpush.msra.mxu0 0.0
    %3039 = vmatpush.msra.mxu0 0.0
    %3040 = vmatpush.msra.mxu0 0.0
    %3041 = vmatpush.msra.mxu0 0.0
    %3042 = vmatpush.msra.mxu0 0.0
    %3043 = vmatpush.msra.mxu0 0.0
    %3044 = vmatpush.msra.mxu0 0.0
    %3045 = vmatpush.msra.mxu0 0.0
    %3046 = vmatpush.msra.mxu0 0.0
    %v3047 = vand.u32 %v2900, 4294901760
    %v3048 = vsub.f32 %v2900, %v3047
    %v3049 = vand.u32 %v3048, 4294901760
    %3050 = vmatpush.msra.mxu0 %v3049
    %v3051 = vand.u32 %v2899, 4294901760
    %v3052 = vsub.f32 %v2899, %v3051
    %v3053 = vand.u32 %v3052, 4294901760
    %3054 = vmatpush.msra.mxu0 %v3053
    %v3055 = vand.u32 %v2898, 4294901760
    %v3056 = vsub.f32 %v2898, %v3055
    %v3057 = vand.u32 %v3056, 4294901760
    %3058 = vmatpush.msra.mxu0 %v3057
    %v3059 = vand.u32 %v2897, 4294901760
    %v3060 = vsub.f32 %v2897, %v3059
    %v3061 = vand.u32 %v3060, 4294901760
    %3062 = vmatpush.msra.mxu0 %v3061
    %v3063 = vand.u32 %v2906, 4294901760
    %3064 = vmatmul.f32.gmra.mxu0 %v3063
    %v3065 = vpop.f32.mrf.mxu0
    %v3066 = vadd.f32 %v3033, %v3065
    %3067 = vdwg.mxu0
    %3068 = vmatpush.msra.mxu0 0.0
    %3069 = vmatpush.msra.mxu0 0.0
    %3070 = vmatpush.msra.mxu0 0.0
    %3071 = vmatpush.msra.mxu0 0.0
    %3072 = vmatpush.msra.mxu0 0.0
    %3073 = vmatpush.msra.mxu0 0.0
    %3074 = vmatpush.msra.mxu0 0.0
    %3075 = vmatpush.msra.mxu0 0.0
    %3076 = vmatpush.msra.mxu0 0.0
    %3077 = vmatpush.msra.mxu0 0.0
    %3078 = vmatpush.msra.mxu0 0.0
    %3079 = vmatpush.msra.mxu0 0.0
    %v3080 = vand.u32 %v2900, 4294901760
    %3081 = vmatpush.msra.mxu0 %v3080
    %v3082 = vand.u32 %v2899, 4294901760
    %3083 = vmatpush.msra.mxu0 %v3082
    %v3084 = vand.u32 %v2898, 4294901760
    %3085 = vmatpush.msra.mxu0 %v3084
    %v3086 = vand.u32 %v2897, 4294901760
    %3087 = vmatpush.msra.mxu0 %v3086
    %v3088 = vand.u32 %v2906, 4294901760
    %3089 = vmatmul.f32.gmra.mxu0 %v3088
    %v3090 = vpop.f32.mrf.mxu0
    %v3091 = vadd.f32 %v3066, %v3090
    %3092 = vdwg.mxu0
    %3093 = vrot.lane.b32.xlu0 %v2489, 64
    %v3094 = vpop.permute.xlu0 %3093
    %v3096 = vadd.f32 %v3091, %v3094
    %v3097 = vmax.f32 %v3096, 0.0
    %v3098 = vld [vmem:[%s6 + $0x18] sm:$0xff]
    %v3099 = vld [vmem:[%s6 + $0x38] sm:$0xff]
    %v3100 = vld [vmem:[%s6 + $0x58] sm:$0xff]
    %v3101 = vld [vmem:[%s6 + $0x78] sm:$0xff]
    %v3102 = vld [vmem:[%s7 + $0x3] sm:$0x1]
    %v3104 = vperm.slane %v3102, 0
    %v3107 = vsel %vm1675, %v3097, 0
    %3109 = vmatpush.msra.mxu0 0.0
    %3110 = vmatpush.msra.mxu0 0.0
    %3111 = vmatpush.msra.mxu0 0.0
    %3112 = vmatpush.msra.mxu0 0.0
    %3113 = vmatpush.msra.mxu0 0.0
    %3114 = vmatpush.msra.mxu0 0.0
    %3115 = vmatpush.msra.mxu0 0.0
    %3116 = vmatpush.msra.mxu0 0.0
    %3117 = vmatpush.msra.mxu0 0.0
    %3118 = vmatpush.msra.mxu0 0.0
    %3119 = vmatpush.msra.mxu0 0.0
    %3120 = vmatpush.msra.mxu0 0.0
    %v3121 = vand.u32 %v3101, 4294901760
    %3122 = vmatpush.msra.mxu0 %v3121
    %v3123 = vand.u32 %v3100, 4294901760
    %3124 = vmatpush.msra.mxu0 %v3123
    %v3125 = vand.u32 %v3099, 4294901760
    %3126 = vmatpush.msra.mxu0 %v3125
    %v3127 = vand.u32 %v3098, 4294901760
    %3128 = vmatpush.msra.mxu0 %v3127
    %v3129 = vand.u32 %v3107, 4294901760
    %v3130 = vsub.f32 %v3107, %v3129
    %v3131 = vand.u32 %v3130, 4294901760
    %v3132 = vsub.f32 %v3130, %v3131
    %v3133 = vand.u32 %v3132, 4294901760
    %3134 = vmatmul.f32.gmra.mxu0 %v3133
    %v3135 = vpop.f32.mrf.mxu0
    %v3136 = vadd.f32 %v3104, %v3135
    %3137 = vdwg.mxu0
    %3138 = vmatpush.msra.mxu0 0.0
    %3139 = vmatpush.msra.mxu0 0.0
    %3140 = vmatpush.msra.mxu0 0.0
    %3141 = vmatpush.msra.mxu0 0.0
    %3142 = vmatpush.msra.mxu0 0.0
    %3143 = vmatpush.msra.mxu0 0.0
    %3144 = vmatpush.msra.mxu0 0.0
    %3145 = vmatpush.msra.mxu0 0.0
    %3146 = vmatpush.msra.mxu0 0.0
    %3147 = vmatpush.msra.mxu0 0.0
    %3148 = vmatpush.msra.mxu0 0.0
    %3149 = vmatpush.msra.mxu0 0.0
    %v3150 = vand.u32 %v3101, 4294901760
    %v3151 = vsub.f32 %v3101, %v3150
    %v3152 = vand.u32 %v3151, 4294901760
    %v3153 = vsub.f32 %v3151, %v3152
    %v3154 = vand.u32 %v3153, 4294901760
    %3155 = vmatpush.msra.mxu0 %v3154
    %v3156 = vand.u32 %v3100, 4294901760
    %v3157 = vsub.f32 %v3100, %v3156
    %v3158 = vand.u32 %v3157, 4294901760
    %v3159 = vsub.f32 %v3157, %v3158
    %v3160 = vand.u32 %v3159, 4294901760
    %3161 = vmatpush.msra.mxu0 %v3160
    %v3162 = vand.u32 %v3099, 4294901760
    %v3163 = vsub.f32 %v3099, %v3162
    %v3164 = vand.u32 %v3163, 4294901760
    %v3165 = vsub.f32 %v3163, %v3164
    %v3166 = vand.u32 %v3165, 4294901760
    %3167 = vmatpush.msra.mxu0 %v3166
    %v3168 = vand.u32 %v3098, 4294901760
    %v3169 = vsub.f32 %v3098, %v3168
    %v3170 = vand.u32 %v3169, 4294901760
    %v3171 = vsub.f32 %v3169, %v3170
    %v3172 = vand.u32 %v3171, 4294901760
    %3173 = vmatpush.msra.mxu0 %v3172
    %v3174 = vand.u32 %v3107, 4294901760
    %3175 = vmatmul.f32.gmra.mxu0 %v3174
    %v3176 = vpop.f32.mrf.mxu0
    %v3177 = vadd.f32 %v3136, %v3176
    %3178 = vdwg.mxu0
    %3179 = vmatpush.msra.mxu0 0.0
    %3180 = vmatpush.msra.mxu0 0.0
    %3181 = vmatpush.msra.mxu0 0.0
    %3182 = vmatpush.msra.mxu0 0.0
    %3183 = vmatpush.msra.mxu0 0.0
    %3184 = vmatpush.msra.mxu0 0.0
    %3185 = vmatpush.msra.mxu0 0.0
    %3186 = vmatpush.msra.mxu0 0.0
    %3187 = vmatpush.msra.mxu0 0.0
    %3188 = vmatpush.msra.mxu0 0.0
    %3189 = vmatpush.msra.mxu0 0.0
    %3190 = vmatpush.msra.mxu0 0.0
    %v3191 = vand.u32 %v3101, 4294901760
    %v3192 = vsub.f32 %v3101, %v3191
    %3193 = vmatpush.msra.mxu0 %v3192
    %v3194 = vand.u32 %v3100, 4294901760
    %v3195 = vsub.f32 %v3100, %v3194
    %3196 = vmatpush.msra.mxu0 %v3195
    %v3197 = vand.u32 %v3099, 4294901760
    %v3198 = vsub.f32 %v3099, %v3197
    %3199 = vmatpush.msra.mxu0 %v3198
    %v3200 = vand.u32 %v3098, 4294901760
    %v3201 = vsub.f32 %v3098, %v3200
    %3202 = vmatpush.msra.mxu0 %v3201
    %v3203 = vand.u32 %v3107, 4294901760
    %v3204 = vsub.f32 %v3107, %v3203
    %3205 = vmatmul.f32.gmra.mxu0 %v3204
    %v3206 = vpop.f32.mrf.mxu0
    %v3207 = vadd.f32 %v3177, %v3206
    %3208 = vdwg.mxu0
    %3209 = vmatpush.msra.mxu0 0.0
    %3210 = vmatpush.msra.mxu0 0.0
    %3211 = vmatpush.msra.mxu0 0.0
    %3212 = vmatpush.msra.mxu0 0.0
    %3213 = vmatpush.msra.mxu0 0.0
    %3214 = vmatpush.msra.mxu0 0.0
    %3215 = vmatpush.msra.mxu0 0.0
    %3216 = vmatpush.msra.mxu0 0.0
    %3217 = vmatpush.msra.mxu0 0.0
    %3218 = vmatpush.msra.mxu0 0.0
    %3219 = vmatpush.msra.mxu0 0.0
    %3220 = vmatpush.msra.mxu0 0.0
    %v3221 = vand.u32 %v3101, 4294901760
    %3222 = vmatpush.msra.mxu0 %v3221
    %v3223 = vand.u32 %v3100, 4294901760
    %3224 = vmatpush.msra.mxu0 %v3223
    %v3225 = vand.u32 %v3099, 4294901760
    %3226 = vmatpush.msra.mxu0 %v3225
    %v3227 = vand.u32 %v3098, 4294901760
    %3228 = vmatpush.msra.mxu0 %v3227
    %v3229 = vand.u32 %v3107, 4294901760
    %v3230 = vsub.f32 %v3107, %v3229
    %v3231 = vand.u32 %v3230, 4294901760
    %3232 = vmatmul.f32.gmra.mxu0 %v3231
    %v3233 = vpop.f32.mrf.mxu0
    %v3234 = vadd.f32 %v3207, %v3233
    %3235 = vdwg.mxu0
    %3236 = vmatpush.msra.mxu0 0.0
    %3237 = vmatpush.msra.mxu0 0.0
    %3238 = vmatpush.msra.mxu0 0.0
    %3239 = vmatpush.msra.mxu0 0.0
    %3240 = vmatpush.msra.mxu0 0.0
    %3241 = vmatpush.msra.mxu0 0.0
    %3242 = vmatpush.msra.mxu0 0.0
    %3243 = vmatpush.msra.mxu0 0.0
    %3244 = vmatpush.msra.mxu0 0.0
    %3245 = vmatpush.msra.mxu0 0.0
    %3246 = vmatpush.msra.mxu0 0.0
    %3247 = vmatpush.msra.mxu0 0.0
    %v3248 = vand.u32 %v3101, 4294901760
    %v3249 = vsub.f32 %v3101, %v3248
    %v3250 = vand.u32 %v3249, 4294901760
    %3251 = vmatpush.msra.mxu0 %v3250
    %v3252 = vand.u32 %v3100, 4294901760
    %v3253 = vsub.f32 %v3100, %v3252
    %v3254 = vand.u32 %v3253, 4294901760
    %3255 = vmatpush.msra.mxu0 %v3254
    %v3256 = vand.u32 %v3099, 4294901760
    %v3257 = vsub.f32 %v3099, %v3256
    %v3258 = vand.u32 %v3257, 4294901760
    %3259 = vmatpush.msra.mxu0 %v3258
    %v3260 = vand.u32 %v3098, 4294901760
    %v3261 = vsub.f32 %v3098, %v3260
    %v3262 = vand.u32 %v3261, 4294901760
    %3263 = vmatpush.msra.mxu0 %v3262
    %v3264 = vand.u32 %v3107, 4294901760
    %3265 = vmatmul.f32.gmra.mxu0 %v3264
    %v3266 = vpop.f32.mrf.mxu0
    %v3267 = vadd.f32 %v3234, %v3266
    %3268 = vdwg.mxu0
    %3269 = vmatpush.msra.mxu0 0.0
    %3270 = vmatpush.msra.mxu0 0.0
    %3271 = vmatpush.msra.mxu0 0.0
    %3272 = vmatpush.msra.mxu0 0.0
    %3273 = vmatpush.msra.mxu0 0.0
    %3274 = vmatpush.msra.mxu0 0.0
    %3275 = vmatpush.msra.mxu0 0.0
    %3276 = vmatpush.msra.mxu0 0.0
    %3277 = vmatpush.msra.mxu0 0.0
    %3278 = vmatpush.msra.mxu0 0.0
    %3279 = vmatpush.msra.mxu0 0.0
    %3280 = vmatpush.msra.mxu0 0.0
    %v3281 = vand.u32 %v3101, 4294901760
    %3282 = vmatpush.msra.mxu0 %v3281
    %v3283 = vand.u32 %v3100, 4294901760
    %3284 = vmatpush.msra.mxu0 %v3283
    %v3285 = vand.u32 %v3099, 4294901760
    %3286 = vmatpush.msra.mxu0 %v3285
    %v3287 = vand.u32 %v3098, 4294901760
    %3288 = vmatpush.msra.mxu0 %v3287
    %v3289 = vand.u32 %v3107, 4294901760
    %3290 = vmatmul.f32.gmra.mxu0 %v3289
    %v3291 = vpop.f32.mrf.mxu0
    %v3292 = vadd.f32 %v3267, %v3291
    %3293 = vdwg.mxu0
    %vm3294 = vcmask 1041408
    %v3295 = vsel %vm3294, %v3292, -inf
    %3296 = vmax.xlane.f32.xlu0 %v3295
    %v3297 = vpop.xlane.xlu0 %3296
    %v3298 = vsub.f32 %v3292, %v3297
    %v3299 = vmul.f32 %v3298, 1.442695
    %v3300 = vpow.pop %v3299
    %v3301 = vsel %vm3294, %v3300, 0.0
    %3302 = vadd.xlane.f32.xlu0 %v3301
    %v3303 = vpop.xlane.xlu0 %3302
    %v3304 = vrcp.pop %v3303
    %v3305 = vmul.f32 %v3303, %v3304
    %v3306 = vsub.f32 1.0, %v3305
    %v3307 = vmul.f32 %v3304, %v3306
    %v3308 = vadd.f32 %v3304, %v3307
    %vm3309 = vweird.f32 %v3303
    %vm3310 = vweird.f32 %v3304
    %vm3311 = vmor %vm3309, %vm3310
    %v3312 = vsel %vm3311, %v3304, %v3308
    %v3313 = vand.u32 2147483647, %v3303
    %vm3314 = vcmp.eq.f32.partialorder %v3313, 8.507059e+37
    %v3315 = vand.u32 %v3303, 2147483648
    %v3316 = vor.u32 1.1754944e-38, %v3315
    %v3317 = vsel %vm3314, %v3316, %v3312
    %v3318 = vmul.f32 %v3300, %v3317
    %3319 = vst [vmem:[#allocation2] sm:$0x3] %v3318
    // Predicated region
    $region34: #{tpu_custom_call.1} parent=1 // pred_check
      _
    $region35: #{tpu_custom_call.1} parent=1 // pred_check_branch
      %3321 = sbr.rel (0) target = $region37
    $region36: #{tpu_custom_call.1} parent=1 // pred_region
      %3323 = vsyncadd [#allocation3], 0
      %s3325 = sshll.u32 [#allocation2], 4
      %s3326 = int_to_ptr.vmem [resolvable:$true] %s3325
      %s3327 = sshll.u32 %s8, 4
      %s3328 = int_to_ptr.hbm [resolvable:$true] %s3327
      %3330 = dma.vmem_to_hbm [thread:$0]  %s3326, 32, %s3328, [#allocation3]
    $region37: #{tpu_custom_call.1} parent=1 // pred_fallthru
      _
    // Predicated region
    $region38: #{tpu_custom_call.1} parent=1 // pred_check
      _
    $region39: #{tpu_custom_call.1} parent=1 // pred_check_branch
      %3332 = sbr.rel (0) target = $region41
    $region40: #{tpu_custom_call.1} parent=1 // pred_region
      %3334 = dma.done [#allocation3], 32
    $region41: #{tpu_custom_call.1} parent=1 // pred_fallthru
      _
    %3335 = vsyncpa [#allocation3], 1

</llo_original>
